<compile_context>
chip_gen: v5e
topology: v5e:2x2
jax: 0.10.0
libtpu: 0.0.40
codegen_flags: <defaults>
</compile_context>

<pallas_src>
import jax
import jax.numpy as jnp
from jax import lax
from jax.experimental import pallas as pl
from jax.experimental.pallas import tpu as pltpu

# ---------------------------------------------------------------------------
# Model dims (from the PyTorch module)
# ---------------------------------------------------------------------------
D_X = 28 * 28              # 784 image features
D_LAB = 10                 # one-hot label
LAB_PAD = 16               # label padded to 16 lanes (bf16 sublane-packing friendly)
H1, H2, H3 = 1024, 512, 256
D4_ROWS = 128              # padded out-channel rows of the transposed final weight
NEG_SLOPE = 0.2


def _round_up(x, m):
    return ((x + m - 1) // m) * m


def _leaky_relu(x):
    return jnp.where(x > 0, x, NEG_SLOPE * x)


def _pick_batch_tile(B):
    if B < 256:
        return _round_up(max(B, 1), 16)       # single tile
    # >= 2 grid steps so both v7x TensorCores get work; bigger tiles dilute the
    # ~0.35 us per-grid-step pipeline overhead on every generation.
    for cand in (1024, 512, 256):
        if B >= 2 * cand:
            return cand
    return 128


def discriminator_kernel(x_ref, lab_ref,
                         w1a_ref, w1b_ref, b1_ref,
                         w2_ref, b2_ref,
                         w3_ref, b3_ref,
                         w4t_ref, b4_ref,
                         out_ref):
    # Layer 1, split at the image/label boundary (avoids host-side concat of feat):
    #   (TB,784)bf16 @ (784,1024)bf16  +  (TB,16)bf16 @ (16,1024)bf16 -> f32
    x = x_ref[...].astype(jnp.bfloat16)
    lab = lab_ref[...].astype(jnp.bfloat16)
    h = jnp.dot(x, w1a_ref[...], preferred_element_type=jnp.float32)
    h = h + jnp.dot(lab, w1b_ref[...], preferred_element_type=jnp.float32)
    h = _leaky_relu(h + b1_ref[...])
    # TODO(synk): Dropout(0.4) implemented as eval-mode identity (no masking).

    # Layer 2: (TB, 1024) @ (1024, 512)
    h = jnp.dot(h.astype(jnp.bfloat16), w2_ref[...],
                preferred_element_type=jnp.float32)
    h = _leaky_relu(h + b2_ref[...])

    # Layer 3: (TB, 512) @ (512, 256)
    h = jnp.dot(h.astype(jnp.bfloat16), w3_ref[...],
                preferred_element_type=jnp.float32)
    h = _leaky_relu(h + b3_ref[...])

    # Layer 4, computed transposed so the batch lands on lanes:
    #   W4t (128,256) contracted with h3 (TB,256) on the feature dim -> (128, TB).
    # Only row 0 holds the real out-channel; bias + exact sigmoid on that (1, TB) row.
    zt = lax.dot_general(w4t_ref[...], h.astype(jnp.bfloat16),
                         dimension_numbers=(((1,), (1,)), ((), ())),
                         preferred_element_type=jnp.float32)      # (128, TB)
    row = zt[0:1, :] + b4_ref[0]                                  # scalar bias (SMEM)
    out_ref[...] = 1.0 / (1.0 + jnp.exp(-row))                    # exact sigmoid


def init_params(key):
    """Deterministic synthetic parameters matching the kernel's storage layout."""
    ks = jax.random.split(key, 8)
    scale = 0.05

    def rnd(k, shape):
        return scale * jax.random.normal(k, shape, jnp.float32)

    w1_full = rnd(ks[0], (D_X + D_LAB, H1))                      # (794, 1024)
    b1 = rnd(ks[1], (H1,)).reshape(1, H1)
    w2 = rnd(ks[2], (H1, H2))
    b2 = rnd(ks[3], (H2,)).reshape(1, H2)
    w3 = rnd(ks[4], (H2, H3))
    b3 = rnd(ks[5], (H3,)).reshape(1, H3)
    w4 = rnd(ks[6], (H3, 1))
    b4 = rnd(ks[7], (1,))

    w1a = w1_full[:D_X, :].astype(jnp.bfloat16)                          # (784, 1024)
    w1b = (jnp.zeros((LAB_PAD, H1), jnp.float32)
           .at[:D_LAB, :].set(w1_full[D_X:, :])).astype(jnp.bfloat16)    # (16, 1024)
    w4t = (jnp.zeros((D4_ROWS, H3), jnp.float32)
           .at[0, :].set(w4[:, 0])).astype(jnp.bfloat16)                 # (128, 256)

    return (w1a, w1b, b1,
            w2.astype(jnp.bfloat16), b2,
            w3.astype(jnp.bfloat16), b3,
            w4t, b4)


def discriminator_forward(x, label, params):
    """x: (B, 1, 28, 28) f32, label: (B, 10) f32 -> (B,) f32 (sigmoid probabilities)."""
    B = x.shape[0]
    TB = _pick_batch_tile(B)
    Bp = _round_up(B, TB)

    x_flat = x.reshape(B, D_X)                                   # free view, stays f32
    if Bp != B:
        x_flat = jnp.pad(x_flat, ((0, Bp - B), (0, 0)))
    lab = jnp.pad(label, ((0, Bp - B), (0, LAB_PAD - D_LAB)))    # (Bp, 16) f32 (tiny)

    w1a, w1b, b1, w2, b2, w3, b3, w4t, b4 = params

    tiled = lambda r, c: pl.BlockSpec((r, c), lambda i: (i, 0))      # batch-tiled
    resident = lambda r, c: pl.BlockSpec((r, c), lambda i: (0, 0))   # fetched once

    out = pl.pallas_call(
        discriminator_kernel,
        out_shape=jax.ShapeDtypeStruct((1, Bp), jnp.float32),
        grid_spec=pltpu.PrefetchScalarGridSpec(
            num_scalar_prefetch=0,
            grid=(Bp // TB,),
            in_specs=[
                tiled(TB, D_X),                      # x        (TB, 784) f32
                tiled(TB, LAB_PAD),                  # label    (TB, 16)  f32
                resident(D_X, H1),                   # w1a
                resident(LAB_PAD, H1),               # w1b
                resident(1, H1),                     # b1
                resident(H1, H2),                    # w2
                resident(1, H2),                     # b2
                resident(H2, H3),                    # w3
                resident(1, H3),                     # b3
                resident(D4_ROWS, H3),               # w4t (transposed, row 0 real)
                pl.BlockSpec(memory_space=pltpu.MemorySpace.SMEM),   # b4 scalar
            ],
            out_specs=pl.BlockSpec((1, TB), lambda i: (0, i)),   # batch on lanes
        ),
        compiler_params=pltpu.CompilerParams(
            dimension_semantics=("parallel",),                   # shard tiles across TCs
            vmem_limit_bytes=(48 << 20) if TB >= 1024 else (32 << 20),
        ),
    )(x_flat, lab, w1a, w1b, b1, w2, b2, w3, b3, w4t, b4)

    # Lane-contiguous unpad; replicates torch's .squeeze() on the (B, 1) output.
    return out[0, :B]


def reference_forward(x, label, params):
    """Pure-JAX reference mirroring the kernel's bf16-input / f32-accum math."""
    w1a, w1b, b1, w2, b2, w3, b3, w4t, b4 = params
    B = x.shape[0]
    xf = x.reshape(B, D_X).astype(jnp.bfloat16)
    lab = label.astype(jnp.bfloat16)
    h = (jnp.dot(xf, w1a, preferred_element_type=jnp.float32)
         + jnp.dot(lab, w1b[:D_LAB, :], preferred_element_type=jnp.float32))
    h = _leaky_relu(h + b1)
    h = jnp.dot(h.astype(jnp.bfloat16), w2, preferred_element_type=jnp.float32)
    h = _leaky_relu(h + b2)
    h = jnp.dot(h.astype(jnp.bfloat16), w3, preferred_element_type=jnp.float32)
    h = _leaky_relu(h + b3)
    z = jnp.dot(h.astype(jnp.bfloat16), jnp.transpose(w4t[0:1, :]),
                preferred_element_type=jnp.float32)[:, 0] + b4[0]
    return jax.nn.sigmoid(z)


if __name__ == "__main__":
    key = jax.random.PRNGKey(0)
    k_params, k_x, k_lab = jax.random.split(key, 3)

    B = 2
    x = jax.random.normal(k_x, (B, 1, 28, 28), jnp.float32)
    label_idx = jax.random.randint(k_lab, (B,), 0, 10)
    label = jax.nn.one_hot(label_idx, 10, dtype=jnp.float32)

    params = init_params(k_params)

    out = discriminator_forward(x, label, params)
    out = jax.block_until_ready(out)

    ref = reference_forward(x, label, params)
    assert out.shape == (B,), f"bad output shape {out.shape}"
    # bf16 matmul inputs -> loosened tolerance (sigmoid is exact in both paths)
    assert jnp.allclose(out, ref, atol=5e-3, rtol=5e-3), "mismatch vs reference"

    print("KERNEL_OK")
</pallas_src>

<mosaic_0001>
module attributes {stable_mosaic.version = 11 : i64} {
  func.func @discriminator_kernel(%arg0: i32, %arg1: memref<16x784xf32, #tpu.memory_space<vmem>>, %arg2: memref<16x16xf32, #tpu.memory_space<vmem>>, %arg3: memref<784x1024xbf16, #tpu.memory_space<vmem>>, %arg4: memref<16x1024xbf16, #tpu.memory_space<vmem>>, %arg5: memref<1x1024xf32, #tpu.memory_space<vmem>>, %arg6: memref<1024x512xbf16, #tpu.memory_space<vmem>>, %arg7: memref<1x512xf32, #tpu.memory_space<vmem>>, %arg8: memref<512x256xbf16, #tpu.memory_space<vmem>>, %arg9: memref<1x256xf32, #tpu.memory_space<vmem>>, %arg10: memref<128x256xbf16, #tpu.memory_space<vmem>>, %arg11: memref<1xf32, #tpu.memory_space<smem>>, %arg12: memref<1x16xf32, #tpu.memory_space<vmem>>) attributes {dimension_semantics = [#tpu.dimension_semantics<parallel>], iteration_bounds = array<i64: 1>, scalar_prefetch = 0 : i64, scratch_operands = 0 : i64, tpu.core_type = #tpu.core_type<tc>, window_params = [{transform_indices = @transform_0, window_bounds = array<i64: 16, 784>}, {transform_indices = @transform_1, window_bounds = array<i64: 16, 16>}, {pipeline_mode = #tpu.pipeline_mode<synchronous>, transform_indices = @transform_2, window_bounds = array<i64: 784, 1024>}, {pipeline_mode = #tpu.pipeline_mode<synchronous>, transform_indices = @transform_3, window_bounds = array<i64: 16, 1024>}, {pipeline_mode = #tpu.pipeline_mode<synchronous>, transform_indices = @transform_4, window_bounds = array<i64: 1, 1024>}, {pipeline_mode = #tpu.pipeline_mode<synchronous>, transform_indices = @transform_5, window_bounds = array<i64: 1024, 512>}, {pipeline_mode = #tpu.pipeline_mode<synchronous>, transform_indices = @transform_6, window_bounds = array<i64: 1, 512>}, {pipeline_mode = #tpu.pipeline_mode<synchronous>, transform_indices = @transform_7, window_bounds = array<i64: 512, 256>}, {pipeline_mode = #tpu.pipeline_mode<synchronous>, transform_indices = @transform_8, window_bounds = array<i64: 1, 256>}, {pipeline_mode = #tpu.pipeline_mode<synchronous>, transform_indices = @transform_9, window_bounds = array<i64: 128, 256>}, {transform_indices = @transform_10, window_bounds = array<i64: 1>}, {transform_indices = @transform_11, window_bounds = array<i64: 1, 16>}]} {
    %c0 = arith.constant 0 : index
    %c0_0 = arith.constant 0 : index
    %0 = vector.load %arg1[%c0, %c0_0] : memref<16x784xf32, #tpu.memory_space<vmem>>, vector<16x784xf32>
    %1 = arith.truncf %0 : vector<16x784xf32> to vector<16x784xbf16>
    %c0_1 = arith.constant 0 : index
    %c0_2 = arith.constant 0 : index
    %2 = vector.load %arg2[%c0_1, %c0_2] : memref<16x16xf32, #tpu.memory_space<vmem>>, vector<16x16xf32>
    %3 = arith.truncf %2 : vector<16x16xf32> to vector<16x16xbf16>
    %c0_3 = arith.constant 0 : index
    %c0_4 = arith.constant 0 : index
    %4 = vector.load %arg3[%c0_3, %c0_4] : memref<784x1024xbf16, #tpu.memory_space<vmem>>, vector<784x1024xbf16>
    %cst = arith.constant dense<0.000000e+00> : vector<16x1024xf32>
    %5 = tpu.matmul %1, %4, %cst {dimension_numbers = #tpu.dot_dimension_numbers<[1], [0], [0], [1], [0, 0, 1, 1], [], []>} : vector<16x784xbf16>, vector<784x1024xbf16>, vector<16x1024xf32> -> vector<16x1024xf32>
    %c0_5 = arith.constant 0 : index
    %c0_6 = arith.constant 0 : index
    %6 = vector.load %arg4[%c0_5, %c0_6] : memref<16x1024xbf16, #tpu.memory_space<vmem>>, vector<16x1024xbf16>
    %cst_7 = arith.constant dense<0.000000e+00> : vector<16x1024xf32>
    %7 = tpu.matmul %3, %6, %cst_7 {dimension_numbers = #tpu.dot_dimension_numbers<[1], [0], [0], [1], [0, 0, 1, 1], [], []>} : vector<16x16xbf16>, vector<16x1024xbf16>, vector<16x1024xf32> -> vector<16x1024xf32>
    %8 = arith.addf %5, %7 : vector<16x1024xf32>
    %c0_8 = arith.constant 0 : index
    %c0_9 = arith.constant 0 : index
    %9 = vector.load %arg5[%c0_8, %c0_9] : memref<1x1024xf32, #tpu.memory_space<vmem>>, vector<1x1024xf32>
    %10 = vector.broadcast %9 : vector<1x1024xf32> to vector<16x1024xf32>
    %11 = arith.addf %8, %10 : vector<16x1024xf32>
    %cst_10 = arith.constant 0.000000e+00 : f32
    %12 = vector.broadcast %cst_10 : f32 to vector<16x1024xf32>
    %13 = arith.cmpf ogt, %11, %12 : vector<16x1024xf32>
    %cst_11 = arith.constant 2.000000e-01 : f32
    %14 = vector.broadcast %cst_11 : f32 to vector<16x1024xf32>
    %15 = arith.mulf %14, %11 : vector<16x1024xf32>
    %16 = arith.select %13, %11, %15 : vector<16x1024xi1>, vector<16x1024xf32>
    %17 = arith.truncf %16 : vector<16x1024xf32> to vector<16x1024xbf16>
    %c0_12 = arith.constant 0 : index
    %c0_13 = arith.constant 0 : index
    %18 = vector.load %arg6[%c0_12, %c0_13] : memref<1024x512xbf16, #tpu.memory_space<vmem>>, vector<1024x512xbf16>
    %cst_14 = arith.constant dense<0.000000e+00> : vector<16x512xf32>
    %19 = tpu.matmul %17, %18, %cst_14 {dimension_numbers = #tpu.dot_dimension_numbers<[1], [0], [0], [1], [0, 0, 1, 1], [], []>} : vector<16x1024xbf16>, vector<1024x512xbf16>, vector<16x512xf32> -> vector<16x512xf32>
    %c0_15 = arith.constant 0 : index
    %c0_16 = arith.constant 0 : index
    %20 = vector.load %arg7[%c0_15, %c0_16] : memref<1x512xf32, #tpu.memory_space<vmem>>, vector<1x512xf32>
    %21 = vector.broadcast %20 : vector<1x512xf32> to vector<16x512xf32>
    %22 = arith.addf %19, %21 : vector<16x512xf32>
    %cst_17 = arith.constant 0.000000e+00 : f32
    %23 = vector.broadcast %cst_17 : f32 to vector<16x512xf32>
    %24 = arith.cmpf ogt, %22, %23 : vector<16x512xf32>
    %cst_18 = arith.constant 2.000000e-01 : f32
    %25 = vector.broadcast %cst_18 : f32 to vector<16x512xf32>
    %26 = arith.mulf %25, %22 : vector<16x512xf32>
    %27 = arith.select %24, %22, %26 : vector<16x512xi1>, vector<16x512xf32>
    %28 = arith.truncf %27 : vector<16x512xf32> to vector<16x512xbf16>
    %c0_19 = arith.constant 0 : index
    %c0_20 = arith.constant 0 : index
    %29 = vector.load %arg8[%c0_19, %c0_20] : memref<512x256xbf16, #tpu.memory_space<vmem>>, vector<512x256xbf16>
    %cst_21 = arith.constant dense<0.000000e+00> : vector<16x256xf32>
    %30 = tpu.matmul %28, %29, %cst_21 {dimension_numbers = #tpu.dot_dimension_numbers<[1], [0], [0], [1], [0, 0, 1, 1], [], []>} : vector<16x512xbf16>, vector<512x256xbf16>, vector<16x256xf32> -> vector<16x256xf32>
    %c0_22 = arith.constant 0 : index
    %c0_23 = arith.constant 0 : index
    %31 = vector.load %arg9[%c0_22, %c0_23] : memref<1x256xf32, #tpu.memory_space<vmem>>, vector<1x256xf32>
    %32 = vector.broadcast %31 : vector<1x256xf32> to vector<16x256xf32>
    %33 = arith.addf %30, %32 : vector<16x256xf32>
    %cst_24 = arith.constant 0.000000e+00 : f32
    %34 = vector.broadcast %cst_24 : f32 to vector<16x256xf32>
    %35 = arith.cmpf ogt, %33, %34 : vector<16x256xf32>
    %cst_25 = arith.constant 2.000000e-01 : f32
    %36 = vector.broadcast %cst_25 : f32 to vector<16x256xf32>
    %37 = arith.mulf %36, %33 : vector<16x256xf32>
    %38 = arith.select %35, %33, %37 : vector<16x256xi1>, vector<16x256xf32>
    %c0_26 = arith.constant 0 : index
    %c0_27 = arith.constant 0 : index
    %39 = vector.load %arg10[%c0_26, %c0_27] : memref<128x256xbf16, #tpu.memory_space<vmem>>, vector<128x256xbf16>
    %40 = arith.truncf %38 : vector<16x256xf32> to vector<16x256xbf16>
    %cst_28 = arith.constant dense<0.000000e+00> : vector<128x16xf32>
    %41 = tpu.matmul %39, %40, %cst_28 {dimension_numbers = #tpu.dot_dimension_numbers<[1], [1], [0], [0], [0, 0, 1, 0], [], []>} : vector<128x256xbf16>, vector<16x256xbf16>, vector<128x16xf32> -> vector<128x16xf32>
    %42 = vector.extract_strided_slice %41 {offsets = [0, 0], sizes = [1, 16], strides = [1, 1]} : vector<128x16xf32> to vector<1x16xf32>
    %c0_29 = arith.constant 0 : index
    %43 = memref.load %arg11[%c0_29] : memref<1xf32, #tpu.memory_space<smem>>
    %44 = vector.broadcast %43 : f32 to vector<1x16xf32>
    %45 = arith.addf %42, %44 : vector<1x16xf32>
    %cst_30 = arith.constant 0.000000e+00 : f32
    %46 = vector.broadcast %cst_30 : f32 to vector<1x16xf32>
    %47 = arith.subf %46, %45 : vector<1x16xf32>
    %48 = math.exp %47 : vector<1x16xf32>
    %cst_31 = arith.constant 1.000000e+00 : f32
    %49 = vector.broadcast %cst_31 : f32 to vector<1x16xf32>
    %50 = arith.addf %49, %48 : vector<1x16xf32>
    %cst_32 = arith.constant 1.000000e+00 : f32
    %51 = vector.broadcast %cst_32 : f32 to vector<1x16xf32>
    %52 = arith.divf %51, %50 : vector<1x16xf32>
    %c0_33 = arith.constant 0 : index
    %c0_34 = arith.constant 0 : index
    %53 = vector.load %arg12[%c0_33, %c0_34] : memref<1x16xf32, #tpu.memory_space<vmem>>, vector<1x16xf32>
    tpu.vector_store %arg12[%c0_33, %c0_34], %52 {strides = array<i32>} : memref<1x16xf32, #tpu.memory_space<vmem>>, vector<1x16xf32>,
    return
  }
  func.func @transform_0(%arg0: i32) -> (i32, i32) {
    %c0_i32 = arith.constant 0 : i32
    %c0_i32_0 = arith.constant 0 : i32
    return %arg0, %c0_i32 : i32, i32
  }
  func.func @transform_1(%arg0: i32) -> (i32, i32) {
    %c0_i32 = arith.constant 0 : i32
    %c0_i32_0 = arith.constant 0 : i32
    return %arg0, %c0_i32 : i32, i32
  }
  func.func @transform_2(%arg0: i32) -> (i32, i32) {
    %c0_i32 = arith.constant 0 : i32
    %c0_i32_0 = arith.constant 0 : i32
    %c0_i32_1 = arith.constant 0 : i32
    return %c0_i32, %c0_i32_0 : i32, i32
  }
  func.func @transform_3(%arg0: i32) -> (i32, i32) {
    %c0_i32 = arith.constant 0 : i32
    %c0_i32_0 = arith.constant 0 : i32
    %c0_i32_1 = arith.constant 0 : i32
    return %c0_i32, %c0_i32_0 : i32, i32
  }
  func.func @transform_4(%arg0: i32) -> (i32, i32) {
    %c0_i32 = arith.constant 0 : i32
    %c0_i32_0 = arith.constant 0 : i32
    %c0_i32_1 = arith.constant 0 : i32
    return %c0_i32, %c0_i32_0 : i32, i32
  }
  func.func @transform_5(%arg0: i32) -> (i32, i32) {
    %c0_i32 = arith.constant 0 : i32
    %c0_i32_0 = arith.constant 0 : i32
    %c0_i32_1 = arith.constant 0 : i32
    return %c0_i32, %c0_i32_0 : i32, i32
  }
  func.func @transform_6(%arg0: i32) -> (i32, i32) {
    %c0_i32 = arith.constant 0 : i32
    %c0_i32_0 = arith.constant 0 : i32
    %c0_i32_1 = arith.constant 0 : i32
    return %c0_i32, %c0_i32_0 : i32, i32
  }
  func.func @transform_7(%arg0: i32) -> (i32, i32) {
    %c0_i32 = arith.constant 0 : i32
    %c0_i32_0 = arith.constant 0 : i32
    %c0_i32_1 = arith.constant 0 : i32
    return %c0_i32, %c0_i32_0 : i32, i32
  }
  func.func @transform_8(%arg0: i32) -> (i32, i32) {
    %c0_i32 = arith.constant 0 : i32
    %c0_i32_0 = arith.constant 0 : i32
    %c0_i32_1 = arith.constant 0 : i32
    return %c0_i32, %c0_i32_0 : i32, i32
  }
  func.func @transform_9(%arg0: i32) -> (i32, i32) {
    %c0_i32 = arith.constant 0 : i32
    %c0_i32_0 = arith.constant 0 : i32
    %c0_i32_1 = arith.constant 0 : i32
    return %c0_i32, %c0_i32_0 : i32, i32
  }
  func.func @transform_10(%arg0: i32) -> i32 {
    %c0_i32 = arith.constant 0 : i32
    %c0_i32_0 = arith.constant 0 : i32
    return %c0_i32 : i32
  }
  func.func @transform_11(%arg0: i32) -> (i32, i32) {
    %c0_i32 = arith.constant 0 : i32
    %c0_i32_0 = arith.constant 0 : i32
    return %c0_i32, %arg0 : i32, i32
  }
}

</mosaic_0001>

<llo_original>
// kernel: tpu_custom_call.1
$region0: #{tpu_custom_call.1}
  #allocation0 [shape = 'u32[]', space=smem, size = 0x4, offset = 0x4, fixed_abs, tag = 'smem constant byte address 0x4 - core index']
  #allocation1 [shape = 'u32[72,128]{1,0:T(1,128)}', space=vmem, size = 0x9000, scoped, tag = 'internal scratch']
  #allocation2 [shape = 'f32[1]{0:T(128)S(6)}', space=smem, size = 0x200, scoped, tag = 'scoped memory for tpu_custom_call.1']
  %s0 = inlined_call_operand.hbm [shape: f32[16,784], index: 0, kind: input, shape index: {}]
  %s1 = inlined_call_operand.hbm [shape: f32[16,16], index: 1, kind: input, shape index: {}]
  %s2 = inlined_call_operand.hbm [shape: bf16[784,1024], index: 2, kind: input, shape index: {}]
  %s3 = inlined_call_operand.hbm [shape: bf16[16,1024], index: 3, kind: input, shape index: {}]
  %s4 = inlined_call_operand.hbm [shape: f32[1,1024], index: 4, kind: input, shape index: {}]
  %s5 = inlined_call_operand.hbm [shape: bf16[1024,512], index: 5, kind: input, shape index: {}]
  %s6 = inlined_call_operand.hbm [shape: f32[1,512], index: 6, kind: input, shape index: {}]
  %s7 = inlined_call_operand.hbm [shape: bf16[512,256], index: 7, kind: input, shape index: {}]
  %s8 = inlined_call_operand.hbm [shape: f32[1,256], index: 8, kind: input, shape index: {}]
  %s9 = inlined_call_operand.hbm [shape: bf16[128,256], index: 9, kind: input, shape index: {}]
  %s10 = inlined_call_operand.<no memory space> [shape: f32[1], index: 10, kind: input, shape index: {}]
  %s11 = inlined_call_operand.hbm [shape: f32[1,16], index: 11, kind: output, shape index: {}]
  %s12 = sld [smem:[#allocation0]]
  $region94: #{tpu_custom_call.1} parent=0
    _
  %s14 = ssub.s32 1, %s12
  %s15 = scalar_select 0, %s14, %s12
  %16 = sst [smem:[#allocation2]] %s10
  $region1: #{tpu_custom_call.1} parent=0
    #allocation3 [shape = 'u8[57344]{0}', space=vmem, size = 0xe000, scoped, tag = 'input window, operand 0, single buffered']
    #allocation4 [shape = 's32[1]{0}', space=sflag, size = 0x4, scoped, tag = 'scoped memory for tpu_custom_call.1']
    #allocation5 [shape = 's32[1]{0}', space=sflag, size = 0x4, scoped, tag = 'scoped memory for tpu_custom_call.1']
    #allocation6 [shape = 'u8[8192]{0}', space=vmem, size = 0x2000, scoped, tag = 'input window, operand 1, single buffered']
    #allocation7 [shape = 's32[1]{0}', space=sflag, size = 0x4, scoped, tag = 'scoped memory for tpu_custom_call.1']
    #allocation8 [shape = 'u8[1605632]{0}', space=vmem, size = 0x188000, scoped, tag = 'input window, operand 2, single buffered']
    #allocation9 [shape = 'u8[32768]{0}', space=vmem, size = 0x8000, scoped, tag = 'input window, operand 3, single buffered']
    #allocation10 [shape = 's32[1]{0}', space=sflag, size = 0x4, scoped, tag = 'scoped memory for tpu_custom_call.1']
    #allocation11 [shape = 'u8[4096]{0}', space=vmem, size = 0x1000, scoped, tag = 'input window, operand 4, single buffered']
    #allocation12 [shape = 'u8[1048576]{0}', space=vmem, size = 0x100000, scoped, tag = 'input window, operand 5, single buffered']
    #allocation13 [shape = 's32[1]{0}', space=sflag, size = 0x4, scoped, tag = 'scoped memory for tpu_custom_call.1']
    #allocation14 [shape = 'u8[2048]{0}', space=vmem, size = 0x800, scoped, tag = 'input window, operand 6, single buffered']
    #allocation15 [shape = 'u8[262144]{0}', space=vmem, size = 0x40000, scoped, tag = 'input window, operand 7, single buffered']
    #allocation16 [shape = 's32[1]{0}', space=sflag, size = 0x4, scoped, tag = 'scoped memory for tpu_custom_call.1']
    #allocation17 [shape = 'u8[1024]{0}', space=vmem, size = 0x400, scoped, tag = 'input window, operand 8, single buffered']
    #allocation18 [shape = 'u8[65536]{0}', space=vmem, size = 0x10000, scoped, tag = 'input window, operand 9, single buffered']
    #allocation19 [shape = 's32[1]{0}', space=sflag, size = 0x4, scoped, tag = 'scoped memory for tpu_custom_call.1']
    #allocation20 [shape = 'u8[512]{0}', space=vmem, size = 0x400, scoped, tag = 'output window, operand 0, single buffered']
    %17 = vsyncpa [#allocation4], 0
    %18 = vsyncpa [#allocation7], 0
    %19 = vsyncpa [#allocation10], 0
    %20 = vsyncpa [#allocation13], 0
    %21 = vsyncpa [#allocation16], 0
    %22 = vsyncpa [#allocation19], 0
    %23 = vsyncpa [#allocation5], 0
    // Predicated region
    $region2: #{tpu_custom_call.1} parent=1 // pred_check
      _
    $region3: #{tpu_custom_call.1} parent=1 // pred_check_branch
      %25 = sbr.rel (0) target = $region5
    $region4: #{tpu_custom_call.1} parent=1 // pred_region
      %27 = vsyncadd [#allocation4], 0
      %s28 = sshll.u32 %s0, 4
      %s29 = int_to_ptr.hbm [resolvable:$true] %s28
      %s30 = sshll.u32 [#allocation3], 4
      %s31 = int_to_ptr.vmem [resolvable:$true] %s30
      %36 = dma.hbm_to_vmem [thread:$0]  %s29, 1792, %s31, [#allocation4], 896, 896, 56
    $region5: #{tpu_custom_call.1} parent=1 // pred_fallthru
      _
    // Predicated region
    $region6: #{tpu_custom_call.1} parent=1 // pred_check
      _
    $region7: #{tpu_custom_call.1} parent=1 // pred_check_branch
      %38 = sbr.rel (0) target = $region9
    $region8: #{tpu_custom_call.1} parent=1 // pred_region
      %40 = vsyncadd [#allocation7], 0
      %s41 = sshll.u32 %s1, 4
      %s42 = int_to_ptr.hbm [resolvable:$true] %s41
      %s43 = sshll.u32 [#allocation6], 4
      %s44 = int_to_ptr.vmem [resolvable:$true] %s43
      %49 = dma.hbm_to_vmem [thread:$0]  %s42, 256, %s44, [#allocation7], 128, 128, 8
    $region9: #{tpu_custom_call.1} parent=1 // pred_fallthru
      _
    // Predicated region
    $region10: #{tpu_custom_call.1} parent=1 // pred_check
      _
    $region11: #{tpu_custom_call.1} parent=1 // pred_check_branch
      %51 = sbr.rel (0) target = $region13
    $region12: #{tpu_custom_call.1} parent=1 // pred_region
      %53 = vsyncadd [#allocation7], 0
      %s54 = sshll.u32 %s2, 4
      %s55 = int_to_ptr.hbm [resolvable:$true] %s54
      %s56 = sshll.u32 [#allocation8], 4
      %s57 = int_to_ptr.vmem [resolvable:$true] %s56
      %62 = dma.hbm_to_vmem [thread:$0]  %s55, 50176, %s57, [#allocation7], 512, 512, 32
    $region13: #{tpu_custom_call.1} parent=1 // pred_fallthru
      _
    // Predicated region
    $region14: #{tpu_custom_call.1} parent=1 // pred_check
      _
    $region15: #{tpu_custom_call.1} parent=1 // pred_check_branch
      %64 = sbr.rel (0) target = $region17
    $region16: #{tpu_custom_call.1} parent=1 // pred_region
      %66 = vsyncadd [#allocation10], 0
      %s67 = sshll.u32 %s3, 4
      %s68 = int_to_ptr.hbm [resolvable:$true] %s67
      %s69 = sshll.u32 [#allocation9], 4
      %s70 = int_to_ptr.vmem [resolvable:$true] %s69
      %75 = dma.hbm_to_vmem [thread:$0]  %s68, 1024, %s70, [#allocation10], 512, 512, 32
    $region17: #{tpu_custom_call.1} parent=1 // pred_fallthru
      _
    // Predicated region
    $region18: #{tpu_custom_call.1} parent=1 // pred_check
      _
    $region19: #{tpu_custom_call.1} parent=1 // pred_check_branch
      %77 = sbr.rel (0) target = $region21
    $region20: #{tpu_custom_call.1} parent=1 // pred_region
      %79 = vsyncadd [#allocation10], 0
      %s81 = sshll.u32 %s4, 4
      %s82 = int_to_ptr.hbm [resolvable:$true] %s81
      %s83 = sshll.u32 [#allocation11], 4
      %s84 = int_to_ptr.vmem [resolvable:$true] %s83
      %86 = dma.hbm_to_vmem [thread:$0]  %s82, 128, %s84, [#allocation10]
    $region21: #{tpu_custom_call.1} parent=1 // pred_fallthru
      _
    // Predicated region
    $region22: #{tpu_custom_call.1} parent=1 // pred_check
      _
    $region23: #{tpu_custom_call.1} parent=1 // pred_check_branch
      %88 = sbr.rel (0) target = $region25
    $region24: #{tpu_custom_call.1} parent=1 // pred_region
      %90 = vsyncadd [#allocation13], 0
      %s91 = sshll.u32 %s5, 4
      %s92 = int_to_ptr.hbm [resolvable:$true] %s91
      %s93 = sshll.u32 [#allocation12], 4
      %s94 = int_to_ptr.vmem [resolvable:$true] %s93
      %99 = dma.hbm_to_vmem [thread:$0]  %s92, 32768, %s94, [#allocation13], 256, 256, 16
    $region25: #{tpu_custom_call.1} parent=1 // pred_fallthru
      _
    // Predicated region
    $region26: #{tpu_custom_call.1} parent=1 // pred_check
      _
    $region27: #{tpu_custom_call.1} parent=1 // pred_check_branch
      %101 = sbr.rel (0) target = $region29
    $region28: #{tpu_custom_call.1} parent=1 // pred_region
      %103 = vsyncadd [#allocation13], 0
      %s105 = sshll.u32 %s6, 4
      %s106 = int_to_ptr.hbm [resolvable:$true] %s105
      %s107 = sshll.u32 [#allocation14], 4
      %s108 = int_to_ptr.vmem [resolvable:$true] %s107
      %110 = dma.hbm_to_vmem [thread:$0]  %s106, 64, %s108, [#allocation13]
    $region29: #{tpu_custom_call.1} parent=1 // pred_fallthru
      _
    // Predicated region
    $region30: #{tpu_custom_call.1} parent=1 // pred_check
      _
    $region31: #{tpu_custom_call.1} parent=1 // pred_check_branch
      %112 = sbr.rel (0) target = $region33
    $region32: #{tpu_custom_call.1} parent=1 // pred_region
      %114 = vsyncadd [#allocation16], 0
      %s115 = sshll.u32 %s7, 4
      %s116 = int_to_ptr.hbm [resolvable:$true] %s115
      %s117 = sshll.u32 [#allocation15], 4
      %s118 = int_to_ptr.vmem [resolvable:$true] %s117
      %123 = dma.hbm_to_vmem [thread:$0]  %s116, 8192, %s118, [#allocation16], 128, 128, 8
    $region33: #{tpu_custom_call.1} parent=1 // pred_fallthru
      _
    // Predicated region
    $region34: #{tpu_custom_call.1} parent=1 // pred_check
      _
    $region35: #{tpu_custom_call.1} parent=1 // pred_check_branch
      %125 = sbr.rel (0) target = $region37
    $region36: #{tpu_custom_call.1} parent=1 // pred_region
      %127 = vsyncadd [#allocation16], 0
      %s129 = sshll.u32 %s8, 4
      %s130 = int_to_ptr.hbm [resolvable:$true] %s129
      %s131 = sshll.u32 [#allocation17], 4
      %s132 = int_to_ptr.vmem [resolvable:$true] %s131
      %134 = dma.hbm_to_vmem [thread:$0]  %s130, 32, %s132, [#allocation16]
    $region37: #{tpu_custom_call.1} parent=1 // pred_fallthru
      _
    // Predicated region
    $region38: #{tpu_custom_call.1} parent=1 // pred_check
      _
    $region39: #{tpu_custom_call.1} parent=1 // pred_check_branch
      %136 = sbr.rel (0) target = $region41
    $region40: #{tpu_custom_call.1} parent=1 // pred_region
      %138 = vsyncadd [#allocation19], 0
      %s139 = sshll.u32 %s9, 4
      %s140 = int_to_ptr.hbm [resolvable:$true] %s139
      %s141 = sshll.u32 [#allocation18], 4
      %s142 = int_to_ptr.vmem [resolvable:$true] %s141
      %147 = dma.hbm_to_vmem [thread:$0]  %s140, 2048, %s142, [#allocation19], 128, 128, 8
    $region41: #{tpu_custom_call.1} parent=1 // pred_fallthru
      _
    // Predicated region
    $region42: #{tpu_custom_call.1} parent=1 // pred_check
      _
    $region43: #{tpu_custom_call.1} parent=1 // pred_check_branch
      %149 = sbr.rel (0) target = $region45
    $region44: #{tpu_custom_call.1} parent=1 // pred_region
      _
    $region45: #{tpu_custom_call.1} parent=1 // pred_fallthru
      _
    // Predicated region
    $region46: #{tpu_custom_call.1} parent=1 // pred_check
      _
    $region47: #{tpu_custom_call.1} parent=1 // pred_check_branch
      %151 = sbr.rel (0) target = $region49
    $region48: #{tpu_custom_call.1} parent=1 // pred_region
      %153 = dma.done [#allocation4], 1792
    $region49: #{tpu_custom_call.1} parent=1 // pred_fallthru
      _
    // Predicated region
    $region50: #{tpu_custom_call.1} parent=1 // pred_check
      _
    $region51: #{tpu_custom_call.1} parent=1 // pred_check_branch
      %155 = sbr.rel (0) target = $region53
    $region52: #{tpu_custom_call.1} parent=1 // pred_region
      %157 = dma.done [#allocation7], 256
    $region53: #{tpu_custom_call.1} parent=1 // pred_fallthru
      _
    // Predicated region
    $region54: #{tpu_custom_call.1} parent=1 // pred_check
      _
    $region55: #{tpu_custom_call.1} parent=1 // pred_check_branch
      %159 = sbr.rel (0) target = $region57
    $region56: #{tpu_custom_call.1} parent=1 // pred_region
      %161 = dma.done [#allocation7], 50176
    $region57: #{tpu_custom_call.1} parent=1 // pred_fallthru
      _
    // Predicated region
    $region58: #{tpu_custom_call.1} parent=1 // pred_check
      _
    $region59: #{tpu_custom_call.1} parent=1 // pred_check_branch
      %163 = sbr.rel (0) target = $region61
    $region60: #{tpu_custom_call.1} parent=1 // pred_region
      %165 = dma.done [#allocation10], 1024
    $region61: #{tpu_custom_call.1} parent=1 // pred_fallthru
      _
    // Predicated region
    $region62: #{tpu_custom_call.1} parent=1 // pred_check
      _
    $region63: #{tpu_custom_call.1} parent=1 // pred_check_branch
      %167 = sbr.rel (0) target = $region65
    $region64: #{tpu_custom_call.1} parent=1 // pred_region
      %169 = dma.done [#allocation10], 128
    $region65: #{tpu_custom_call.1} parent=1 // pred_fallthru
      _
    // Predicated region
    $region66: #{tpu_custom_call.1} parent=1 // pred_check
      _
    $region67: #{tpu_custom_call.1} parent=1 // pred_check_branch
      %171 = sbr.rel (0) target = $region69
    $region68: #{tpu_custom_call.1} parent=1 // pred_region
      %173 = dma.done [#allocation13], 32768
    $region69: #{tpu_custom_call.1} parent=1 // pred_fallthru
      _
    // Predicated region
    $region70: #{tpu_custom_call.1} parent=1 // pred_check
      _
    $region71: #{tpu_custom_call.1} parent=1 // pred_check_branch
      %175 = sbr.rel (0) target = $region73
    $region72: #{tpu_custom_call.1} parent=1 // pred_region
      %177 = dma.done [#allocation13], 64
    $region73: #{tpu_custom_call.1} parent=1 // pred_fallthru
      _
    // Predicated region
    $region74: #{tpu_custom_call.1} parent=1 // pred_check
      _
    $region75: #{tpu_custom_call.1} parent=1 // pred_check_branch
      %179 = sbr.rel (0) target = $region77
    $region76: #{tpu_custom_call.1} parent=1 // pred_region
      %181 = dma.done [#allocation16], 8192
    $region77: #{tpu_custom_call.1} parent=1 // pred_fallthru
      _
    // Predicated region
    $region78: #{tpu_custom_call.1} parent=1 // pred_check
      _
    $region79: #{tpu_custom_call.1} parent=1 // pred_check_branch
      %183 = sbr.rel (0) target = $region81
    $region80: #{tpu_custom_call.1} parent=1 // pred_region
      %185 = dma.done [#allocation16], 32
    $region81: #{tpu_custom_call.1} parent=1 // pred_fallthru
      _
    // Predicated region
    $region82: #{tpu_custom_call.1} parent=1 // pred_check
      _
    $region83: #{tpu_custom_call.1} parent=1 // pred_check_branch
      %187 = sbr.rel (0) target = $region85
    $region84: #{tpu_custom_call.1} parent=1 // pred_region
      %189 = dma.done [#allocation19], 2048
    $region85: #{tpu_custom_call.1} parent=1 // pred_fallthru
      _
    %v191 = vld [vmem:[#allocation3] sm:$0xff]
    %v192 = vld [vmem:[#allocation3 + $0x8] sm:$0xff]
    %v193 = vld [vmem:[#allocation3 + $0x10] sm:$0xff]
    %v194 = vld [vmem:[#allocation3 + $0x18] sm:$0xff]
    %v195 = vld [vmem:[#allocation3 + $0x20] sm:$0xff]
    %v196 = vld [vmem:[#allocation3 + $0x28] sm:$0xff]
    %v197 = vld [vmem:[#allocation3 + $0x30] sm:$0xff]
    %v198 = vld [vmem:[#allocation3 + $0x38] sm:$0xff]
    %v199 = vld [vmem:[#allocation3 + $0x40] sm:$0xff]
    %v200 = vld [vmem:[#allocation3 + $0x48] sm:$0xff]
    %v201 = vld [vmem:[#allocation3 + $0x50] sm:$0xff]
    %v202 = vld [vmem:[#allocation3 + $0x58] sm:$0xff]
    %v203 = vld [vmem:[#allocation3 + $0x60] sm:$0xff]
    %v204 = vld [vmem:[#allocation3 + $0x68] sm:$0xff]
    %v205 = vpack.c.bf16 %v198, %v191
    %v206 = vpack.c.bf16 %v199, %v192
    %v207 = vpack.c.bf16 %v200, %v193
    %v208 = vpack.c.bf16 %v201, %v194
    %v209 = vpack.c.bf16 %v202, %v195
    %v210 = vpack.c.bf16 %v203, %v196
    %v211 = vpack.c.bf16 %v204, %v197
    %v212 = vld [vmem:[#allocation6] sm:$0xff]
    %v213 = vld [vmem:[#allocation6 + $0x8] sm:$0xff]
    %v214 = vpack.c.bf16 %v213, %v212
    %v215 = vld [vmem:[#allocation8] sm:$0xff]
    %v216 = vld [vmem:[#allocation8 + $0x8] sm:$0xff]
    %v217 = vld [vmem:[#allocation8 + $0x10] sm:$0xff]
    %v218 = vld [vmem:[#allocation8 + $0x18] sm:$0xff]
    %v219 = vld [vmem:[#allocation8 + $0x20] sm:$0xff]
    %v220 = vld [vmem:[#allocation8 + $0x28] sm:$0xff]
    %v221 = vld [vmem:[#allocation8 + $0x30] sm:$0xff]
    %v222 = vld [vmem:[#allocation8 + $0x38] sm:$0xff]
    %v223 = vld [vmem:[#allocation8 + $0x40] sm:$0xff]
    %v224 = vld [vmem:[#allocation8 + $0x48] sm:$0xff]
    %v225 = vld [vmem:[#allocation8 + $0x50] sm:$0xff]
    %v226 = vld [vmem:[#allocation8 + $0x58] sm:$0xff]
    %v227 = vld [vmem:[#allocation8 + $0x60] sm:$0xff]
    %v228 = vld [vmem:[#allocation8 + $0x68] sm:$0xff]
    %v229 = vld [vmem:[#allocation8 + $0x70] sm:$0xff]
    %v230 = vld [vmem:[#allocation8 + $0x78] sm:$0xff]
    %v231 = vld [vmem:[#allocation8 + $0x80] sm:$0xff]
    %v232 = vld [vmem:[#allocation8 + $0x88] sm:$0xff]
    %v233 = vld [vmem:[#allocation8 + $0x90] sm:$0xff]
    %v234 = vld [vmem:[#allocation8 + $0x98] sm:$0xff]
    %v235 = vld [vmem:[#allocation8 + $0xa0] sm:$0xff]
    %v236 = vld [vmem:[#allocation8 + $0xa8] sm:$0xff]
    %v237 = vld [vmem:[#allocation8 + $0xb0] sm:$0xff]
    %v238 = vld [vmem:[#allocation8 + $0xb8] sm:$0xff]
    %v239 = vld [vmem:[#allocation8 + $0xc0] sm:$0xff]
    %v240 = vld [vmem:[#allocation8 + $0xc8] sm:$0xff]
    %v241 = vld [vmem:[#allocation8 + $0xd0] sm:$0xff]
    %v242 = vld [vmem:[#allocation8 + $0xd8] sm:$0xff]
    %v243 = vld [vmem:[#allocation8 + $0xe0] sm:$0xff]
    %v244 = vld [vmem:[#allocation8 + $0xe8] sm:$0xff]
    %v245 = vld [vmem:[#allocation8 + $0xf0] sm:$0xff]
    %v246 = vld [vmem:[#allocation8 + $0xf8] sm:$0xff]
    %v247 = vld [vmem:[#allocation8 + $0x100] sm:$0xff]
    %v248 = vld [vmem:[#allocation8 + $0x108] sm:$0xff]
    %v249 = vld [vmem:[#allocation8 + $0x110] sm:$0xff]
    %v250 = vld [vmem:[#allocation8 + $0x118] sm:$0xff]
    %v251 = vld [vmem:[#allocation8 + $0x120] sm:$0xff]
    %v252 = vld [vmem:[#allocation8 + $0x128] sm:$0xff]
    %v253 = vld [vmem:[#allocation8 + $0x130] sm:$0xff]
    %v254 = vld [vmem:[#allocation8 + $0x138] sm:$0xff]
    %v255 = vld [vmem:[#allocation8 + $0x140] sm:$0xff]
    %v256 = vld [vmem:[#allocation8 + $0x148] sm:$0xff]
    %v257 = vld [vmem:[#allocation8 + $0x150] sm:$0xff]
    %v258 = vld [vmem:[#allocation8 + $0x158] sm:$0xff]
    %v259 = vld [vmem:[#allocation8 + $0x160] sm:$0xff]
    %v260 = vld [vmem:[#allocation8 + $0x168] sm:$0xff]
    %v261 = vld [vmem:[#allocation8 + $0x170] sm:$0xff]
    %v262 = vld [vmem:[#allocation8 + $0x178] sm:$0xff]
    %v263 = vld [vmem:[#allocation8 + $0x180] sm:$0xff]
    %v264 = vld [vmem:[#allocation8 + $0x188] sm:$0xff]
    %v265 = vld [vmem:[#allocation8 + $0x190] sm:$0xff]
    %v266 = vld [vmem:[#allocation8 + $0x198] sm:$0xff]
    %v267 = vld [vmem:[#allocation8 + $0x1a0] sm:$0xff]
    %v268 = vld [vmem:[#allocation8 + $0x1a8] sm:$0xff]
    %v269 = vld [vmem:[#allocation8 + $0x1b0] sm:$0xff]
    %v270 = vld [vmem:[#allocation8 + $0x1b8] sm:$0xff]
    %v271 = vld [vmem:[#allocation8 + $0x1c0] sm:$0xff]
    %v272 = vld [vmem:[#allocation8 + $0x1c8] sm:$0xff]
    %v273 = vld [vmem:[#allocation8 + $0x1d0] sm:$0xff]
    %v274 = vld [vmem:[#allocation8 + $0x1d8] sm:$0xff]
    %v275 = vld [vmem:[#allocation8 + $0x1e0] sm:$0xff]
    %v276 = vld [vmem:[#allocation8 + $0x1e8] sm:$0xff]
    %v277 = vld [vmem:[#allocation8 + $0x1f0] sm:$0xff]
    %v278 = vld [vmem:[#allocation8 + $0x1f8] sm:$0xff]
    %v279 = vld [vmem:[#allocation8 + $0x200] sm:$0xff]
    %v280 = vld [vmem:[#allocation8 + $0x208] sm:$0xff]
    %v281 = vld [vmem:[#allocation8 + $0x210] sm:$0xff]
    %v282 = vld [vmem:[#allocation8 + $0x218] sm:$0xff]
    %v283 = vld [vmem:[#allocation8 + $0x220] sm:$0xff]
    %v284 = vld [vmem:[#allocation8 + $0x228] sm:$0xff]
    %v285 = vld [vmem:[#allocation8 + $0x230] sm:$0xff]
    %v286 = vld [vmem:[#allocation8 + $0x238] sm:$0xff]
    %v287 = vld [vmem:[#allocation8 + $0x240] sm:$0xff]
    %v288 = vld [vmem:[#allocation8 + $0x248] sm:$0xff]
    %v289 = vld [vmem:[#allocation8 + $0x250] sm:$0xff]
    %v290 = vld [vmem:[#allocation8 + $0x258] sm:$0xff]
    %v291 = vld [vmem:[#allocation8 + $0x260] sm:$0xff]
    %v292 = vld [vmem:[#allocation8 + $0x268] sm:$0xff]
    %v293 = vld [vmem:[#allocation8 + $0x270] sm:$0xff]
    %v294 = vld [vmem:[#allocation8 + $0x278] sm:$0xff]
    %v295 = vld [vmem:[#allocation8 + $0x280] sm:$0xff]
    %v296 = vld [vmem:[#allocation8 + $0x288] sm:$0xff]
    %v297 = vld [vmem:[#allocation8 + $0x290] sm:$0xff]
    %v298 = vld [vmem:[#allocation8 + $0x298] sm:$0xff]
    %v299 = vld [vmem:[#allocation8 + $0x2a0] sm:$0xff]
    %v300 = vld [vmem:[#allocation8 + $0x2a8] sm:$0xff]
    %v301 = vld [vmem:[#allocation8 + $0x2b0] sm:$0xff]
    %v302 = vld [vmem:[#allocation8 + $0x2b8] sm:$0xff]
    %v303 = vld [vmem:[#allocation8 + $0x2c0] sm:$0xff]
    %v304 = vld [vmem:[#allocation8 + $0x2c8] sm:$0xff]
    %v305 = vld [vmem:[#allocation8 + $0x2d0] sm:$0xff]
    %v306 = vld [vmem:[#allocation8 + $0x2d8] sm:$0xff]
    %v307 = vld [vmem:[#allocation8 + $0x2e0] sm:$0xff]
    %v308 = vld [vmem:[#allocation8 + $0x2e8] sm:$0xff]
    %v309 = vld [vmem:[#allocation8 + $0x2f0] sm:$0xff]
    %v310 = vld [vmem:[#allocation8 + $0x2f8] sm:$0xff]
    %v311 = vld [vmem:[#allocation8 + $0x300] sm:$0xff]
    %v312 = vld [vmem:[#allocation8 + $0x308] sm:$0xff]
    %v313 = vld [vmem:[#allocation8 + $0x310] sm:$0xff]
    %v314 = vld [vmem:[#allocation8 + $0x318] sm:$0xff]
    %v315 = vld [vmem:[#allocation8 + $0x320] sm:$0xff]
    %v316 = vld [vmem:[#allocation8 + $0x328] sm:$0xff]
    %v317 = vld [vmem:[#allocation8 + $0x330] sm:$0xff]
    %v318 = vld [vmem:[#allocation8 + $0x338] sm:$0xff]
    %v319 = vld [vmem:[#allocation8 + $0x340] sm:$0xff]
    %v320 = vld [vmem:[#allocation8 + $0x348] sm:$0xff]
    %v321 = vld [vmem:[#allocation8 + $0x350] sm:$0xff]
    %v322 = vld [vmem:[#allocation8 + $0x358] sm:$0xff]
    %v323 = vld [vmem:[#allocation8 + $0x360] sm:$0xff]
    %v324 = vld [vmem:[#allocation8 + $0x368] sm:$0xff]
    %v325 = vld [vmem:[#allocation8 + $0x370] sm:$0xff]
    %v326 = vld [vmem:[#allocation8 + $0x378] sm:$0xff]
    %v327 = vld [vmem:[#allocation8 + $0x380] sm:$0xff]
    %v328 = vld [vmem:[#allocation8 + $0x388] sm:$0xff]
    %v329 = vld [vmem:[#allocation8 + $0x390] sm:$0xff]
    %v330 = vld [vmem:[#allocation8 + $0x398] sm:$0xff]
    %v331 = vld [vmem:[#allocation8 + $0x3a0] sm:$0xff]
    %v332 = vld [vmem:[#allocation8 + $0x3a8] sm:$0xff]
    %v333 = vld [vmem:[#allocation8 + $0x3b0] sm:$0xff]
    %v334 = vld [vmem:[#allocation8 + $0x3b8] sm:$0xff]
    %v335 = vld [vmem:[#allocation8 + $0x3c0] sm:$0xff]
    %v336 = vld [vmem:[#allocation8 + $0x3c8] sm:$0xff]
    %v337 = vld [vmem:[#allocation8 + $0x3d0] sm:$0xff]
    %v338 = vld [vmem:[#allocation8 + $0x3d8] sm:$0xff]
    %v339 = vld [vmem:[#allocation8 + $0x3e0] sm:$0xff]
    %v340 = vld [vmem:[#allocation8 + $0x3e8] sm:$0xff]
    %v341 = vld [vmem:[#allocation8 + $0x3f0] sm:$0xff]
    %v342 = vld [vmem:[#allocation8 + $0x3f8] sm:$0xff]
    %v343 = vld [vmem:[#allocation8 + $0x400] sm:$0xff]
    %v344 = vld [vmem:[#allocation8 + $0x408] sm:$0xff]
    %v345 = vld [vmem:[#allocation8 + $0x410] sm:$0xff]
    %v346 = vld [vmem:[#allocation8 + $0x418] sm:$0xff]
    %v347 = vld [vmem:[#allocation8 + $0x420] sm:$0xff]
    %v348 = vld [vmem:[#allocation8 + $0x428] sm:$0xff]
    %v349 = vld [vmem:[#allocation8 + $0x430] sm:$0xff]
    %v350 = vld [vmem:[#allocation8 + $0x438] sm:$0xff]
    %v351 = vld [vmem:[#allocation8 + $0x440] sm:$0xff]
    %v352 = vld [vmem:[#allocation8 + $0x448] sm:$0xff]
    %v353 = vld [vmem:[#allocation8 + $0x450] sm:$0xff]
    %v354 = vld [vmem:[#allocation8 + $0x458] sm:$0xff]
    %v355 = vld [vmem:[#allocation8 + $0x460] sm:$0xff]
    %v356 = vld [vmem:[#allocation8 + $0x468] sm:$0xff]
    %v357 = vld [vmem:[#allocation8 + $0x470] sm:$0xff]
    %v358 = vld [vmem:[#allocation8 + $0x478] sm:$0xff]
    %v359 = vld [vmem:[#allocation8 + $0x480] sm:$0xff]
    %v360 = vld [vmem:[#allocation8 + $0x488] sm:$0xff]
    %v361 = vld [vmem:[#allocation8 + $0x490] sm:$0xff]
    %v362 = vld [vmem:[#allocation8 + $0x498] sm:$0xff]
    %v363 = vld [vmem:[#allocation8 + $0x4a0] sm:$0xff]
    %v364 = vld [vmem:[#allocation8 + $0x4a8] sm:$0xff]
    %v365 = vld [vmem:[#allocation8 + $0x4b0] sm:$0xff]
    %v366 = vld [vmem:[#allocation8 + $0x4b8] sm:$0xff]
    %v367 = vld [vmem:[#allocation8 + $0x4c0] sm:$0xff]
    %v368 = vld [vmem:[#allocation8 + $0x4c8] sm:$0xff]
    %v369 = vld [vmem:[#allocation8 + $0x4d0] sm:$0xff]
    %v370 = vld [vmem:[#allocation8 + $0x4d8] sm:$0xff]
    %v371 = vld [vmem:[#allocation8 + $0x4e0] sm:$0xff]
    %v372 = vld [vmem:[#allocation8 + $0x4e8] sm:$0xff]
    %v373 = vld [vmem:[#allocation8 + $0x4f0] sm:$0xff]
    %v374 = vld [vmem:[#allocation8 + $0x4f8] sm:$0xff]
    %v375 = vld [vmem:[#allocation8 + $0x500] sm:$0xff]
    %v376 = vld [vmem:[#allocation8 + $0x508] sm:$0xff]
    %v377 = vld [vmem:[#allocation8 + $0x510] sm:$0xff]
    %v378 = vld [vmem:[#allocation8 + $0x518] sm:$0xff]
    %v379 = vld [vmem:[#allocation8 + $0x520] sm:$0xff]
    %v380 = vld [vmem:[#allocation8 + $0x528] sm:$0xff]
    %v381 = vld [vmem:[#allocation8 + $0x530] sm:$0xff]
    %v382 = vld [vmem:[#allocation8 + $0x538] sm:$0xff]
    %v383 = vld [vmem:[#allocation8 + $0x540] sm:$0xff]
    %v384 = vld [vmem:[#allocation8 + $0x548] sm:$0xff]
    %v385 = vld [vmem:[#allocation8 + $0x550] sm:$0xff]
    %v386 = vld [vmem:[#allocation8 + $0x558] sm:$0xff]
    %v387 = vld [vmem:[#allocation8 + $0x560] sm:$0xff]
    %v388 = vld [vmem:[#allocation8 + $0x568] sm:$0xff]
    %v389 = vld [vmem:[#allocation8 + $0x570] sm:$0xff]
    %v390 = vld [vmem:[#allocation8 + $0x578] sm:$0xff]
    %v391 = vld [vmem:[#allocation8 + $0x580] sm:$0xff]
    %v392 = vld [vmem:[#allocation8 + $0x588] sm:$0xff]
    %v393 = vld [vmem:[#allocation8 + $0x590] sm:$0xff]
    %v394 = vld [vmem:[#allocation8 + $0x598] sm:$0xff]
    %v395 = vld [vmem:[#allocation8 + $0x5a0] sm:$0xff]
    %v396 = vld [vmem:[#allocation8 + $0x5a8] sm:$0xff]
    %v397 = vld [vmem:[#allocation8 + $0x5b0] sm:$0xff]
    %v398 = vld [vmem:[#allocation8 + $0x5b8] sm:$0xff]
    %v399 = vld [vmem:[#allocation8 + $0x5c0] sm:$0xff]
    %v400 = vld [vmem:[#allocation8 + $0x5c8] sm:$0xff]
    %v401 = vld [vmem:[#allocation8 + $0x5d0] sm:$0xff]
    %v402 = vld [vmem:[#allocation8 + $0x5d8] sm:$0xff]
    %v403 = vld [vmem:[#allocation8 + $0x5e0] sm:$0xff]
    %v404 = vld [vmem:[#allocation8 + $0x5e8] sm:$0xff]
    %v405 = vld [vmem:[#allocation8 + $0x5f0] sm:$0xff]
    %v406 = vld [vmem:[#allocation8 + $0x5f8] sm:$0xff]
    %v407 = vld [vmem:[#allocation8 + $0x600] sm:$0xff]
    %v408 = vld [vmem:[#allocation8 + $0x608] sm:$0xff]
    %v409 = vld [vmem:[#allocation8 + $0x610] sm:$0xff]
    %v410 = vld [vmem:[#allocation8 + $0x618] sm:$0xff]
    %v411 = vld [vmem:[#allocation8 + $0x620] sm:$0xff]
    %v412 = vld [vmem:[#allocation8 + $0x628] sm:$0xff]
    %v413 = vld [vmem:[#allocation8 + $0x630] sm:$0xff]
    %v414 = vld [vmem:[#allocation8 + $0x638] sm:$0xff]
    %v415 = vld [vmem:[#allocation8 + $0x640] sm:$0xff]
    %v416 = vld [vmem:[#allocation8 + $0x648] sm:$0xff]
    %v417 = vld [vmem:[#allocation8 + $0x650] sm:$0xff]
    %v418 = vld [vmem:[#allocation8 + $0x658] sm:$0xff]
    %v419 = vld [vmem:[#allocation8 + $0x660] sm:$0xff]
    %v420 = vld [vmem:[#allocation8 + $0x668] sm:$0xff]
    %v421 = vld [vmem:[#allocation8 + $0x670] sm:$0xff]
    %v422 = vld [vmem:[#allocation8 + $0x678] sm:$0xff]
    %v423 = vld [vmem:[#allocation8 + $0x680] sm:$0xff]
    %v424 = vld [vmem:[#allocation8 + $0x688] sm:$0xff]
    %v425 = vld [vmem:[#allocation8 + $0x690] sm:$0xff]
    %v426 = vld [vmem:[#allocation8 + $0x698] sm:$0xff]
    %v427 = vld [vmem:[#allocation8 + $0x6a0] sm:$0xff]
    %v428 = vld [vmem:[#allocation8 + $0x6a8] sm:$0xff]
    %v429 = vld [vmem:[#allocation8 + $0x6b0] sm:$0xff]
    %v430 = vld [vmem:[#allocation8 + $0x6b8] sm:$0xff]
    %v431 = vld [vmem:[#allocation8 + $0x6c0] sm:$0xff]
    %v432 = vld [vmem:[#allocation8 + $0x6c8] sm:$0xff]
    %v433 = vld [vmem:[#allocation8 + $0x6d0] sm:$0xff]
    %v434 = vld [vmem:[#allocation8 + $0x6d8] sm:$0xff]
    %v435 = vld [vmem:[#allocation8 + $0x6e0] sm:$0xff]
    %v436 = vld [vmem:[#allocation8 + $0x6e8] sm:$0xff]
    %v437 = vld [vmem:[#allocation8 + $0x6f0] sm:$0xff]
    %v438 = vld [vmem:[#allocation8 + $0x6f8] sm:$0xff]
    %v439 = vld [vmem:[#allocation8 + $0x700] sm:$0xff]
    %v440 = vld [vmem:[#allocation8 + $0x708] sm:$0xff]
    %v441 = vld [vmem:[#allocation8 + $0x710] sm:$0xff]
    %v442 = vld [vmem:[#allocation8 + $0x718] sm:$0xff]
    %v443 = vld [vmem:[#allocation8 + $0x720] sm:$0xff]
    %v444 = vld [vmem:[#allocation8 + $0x728] sm:$0xff]
    %v445 = vld [vmem:[#allocation8 + $0x730] sm:$0xff]
    %v446 = vld [vmem:[#allocation8 + $0x738] sm:$0xff]
    %v447 = vld [vmem:[#allocation8 + $0x740] sm:$0xff]
    %v448 = vld [vmem:[#allocation8 + $0x748] sm:$0xff]
    %v449 = vld [vmem:[#allocation8 + $0x750] sm:$0xff]
    %v450 = vld [vmem:[#allocation8 + $0x758] sm:$0xff]
    %v451 = vld [vmem:[#allocation8 + $0x760] sm:$0xff]
    %v452 = vld [vmem:[#allocation8 + $0x768] sm:$0xff]
    %v453 = vld [vmem:[#allocation8 + $0x770] sm:$0xff]
    %v454 = vld [vmem:[#allocation8 + $0x778] sm:$0xff]
    %v455 = vld [vmem:[#allocation8 + $0x780] sm:$0xff]
    %v456 = vld [vmem:[#allocation8 + $0x788] sm:$0xff]
    %v457 = vld [vmem:[#allocation8 + $0x790] sm:$0xff]
    %v458 = vld [vmem:[#allocation8 + $0x798] sm:$0xff]
    %v459 = vld [vmem:[#allocation8 + $0x7a0] sm:$0xff]
    %v460 = vld [vmem:[#allocation8 + $0x7a8] sm:$0xff]
    %v461 = vld [vmem:[#allocation8 + $0x7b0] sm:$0xff]
    %v462 = vld [vmem:[#allocation8 + $0x7b8] sm:$0xff]
    %v463 = vld [vmem:[#allocation8 + $0x7c0] sm:$0xff]
    %v464 = vld [vmem:[#allocation8 + $0x7c8] sm:$0xff]
    %v465 = vld [vmem:[#allocation8 + $0x7d0] sm:$0xff]
    %v466 = vld [vmem:[#allocation8 + $0x7d8] sm:$0xff]
    %v467 = vld [vmem:[#allocation8 + $0x7e0] sm:$0xff]
    %v468 = vld [vmem:[#allocation8 + $0x7e8] sm:$0xff]
    %v469 = vld [vmem:[#allocation8 + $0x7f0] sm:$0xff]
    %v470 = vld [vmem:[#allocation8 + $0x7f8] sm:$0xff]
    %v471 = vld [vmem:[#allocation8 + $0x800] sm:$0xff]
    %v472 = vld [vmem:[#allocation8 + $0x808] sm:$0xff]
    %v473 = vld [vmem:[#allocation8 + $0x810] sm:$0xff]
    %v474 = vld [vmem:[#allocation8 + $0x818] sm:$0xff]
    %v475 = vld [vmem:[#allocation8 + $0x820] sm:$0xff]
    %v476 = vld [vmem:[#allocation8 + $0x828] sm:$0xff]
    %v477 = vld [vmem:[#allocation8 + $0x830] sm:$0xff]
    %v478 = vld [vmem:[#allocation8 + $0x838] sm:$0xff]
    %v479 = vld [vmem:[#allocation8 + $0x840] sm:$0xff]
    %v480 = vld [vmem:[#allocation8 + $0x848] sm:$0xff]
    %v481 = vld [vmem:[#allocation8 + $0x850] sm:$0xff]
    %v482 = vld [vmem:[#allocation8 + $0x858] sm:$0xff]
    %v483 = vld [vmem:[#allocation8 + $0x860] sm:$0xff]
    %v484 = vld [vmem:[#allocation8 + $0x868] sm:$0xff]
    %v485 = vld [vmem:[#allocation8 + $0x870] sm:$0xff]
    %v486 = vld [vmem:[#allocation8 + $0x878] sm:$0xff]
    %v487 = vld [vmem:[#allocation8 + $0x880] sm:$0xff]
    %v488 = vld [vmem:[#allocation8 + $0x888] sm:$0xff]
    %v489 = vld [vmem:[#allocation8 + $0x890] sm:$0xff]
    %v490 = vld [vmem:[#allocation8 + $0x898] sm:$0xff]
    %v491 = vld [vmem:[#allocation8 + $0x8a0] sm:$0xff]
    %v492 = vld [vmem:[#allocation8 + $0x8a8] sm:$0xff]
    %v493 = vld [vmem:[#allocation8 + $0x8b0] sm:$0xff]
    %v494 = vld [vmem:[#allocation8 + $0x8b8] sm:$0xff]
    %v495 = vld [vmem:[#allocation8 + $0x8c0] sm:$0xff]
    %v496 = vld [vmem:[#allocation8 + $0x8c8] sm:$0xff]
    %v497 = vld [vmem:[#allocation8 + $0x8d0] sm:$0xff]
    %v498 = vld [vmem:[#allocation8 + $0x8d8] sm:$0xff]
    %v499 = vld [vmem:[#allocation8 + $0x8e0] sm:$0xff]
    %v500 = vld [vmem:[#allocation8 + $0x8e8] sm:$0xff]
    %v501 = vld [vmem:[#allocation8 + $0x8f0] sm:$0xff]
    %v502 = vld [vmem:[#allocation8 + $0x8f8] sm:$0xff]
    %v503 = vld [vmem:[#allocation8 + $0x900] sm:$0xff]
    %v504 = vld [vmem:[#allocation8 + $0x908] sm:$0xff]
    %v505 = vld [vmem:[#allocation8 + $0x910] sm:$0xff]
    %v506 = vld [vmem:[#allocation8 + $0x918] sm:$0xff]
    %v507 = vld [vmem:[#allocation8 + $0x920] sm:$0xff]
    %v508 = vld [vmem:[#allocation8 + $0x928] sm:$0xff]
    %v509 = vld [vmem:[#allocation8 + $0x930] sm:$0xff]
    %v510 = vld [vmem:[#allocation8 + $0x938] sm:$0xff]
    %v511 = vld [vmem:[#allocation8 + $0x940] sm:$0xff]
    %v512 = vld [vmem:[#allocation8 + $0x948] sm:$0xff]
    %v513 = vld [vmem:[#allocation8 + $0x950] sm:$0xff]
    %v514 = vld [vmem:[#allocation8 + $0x958] sm:$0xff]
    %v515 = vld [vmem:[#allocation8 + $0x960] sm:$0xff]
    %v516 = vld [vmem:[#allocation8 + $0x968] sm:$0xff]
    %v517 = vld [vmem:[#allocation8 + $0x970] sm:$0xff]
    %v518 = vld [vmem:[#allocation8 + $0x978] sm:$0xff]
    %v519 = vld [vmem:[#allocation8 + $0x980] sm:$0xff]
    %v520 = vld [vmem:[#allocation8 + $0x988] sm:$0xff]
    %v521 = vld [vmem:[#allocation8 + $0x990] sm:$0xff]
    %v522 = vld [vmem:[#allocation8 + $0x998] sm:$0xff]
    %v523 = vld [vmem:[#allocation8 + $0x9a0] sm:$0xff]
    %v524 = vld [vmem:[#allocation8 + $0x9a8] sm:$0xff]
    %v525 = vld [vmem:[#allocation8 + $0x9b0] sm:$0xff]
    %v526 = vld [vmem:[#allocation8 + $0x9b8] sm:$0xff]
    %v527 = vld [vmem:[#allocation8 + $0x9c0] sm:$0xff]
    %v528 = vld [vmem:[#allocation8 + $0x9c8] sm:$0xff]
    %v529 = vld [vmem:[#allocation8 + $0x9d0] sm:$0xff]
    %v530 = vld [vmem:[#allocation8 + $0x9d8] sm:$0xff]
    %v531 = vld [vmem:[#allocation8 + $0x9e0] sm:$0xff]
    %v532 = vld [vmem:[#allocation8 + $0x9e8] sm:$0xff]
    %v533 = vld [vmem:[#allocation8 + $0x9f0] sm:$0xff]
    %v534 = vld [vmem:[#allocation8 + $0x9f8] sm:$0xff]
    %v535 = vld [vmem:[#allocation8 + $0xa00] sm:$0xff]
    %v536 = vld [vmem:[#allocation8 + $0xa08] sm:$0xff]
    %v537 = vld [vmem:[#allocation8 + $0xa10] sm:$0xff]
    %v538 = vld [vmem:[#allocation8 + $0xa18] sm:$0xff]
    %v539 = vld [vmem:[#allocation8 + $0xa20] sm:$0xff]
    %v540 = vld [vmem:[#allocation8 + $0xa28] sm:$0xff]
    %v541 = vld [vmem:[#allocation8 + $0xa30] sm:$0xff]
    %v542 = vld [vmem:[#allocation8 + $0xa38] sm:$0xff]
    %v543 = vld [vmem:[#allocation8 + $0xa40] sm:$0xff]
    %v544 = vld [vmem:[#allocation8 + $0xa48] sm:$0xff]
    %v545 = vld [vmem:[#allocation8 + $0xa50] sm:$0xff]
    %v546 = vld [vmem:[#allocation8 + $0xa58] sm:$0xff]
    %v547 = vld [vmem:[#allocation8 + $0xa60] sm:$0xff]
    %v548 = vld [vmem:[#allocation8 + $0xa68] sm:$0xff]
    %v549 = vld [vmem:[#allocation8 + $0xa70] sm:$0xff]
    %v550 = vld [vmem:[#allocation8 + $0xa78] sm:$0xff]
    %v551 = vld [vmem:[#allocation8 + $0xa80] sm:$0xff]
    %v552 = vld [vmem:[#allocation8 + $0xa88] sm:$0xff]
    %v553 = vld [vmem:[#allocation8 + $0xa90] sm:$0xff]
    %v554 = vld [vmem:[#allocation8 + $0xa98] sm:$0xff]
    %v555 = vld [vmem:[#allocation8 + $0xaa0] sm:$0xff]
    %v556 = vld [vmem:[#allocation8 + $0xaa8] sm:$0xff]
    %v557 = vld [vmem:[#allocation8 + $0xab0] sm:$0xff]
    %v558 = vld [vmem:[#allocation8 + $0xab8] sm:$0xff]
    %v559 = vld [vmem:[#allocation8 + $0xac0] sm:$0xff]
    %v560 = vld [vmem:[#allocation8 + $0xac8] sm:$0xff]
    %v561 = vld [vmem:[#allocation8 + $0xad0] sm:$0xff]
    %v562 = vld [vmem:[#allocation8 + $0xad8] sm:$0xff]
    %v563 = vld [vmem:[#allocation8 + $0xae0] sm:$0xff]
    %v564 = vld [vmem:[#allocation8 + $0xae8] sm:$0xff]
    %v565 = vld [vmem:[#allocation8 + $0xaf0] sm:$0xff]
    %v566 = vld [vmem:[#allocation8 + $0xaf8] sm:$0xff]
    %v567 = vld [vmem:[#allocation8 + $0xb00] sm:$0xff]
    %v568 = vld [vmem:[#allocation8 + $0xb08] sm:$0xff]
    %v569 = vld [vmem:[#allocation8 + $0xb10] sm:$0xff]
    %v570 = vld [vmem:[#allocation8 + $0xb18] sm:$0xff]
    %v571 = vld [vmem:[#allocation8 + $0xb20] sm:$0xff]
    %v572 = vld [vmem:[#allocation8 + $0xb28] sm:$0xff]
    %v573 = vld [vmem:[#allocation8 + $0xb30] sm:$0xff]
    %v574 = vld [vmem:[#allocation8 + $0xb38] sm:$0xff]
    %v575 = vld [vmem:[#allocation8 + $0xb40] sm:$0xff]
    %v576 = vld [vmem:[#allocation8 + $0xb48] sm:$0xff]
    %v577 = vld [vmem:[#allocation8 + $0xb50] sm:$0xff]
    %v578 = vld [vmem:[#allocation8 + $0xb58] sm:$0xff]
    %v579 = vld [vmem:[#allocation8 + $0xb60] sm:$0xff]
    %v580 = vld [vmem:[#allocation8 + $0xb68] sm:$0xff]
    %v581 = vld [vmem:[#allocation8 + $0xb70] sm:$0xff]
    %v582 = vld [vmem:[#allocation8 + $0xb78] sm:$0xff]
    %v583 = vld [vmem:[#allocation8 + $0xb80] sm:$0xff]
    %v584 = vld [vmem:[#allocation8 + $0xb88] sm:$0xff]
    %v585 = vld [vmem:[#allocation8 + $0xb90] sm:$0xff]
    %v586 = vld [vmem:[#allocation8 + $0xb98] sm:$0xff]
    %v587 = vld [vmem:[#allocation8 + $0xba0] sm:$0xff]
    %v588 = vld [vmem:[#allocation8 + $0xba8] sm:$0xff]
    %v589 = vld [vmem:[#allocation8 + $0xbb0] sm:$0xff]
    %v590 = vld [vmem:[#allocation8 + $0xbb8] sm:$0xff]
    %v591 = vld [vmem:[#allocation8 + $0xbc0] sm:$0xff]
    %v592 = vld [vmem:[#allocation8 + $0xbc8] sm:$0xff]
    %v593 = vld [vmem:[#allocation8 + $0xbd0] sm:$0xff]
    %v594 = vld [vmem:[#allocation8 + $0xbd8] sm:$0xff]
    %v595 = vld [vmem:[#allocation8 + $0xbe0] sm:$0xff]
    %v596 = vld [vmem:[#allocation8 + $0xbe8] sm:$0xff]
    %v597 = vld [vmem:[#allocation8 + $0xbf0] sm:$0xff]
    %v598 = vld [vmem:[#allocation8 + $0xbf8] sm:$0xff]
    %v599 = vld [vmem:[#allocation8 + $0xc00] sm:$0xff]
    %v600 = vld [vmem:[#allocation8 + $0xc08] sm:$0xff]
    %v601 = vld [vmem:[#allocation8 + $0xc10] sm:$0xff]
    %v602 = vld [vmem:[#allocation8 + $0xc18] sm:$0xff]
    %v603 = vld [vmem:[#allocation8 + $0xc20] sm:$0xff]
    %v604 = vld [vmem:[#allocation8 + $0xc28] sm:$0xff]
    %v605 = vld [vmem:[#allocation8 + $0xc30] sm:$0xff]
    %v606 = vld [vmem:[#allocation8 + $0xc38] sm:$0xff]
    %v607 = vld [vmem:[#allocation9] sm:$0xff]
    %v608 = vld [vmem:[#allocation9 + $0x8] sm:$0xff]
    %v609 = vld [vmem:[#allocation9 + $0x10] sm:$0xff]
    %v610 = vld [vmem:[#allocation9 + $0x18] sm:$0xff]
    %v611 = vld [vmem:[#allocation9 + $0x20] sm:$0xff]
    %v612 = vld [vmem:[#allocation9 + $0x28] sm:$0xff]
    %v613 = vld [vmem:[#allocation9 + $0x30] sm:$0xff]
    %v614 = vld [vmem:[#allocation9 + $0x38] sm:$0xff]
    %v623 = vunpack.c.l.b16 %v607
    %v624 = vunpack.c.h.b16 %v607
    %v625 = vunpack.c.l.b16 %v608
    %v626 = vunpack.c.h.b16 %v608
    %v627 = vunpack.c.l.b16 %v609
    %v628 = vunpack.c.h.b16 %v609
    %v629 = vunpack.c.l.b16 %v610
    %v630 = vunpack.c.h.b16 %v610
    %v631 = vunpack.c.l.b16 %v611
    %v632 = vunpack.c.h.b16 %v611
    %v633 = vunpack.c.l.b16 %v612
    %v634 = vunpack.c.h.b16 %v612
    %v635 = vunpack.c.l.b16 %v613
    %v636 = vunpack.c.h.b16 %v613
    %v637 = vunpack.c.l.b16 %v614
    %v638 = vunpack.c.h.b16 %v614
    %v639 = vpack.c.b16 %v631, %v623
    %v640 = vpack.c.b16 %v632, %v624
    %v641 = vpack.c.b16 %v633, %v625
    %v642 = vpack.c.b16 %v634, %v626
    %v643 = vpack.c.b16 %v635, %v627
    %v644 = vpack.c.b16 %v636, %v628
    %v645 = vpack.c.b16 %v637, %v629
    %v646 = vpack.c.b16 %v638, %v630
    %vm655 = vcmask 130048
    %v657 = vsel %vm655, %v214, 0
    %659 = vmatpush.bf16.msra.mxu0 0
    %660 = vmatpush.bf16.msra.mxu0 0
    %661 = vmatpush.bf16.msra.mxu0 0
    %662 = vmatpush.bf16.msra.mxu0 0
    %663 = vmatpush.bf16.msra.mxu0 0
    %664 = vmatpush.bf16.msra.mxu0 0
    %665 = vmatpush.bf16.msra.mxu0 0
    %666 = vmatpush.bf16.msra.mxu0 %v639
    %667 = vmatmul.bf16.gmra.mxu0 %v657
    %v668 = vpop.f32.mrf.mxu0
    %v669 = vadd.f32 0.0, %v668
    %v670 = vpop.f32.mrf.mxu0
    %v671 = vadd.f32 0.0, %v670
    %672 = vdwg.mxu0
    %673 = vmatpush.bf16.msra.mxu0 0
    %674 = vmatpush.bf16.msra.mxu0 0
    %675 = vmatpush.bf16.msra.mxu0 0
    %676 = vmatpush.bf16.msra.mxu0 0
    %677 = vmatpush.bf16.msra.mxu0 0
    %678 = vmatpush.bf16.msra.mxu0 0
    %679 = vmatpush.bf16.msra.mxu0 0
    %680 = vmatpush.bf16.msra.mxu0 %v640
    %681 = vmatmul.bf16.gmra.mxu0 %v657
    %v682 = vpop.f32.mrf.mxu0
    %v683 = vadd.f32 0.0, %v682
    %v684 = vpop.f32.mrf.mxu0
    %v685 = vadd.f32 0.0, %v684
    %686 = vdwg.mxu0
    %687 = vmatpush.bf16.msra.mxu0 0
    %688 = vmatpush.bf16.msra.mxu0 0
    %689 = vmatpush.bf16.msra.mxu0 0
    %690 = vmatpush.bf16.msra.mxu0 0
    %691 = vmatpush.bf16.msra.mxu0 0
    %692 = vmatpush.bf16.msra.mxu0 0
    %693 = vmatpush.bf16.msra.mxu0 0
    %694 = vmatpush.bf16.msra.mxu0 %v641
    %695 = vmatmul.bf16.gmra.mxu0 %v657
    %v696 = vpop.f32.mrf.mxu0
    %v697 = vadd.f32 0.0, %v696
    %v698 = vpop.f32.mrf.mxu0
    %v699 = vadd.f32 0.0, %v698
    %700 = vdwg.mxu0
    %701 = vmatpush.bf16.msra.mxu0 0
    %702 = vmatpush.bf16.msra.mxu0 0
    %703 = vmatpush.bf16.msra.mxu0 0
    %704 = vmatpush.bf16.msra.mxu0 0
    %705 = vmatpush.bf16.msra.mxu0 0
    %706 = vmatpush.bf16.msra.mxu0 0
    %707 = vmatpush.bf16.msra.mxu0 0
    %708 = vmatpush.bf16.msra.mxu0 %v642
    %709 = vmatmul.bf16.gmra.mxu0 %v657
    %v710 = vpop.f32.mrf.mxu0
    %v711 = vadd.f32 0.0, %v710
    %v712 = vpop.f32.mrf.mxu0
    %v713 = vadd.f32 0.0, %v712
    %714 = vdwg.mxu0
    %715 = vmatpush.bf16.msra.mxu0 0
    %716 = vmatpush.bf16.msra.mxu0 0
    %717 = vmatpush.bf16.msra.mxu0 0
    %718 = vmatpush.bf16.msra.mxu0 0
    %719 = vmatpush.bf16.msra.mxu0 0
    %720 = vmatpush.bf16.msra.mxu0 0
    %721 = vmatpush.bf16.msra.mxu0 0
    %722 = vmatpush.bf16.msra.mxu0 %v643
    %723 = vmatmul.bf16.gmra.mxu0 %v657
    %v724 = vpop.f32.mrf.mxu0
    %v725 = vadd.f32 0.0, %v724
    %v726 = vpop.f32.mrf.mxu0
    %v727 = vadd.f32 0.0, %v726
    %728 = vdwg.mxu0
    %729 = vmatpush.bf16.msra.mxu0 0
    %730 = vmatpush.bf16.msra.mxu0 0
    %731 = vmatpush.bf16.msra.mxu0 0
    %732 = vmatpush.bf16.msra.mxu0 0
    %733 = vmatpush.bf16.msra.mxu0 0
    %734 = vmatpush.bf16.msra.mxu0 0
    %735 = vmatpush.bf16.msra.mxu0 0
    %736 = vmatpush.bf16.msra.mxu0 %v644
    %737 = vmatmul.bf16.gmra.mxu0 %v657
    %v738 = vpop.f32.mrf.mxu0
    %v739 = vadd.f32 0.0, %v738
    %v740 = vpop.f32.mrf.mxu0
    %v741 = vadd.f32 0.0, %v740
    %742 = vdwg.mxu0
    %743 = vmatpush.bf16.msra.mxu0 0
    %744 = vmatpush.bf16.msra.mxu0 0
    %745 = vmatpush.bf16.msra.mxu0 0
    %746 = vmatpush.bf16.msra.mxu0 0
    %747 = vmatpush.bf16.msra.mxu0 0
    %748 = vmatpush.bf16.msra.mxu0 0
    %749 = vmatpush.bf16.msra.mxu0 0
    %750 = vmatpush.bf16.msra.mxu0 %v645
    %751 = vmatmul.bf16.gmra.mxu0 %v657
    %v752 = vpop.f32.mrf.mxu0
    %v753 = vadd.f32 0.0, %v752
    %v754 = vpop.f32.mrf.mxu0
    %v755 = vadd.f32 0.0, %v754
    %756 = vdwg.mxu0
    %757 = vmatpush.bf16.msra.mxu0 0
    %758 = vmatpush.bf16.msra.mxu0 0
    %759 = vmatpush.bf16.msra.mxu0 0
    %760 = vmatpush.bf16.msra.mxu0 0
    %761 = vmatpush.bf16.msra.mxu0 0
    %762 = vmatpush.bf16.msra.mxu0 0
    %763 = vmatpush.bf16.msra.mxu0 0
    %764 = vmatpush.bf16.msra.mxu0 %v646
    %765 = vmatmul.bf16.gmra.mxu0 %v657
    %v766 = vpop.f32.mrf.mxu0
    %v767 = vadd.f32 0.0, %v766
    %v768 = vpop.f32.mrf.mxu0
    %v769 = vadd.f32 0.0, %v768
    %770 = vdwg.mxu0
    %v1163 = vunpack.c.l.b16 %v215
    %v1164 = vunpack.c.h.b16 %v215
    %v1165 = vunpack.c.l.b16 %v216
    %v1166 = vunpack.c.h.b16 %v216
    %v1167 = vunpack.c.l.b16 %v217
    %v1168 = vunpack.c.h.b16 %v217
    %v1169 = vunpack.c.l.b16 %v218
    %v1170 = vunpack.c.h.b16 %v218
    %v1171 = vunpack.c.l.b16 %v219
    %v1172 = vunpack.c.h.b16 %v219
    %v1173 = vunpack.c.l.b16 %v220
    %v1174 = vunpack.c.h.b16 %v220
    %v1175 = vunpack.c.l.b16 %v221
    %v1176 = vunpack.c.h.b16 %v221
    %v1177 = vunpack.c.l.b16 %v222
    %v1178 = vunpack.c.h.b16 %v222
    %v1179 = vunpack.c.l.b16 %v223
    %v1180 = vunpack.c.h.b16 %v223
    %v1181 = vunpack.c.l.b16 %v224
    %v1182 = vunpack.c.h.b16 %v224
    %v1183 = vunpack.c.l.b16 %v225
    %v1184 = vunpack.c.h.b16 %v225
    %v1185 = vunpack.c.l.b16 %v226
    %v1186 = vunpack.c.h.b16 %v226
    %v1187 = vunpack.c.l.b16 %v227
    %v1188 = vunpack.c.h.b16 %v227
    %v1189 = vunpack.c.l.b16 %v228
    %v1190 = vunpack.c.h.b16 %v228
    %v1191 = vunpack.c.l.b16 %v229
    %v1192 = vunpack.c.h.b16 %v229
    %v1193 = vunpack.c.l.b16 %v230
    %v1194 = vunpack.c.h.b16 %v230
    %v1195 = vunpack.c.l.b16 %v231
    %v1196 = vunpack.c.h.b16 %v231
    %v1197 = vunpack.c.l.b16 %v232
    %v1198 = vunpack.c.h.b16 %v232
    %v1199 = vunpack.c.l.b16 %v233
    %v1200 = vunpack.c.h.b16 %v233
    %v1201 = vunpack.c.l.b16 %v234
    %v1202 = vunpack.c.h.b16 %v234
    %v1203 = vunpack.c.l.b16 %v235
    %v1204 = vunpack.c.h.b16 %v235
    %v1205 = vunpack.c.l.b16 %v236
    %v1206 = vunpack.c.h.b16 %v236
    %v1207 = vunpack.c.l.b16 %v237
    %v1208 = vunpack.c.h.b16 %v237
    %v1209 = vunpack.c.l.b16 %v238
    %v1210 = vunpack.c.h.b16 %v238
    %v1211 = vunpack.c.l.b16 %v239
    %v1212 = vunpack.c.h.b16 %v239
    %v1213 = vunpack.c.l.b16 %v240
    %v1214 = vunpack.c.h.b16 %v240
    %v1215 = vunpack.c.l.b16 %v241
    %v1216 = vunpack.c.h.b16 %v241
    %v1217 = vunpack.c.l.b16 %v242
    %v1218 = vunpack.c.h.b16 %v242
    %v1219 = vunpack.c.l.b16 %v243
    %v1220 = vunpack.c.h.b16 %v243
    %v1221 = vunpack.c.l.b16 %v244
    %v1222 = vunpack.c.h.b16 %v244
    %v1223 = vunpack.c.l.b16 %v245
    %v1224 = vunpack.c.h.b16 %v245
    %v1225 = vunpack.c.l.b16 %v246
    %v1226 = vunpack.c.h.b16 %v246
    %v1227 = vunpack.c.l.b16 %v247
    %v1228 = vunpack.c.h.b16 %v247
    %v1229 = vunpack.c.l.b16 %v248
    %v1230 = vunpack.c.h.b16 %v248
    %v1231 = vunpack.c.l.b16 %v249
    %v1232 = vunpack.c.h.b16 %v249
    %v1233 = vunpack.c.l.b16 %v250
    %v1234 = vunpack.c.h.b16 %v250
    %v1235 = vunpack.c.l.b16 %v251
    %v1236 = vunpack.c.h.b16 %v251
    %v1237 = vunpack.c.l.b16 %v252
    %v1238 = vunpack.c.h.b16 %v252
    %v1239 = vunpack.c.l.b16 %v253
    %v1240 = vunpack.c.h.b16 %v253
    %v1241 = vunpack.c.l.b16 %v254
    %v1242 = vunpack.c.h.b16 %v254
    %v1243 = vunpack.c.l.b16 %v255
    %v1244 = vunpack.c.h.b16 %v255
    %v1245 = vunpack.c.l.b16 %v256
    %v1246 = vunpack.c.h.b16 %v256
    %v1247 = vunpack.c.l.b16 %v257
    %v1248 = vunpack.c.h.b16 %v257
    %v1249 = vunpack.c.l.b16 %v258
    %v1250 = vunpack.c.h.b16 %v258
    %v1251 = vunpack.c.l.b16 %v259
    %v1252 = vunpack.c.h.b16 %v259
    %v1253 = vunpack.c.l.b16 %v260
    %v1254 = vunpack.c.h.b16 %v260
    %v1255 = vunpack.c.l.b16 %v261
    %v1256 = vunpack.c.h.b16 %v261
    %v1257 = vunpack.c.l.b16 %v262
    %v1258 = vunpack.c.h.b16 %v262
    %v1259 = vunpack.c.l.b16 %v263
    %v1260 = vunpack.c.h.b16 %v263
    %v1261 = vunpack.c.l.b16 %v264
    %v1262 = vunpack.c.h.b16 %v264
    %v1263 = vunpack.c.l.b16 %v265
    %v1264 = vunpack.c.h.b16 %v265
    %v1265 = vunpack.c.l.b16 %v266
    %v1266 = vunpack.c.h.b16 %v266
    %v1267 = vunpack.c.l.b16 %v267
    %v1268 = vunpack.c.h.b16 %v267
    %v1269 = vunpack.c.l.b16 %v268
    %v1270 = vunpack.c.h.b16 %v268
    %v1271 = vunpack.c.l.b16 %v269
    %v1272 = vunpack.c.h.b16 %v269
    %v1273 = vunpack.c.l.b16 %v270
    %v1274 = vunpack.c.h.b16 %v270
    %v1275 = vunpack.c.l.b16 %v271
    %v1276 = vunpack.c.h.b16 %v271
    %v1277 = vunpack.c.l.b16 %v272
    %v1278 = vunpack.c.h.b16 %v272
    %v1279 = vunpack.c.l.b16 %v273
    %v1280 = vunpack.c.h.b16 %v273
    %v1281 = vunpack.c.l.b16 %v274
    %v1282 = vunpack.c.h.b16 %v274
    %v1283 = vunpack.c.l.b16 %v275
    %v1284 = vunpack.c.h.b16 %v275
    %v1285 = vunpack.c.l.b16 %v276
    %v1286 = vunpack.c.h.b16 %v276
    %v1287 = vunpack.c.l.b16 %v277
    %v1288 = vunpack.c.h.b16 %v277
    %v1289 = vunpack.c.l.b16 %v278
    %v1290 = vunpack.c.h.b16 %v278
    %v1291 = vunpack.c.l.b16 %v279
    %v1292 = vunpack.c.h.b16 %v279
    %v1293 = vunpack.c.l.b16 %v280
    %v1294 = vunpack.c.h.b16 %v280
    %v1295 = vunpack.c.l.b16 %v281
    %v1296 = vunpack.c.h.b16 %v281
    %v1297 = vunpack.c.l.b16 %v282
    %v1298 = vunpack.c.h.b16 %v282
    %v1299 = vunpack.c.l.b16 %v283
    %v1300 = vunpack.c.h.b16 %v283
    %v1301 = vunpack.c.l.b16 %v284
    %v1302 = vunpack.c.h.b16 %v284
    %v1303 = vunpack.c.l.b16 %v285
    %v1304 = vunpack.c.h.b16 %v285
    %v1305 = vunpack.c.l.b16 %v286
    %v1306 = vunpack.c.h.b16 %v286
    %v1307 = vunpack.c.l.b16 %v287
    %v1308 = vunpack.c.h.b16 %v287
    %v1309 = vunpack.c.l.b16 %v288
    %v1310 = vunpack.c.h.b16 %v288
    %v1311 = vunpack.c.l.b16 %v289
    %v1312 = vunpack.c.h.b16 %v289
    %v1313 = vunpack.c.l.b16 %v290
    %v1314 = vunpack.c.h.b16 %v290
    %v1315 = vunpack.c.l.b16 %v291
    %v1316 = vunpack.c.h.b16 %v291
    %v1317 = vunpack.c.l.b16 %v292
    %v1318 = vunpack.c.h.b16 %v292
    %v1319 = vunpack.c.l.b16 %v293
    %v1320 = vunpack.c.h.b16 %v293
    %v1321 = vunpack.c.l.b16 %v294
    %v1322 = vunpack.c.h.b16 %v294
    %v1323 = vunpack.c.l.b16 %v295
    %v1324 = vunpack.c.h.b16 %v295
    %v1325 = vunpack.c.l.b16 %v296
    %v1326 = vunpack.c.h.b16 %v296
    %v1327 = vunpack.c.l.b16 %v297
    %v1328 = vunpack.c.h.b16 %v297
    %v1329 = vunpack.c.l.b16 %v298
    %v1330 = vunpack.c.h.b16 %v298
    %v1331 = vunpack.c.l.b16 %v299
    %v1332 = vunpack.c.h.b16 %v299
    %v1333 = vunpack.c.l.b16 %v300
    %v1334 = vunpack.c.h.b16 %v300
    %v1335 = vunpack.c.l.b16 %v301
    %v1336 = vunpack.c.h.b16 %v301
    %v1337 = vunpack.c.l.b16 %v302
    %v1338 = vunpack.c.h.b16 %v302
    %v1339 = vunpack.c.l.b16 %v303
    %v1340 = vunpack.c.h.b16 %v303
    %v1341 = vunpack.c.l.b16 %v304
    %v1342 = vunpack.c.h.b16 %v304
    %v1343 = vunpack.c.l.b16 %v305
    %v1344 = vunpack.c.h.b16 %v305
    %v1345 = vunpack.c.l.b16 %v306
    %v1346 = vunpack.c.h.b16 %v306
    %v1347 = vunpack.c.l.b16 %v307
    %v1348 = vunpack.c.h.b16 %v307
    %v1349 = vunpack.c.l.b16 %v308
    %v1350 = vunpack.c.h.b16 %v308
    %v1351 = vunpack.c.l.b16 %v309
    %v1352 = vunpack.c.h.b16 %v309
    %v1353 = vunpack.c.l.b16 %v310
    %v1354 = vunpack.c.h.b16 %v310
    %v1355 = vunpack.c.l.b16 %v311
    %v1356 = vunpack.c.h.b16 %v311
    %v1357 = vunpack.c.l.b16 %v312
    %v1358 = vunpack.c.h.b16 %v312
    %v1359 = vunpack.c.l.b16 %v313
    %v1360 = vunpack.c.h.b16 %v313
    %v1361 = vunpack.c.l.b16 %v314
    %v1362 = vunpack.c.h.b16 %v314
    %v1363 = vunpack.c.l.b16 %v315
    %v1364 = vunpack.c.h.b16 %v315
    %v1365 = vunpack.c.l.b16 %v316
    %v1366 = vunpack.c.h.b16 %v316
    %v1367 = vunpack.c.l.b16 %v317
    %v1368 = vunpack.c.h.b16 %v317
    %v1369 = vunpack.c.l.b16 %v318
    %v1370 = vunpack.c.h.b16 %v318
    %v1371 = vunpack.c.l.b16 %v319
    %v1372 = vunpack.c.h.b16 %v319
    %v1373 = vunpack.c.l.b16 %v320
    %v1374 = vunpack.c.h.b16 %v320
    %v1375 = vunpack.c.l.b16 %v321
    %v1376 = vunpack.c.h.b16 %v321
    %v1377 = vunpack.c.l.b16 %v322
    %v1378 = vunpack.c.h.b16 %v322
    %v1379 = vunpack.c.l.b16 %v323
    %v1380 = vunpack.c.h.b16 %v323
    %v1381 = vunpack.c.l.b16 %v324
    %v1382 = vunpack.c.h.b16 %v324
    %v1383 = vunpack.c.l.b16 %v325
    %v1384 = vunpack.c.h.b16 %v325
    %v1385 = vunpack.c.l.b16 %v326
    %v1386 = vunpack.c.h.b16 %v326
    %v1387 = vunpack.c.l.b16 %v327
    %v1388 = vunpack.c.h.b16 %v327
    %v1389 = vunpack.c.l.b16 %v328
    %v1390 = vunpack.c.h.b16 %v328
    %v1391 = vunpack.c.l.b16 %v329
    %v1392 = vunpack.c.h.b16 %v329
    %v1393 = vunpack.c.l.b16 %v330
    %v1394 = vunpack.c.h.b16 %v330
    %v1395 = vunpack.c.l.b16 %v331
    %v1396 = vunpack.c.h.b16 %v331
    %v1397 = vunpack.c.l.b16 %v332
    %v1398 = vunpack.c.h.b16 %v332
    %v1399 = vunpack.c.l.b16 %v333
    %v1400 = vunpack.c.h.b16 %v333
    %v1401 = vunpack.c.l.b16 %v334
    %v1402 = vunpack.c.h.b16 %v334
    %v1403 = vunpack.c.l.b16 %v335
    %v1404 = vunpack.c.h.b16 %v335
    %v1405 = vunpack.c.l.b16 %v336
    %v1406 = vunpack.c.h.b16 %v336
    %v1407 = vunpack.c.l.b16 %v337
    %v1408 = vunpack.c.h.b16 %v337
    %v1409 = vunpack.c.l.b16 %v338
    %v1410 = vunpack.c.h.b16 %v338
    %v1411 = vunpack.c.l.b16 %v339
    %v1412 = vunpack.c.h.b16 %v339
    %v1413 = vunpack.c.l.b16 %v340
    %v1414 = vunpack.c.h.b16 %v340
    %v1415 = vunpack.c.l.b16 %v341
    %v1416 = vunpack.c.h.b16 %v341
    %v1417 = vunpack.c.l.b16 %v342
    %v1418 = vunpack.c.h.b16 %v342
    %v1419 = vunpack.c.l.b16 %v343
    %v1420 = vunpack.c.h.b16 %v343
    %v1421 = vunpack.c.l.b16 %v344
    %v1422 = vunpack.c.h.b16 %v344
    %v1423 = vunpack.c.l.b16 %v345
    %v1424 = vunpack.c.h.b16 %v345
    %v1425 = vunpack.c.l.b16 %v346
    %v1426 = vunpack.c.h.b16 %v346
    %v1427 = vunpack.c.l.b16 %v347
    %v1428 = vunpack.c.h.b16 %v347
    %v1429 = vunpack.c.l.b16 %v348
    %v1430 = vunpack.c.h.b16 %v348
    %v1431 = vunpack.c.l.b16 %v349
    %v1432 = vunpack.c.h.b16 %v349
    %v1433 = vunpack.c.l.b16 %v350
    %v1434 = vunpack.c.h.b16 %v350
    %v1435 = vunpack.c.l.b16 %v351
    %v1436 = vunpack.c.h.b16 %v351
    %v1437 = vunpack.c.l.b16 %v352
    %v1438 = vunpack.c.h.b16 %v352
    %v1439 = vunpack.c.l.b16 %v353
    %v1440 = vunpack.c.h.b16 %v353
    %v1441 = vunpack.c.l.b16 %v354
    %v1442 = vunpack.c.h.b16 %v354
    %v1443 = vunpack.c.l.b16 %v355
    %v1444 = vunpack.c.h.b16 %v355
    %v1445 = vunpack.c.l.b16 %v356
    %v1446 = vunpack.c.h.b16 %v356
    %v1447 = vunpack.c.l.b16 %v357
    %v1448 = vunpack.c.h.b16 %v357
    %v1449 = vunpack.c.l.b16 %v358
    %v1450 = vunpack.c.h.b16 %v358
    %v1451 = vunpack.c.l.b16 %v359
    %v1452 = vunpack.c.h.b16 %v359
    %v1453 = vunpack.c.l.b16 %v360
    %v1454 = vunpack.c.h.b16 %v360
    %v1455 = vunpack.c.l.b16 %v361
    %v1456 = vunpack.c.h.b16 %v361
    %v1457 = vunpack.c.l.b16 %v362
    %v1458 = vunpack.c.h.b16 %v362
    %v1459 = vunpack.c.l.b16 %v363
    %v1460 = vunpack.c.h.b16 %v363
    %v1461 = vunpack.c.l.b16 %v364
    %v1462 = vunpack.c.h.b16 %v364
    %v1463 = vunpack.c.l.b16 %v365
    %v1464 = vunpack.c.h.b16 %v365
    %v1465 = vunpack.c.l.b16 %v366
    %v1466 = vunpack.c.h.b16 %v366
    %v1467 = vunpack.c.l.b16 %v367
    %v1468 = vunpack.c.h.b16 %v367
    %v1469 = vunpack.c.l.b16 %v368
    %v1470 = vunpack.c.h.b16 %v368
    %v1471 = vunpack.c.l.b16 %v369
    %v1472 = vunpack.c.h.b16 %v369
    %v1473 = vunpack.c.l.b16 %v370
    %v1474 = vunpack.c.h.b16 %v370
    %v1475 = vunpack.c.l.b16 %v371
    %v1476 = vunpack.c.h.b16 %v371
    %v1477 = vunpack.c.l.b16 %v372
    %v1478 = vunpack.c.h.b16 %v372
    %v1479 = vunpack.c.l.b16 %v373
    %v1480 = vunpack.c.h.b16 %v373
    %v1481 = vunpack.c.l.b16 %v374
    %v1482 = vunpack.c.h.b16 %v374
    %v1483 = vunpack.c.l.b16 %v375
    %v1484 = vunpack.c.h.b16 %v375
    %v1485 = vunpack.c.l.b16 %v376
    %v1486 = vunpack.c.h.b16 %v376
    %v1487 = vunpack.c.l.b16 %v377
    %v1488 = vunpack.c.h.b16 %v377
    %v1489 = vunpack.c.l.b16 %v378
    %v1490 = vunpack.c.h.b16 %v378
    %v1491 = vunpack.c.l.b16 %v379
    %v1492 = vunpack.c.h.b16 %v379
    %v1493 = vunpack.c.l.b16 %v380
    %v1494 = vunpack.c.h.b16 %v380
    %v1495 = vunpack.c.l.b16 %v381
    %v1496 = vunpack.c.h.b16 %v381
    %v1497 = vunpack.c.l.b16 %v382
    %v1498 = vunpack.c.h.b16 %v382
    %v1499 = vunpack.c.l.b16 %v383
    %v1500 = vunpack.c.h.b16 %v383
    %v1501 = vunpack.c.l.b16 %v384
    %v1502 = vunpack.c.h.b16 %v384
    %v1503 = vunpack.c.l.b16 %v385
    %v1504 = vunpack.c.h.b16 %v385
    %v1505 = vunpack.c.l.b16 %v386
    %v1506 = vunpack.c.h.b16 %v386
    %v1507 = vunpack.c.l.b16 %v387
    %v1508 = vunpack.c.h.b16 %v387
    %v1509 = vunpack.c.l.b16 %v388
    %v1510 = vunpack.c.h.b16 %v388
    %v1511 = vunpack.c.l.b16 %v389
    %v1512 = vunpack.c.h.b16 %v389
    %v1513 = vunpack.c.l.b16 %v390
    %v1514 = vunpack.c.h.b16 %v390
    %v1515 = vunpack.c.l.b16 %v391
    %v1516 = vunpack.c.h.b16 %v391
    %v1517 = vunpack.c.l.b16 %v392
    %v1518 = vunpack.c.h.b16 %v392
    %v1519 = vunpack.c.l.b16 %v393
    %v1520 = vunpack.c.h.b16 %v393
    %v1521 = vunpack.c.l.b16 %v394
    %v1522 = vunpack.c.h.b16 %v394
    %v1523 = vunpack.c.l.b16 %v395
    %v1524 = vunpack.c.h.b16 %v395
    %v1525 = vunpack.c.l.b16 %v396
    %v1526 = vunpack.c.h.b16 %v396
    %v1527 = vunpack.c.l.b16 %v397
    %v1528 = vunpack.c.h.b16 %v397
    %v1529 = vunpack.c.l.b16 %v398
    %v1530 = vunpack.c.h.b16 %v398
    %v1531 = vunpack.c.l.b16 %v399
    %v1532 = vunpack.c.h.b16 %v399
    %v1533 = vunpack.c.l.b16 %v400
    %v1534 = vunpack.c.h.b16 %v400
    %v1535 = vunpack.c.l.b16 %v401
    %v1536 = vunpack.c.h.b16 %v401
    %v1537 = vunpack.c.l.b16 %v402
    %v1538 = vunpack.c.h.b16 %v402
    %v1539 = vunpack.c.l.b16 %v403
    %v1540 = vunpack.c.h.b16 %v403
    %v1541 = vunpack.c.l.b16 %v404
    %v1542 = vunpack.c.h.b16 %v404
    %v1543 = vunpack.c.l.b16 %v405
    %v1544 = vunpack.c.h.b16 %v405
    %v1545 = vunpack.c.l.b16 %v406
    %v1546 = vunpack.c.h.b16 %v406
    %v1547 = vunpack.c.l.b16 %v407
    %v1548 = vunpack.c.h.b16 %v407
    %v1549 = vunpack.c.l.b16 %v408
    %v1550 = vunpack.c.h.b16 %v408
    %v1551 = vunpack.c.l.b16 %v409
    %v1552 = vunpack.c.h.b16 %v409
    %v1553 = vunpack.c.l.b16 %v410
    %v1554 = vunpack.c.h.b16 %v410
    %v1555 = vunpack.c.l.b16 %v411
    %v1556 = vunpack.c.h.b16 %v411
    %v1557 = vunpack.c.l.b16 %v412
    %v1558 = vunpack.c.h.b16 %v412
    %v1559 = vunpack.c.l.b16 %v413
    %v1560 = vunpack.c.h.b16 %v413
    %v1561 = vunpack.c.l.b16 %v414
    %v1562 = vunpack.c.h.b16 %v414
    %v1563 = vunpack.c.l.b16 %v415
    %v1564 = vunpack.c.h.b16 %v415
    %v1565 = vunpack.c.l.b16 %v416
    %v1566 = vunpack.c.h.b16 %v416
    %v1567 = vunpack.c.l.b16 %v417
    %v1568 = vunpack.c.h.b16 %v417
    %v1569 = vunpack.c.l.b16 %v418
    %v1570 = vunpack.c.h.b16 %v418
    %v1571 = vunpack.c.l.b16 %v419
    %v1572 = vunpack.c.h.b16 %v419
    %v1573 = vunpack.c.l.b16 %v420
    %v1574 = vunpack.c.h.b16 %v420
    %v1575 = vunpack.c.l.b16 %v421
    %v1576 = vunpack.c.h.b16 %v421
    %v1577 = vunpack.c.l.b16 %v422
    %v1578 = vunpack.c.h.b16 %v422
    %v1579 = vunpack.c.l.b16 %v423
    %v1580 = vunpack.c.h.b16 %v423
    %v1581 = vunpack.c.l.b16 %v424
    %v1582 = vunpack.c.h.b16 %v424
    %v1583 = vunpack.c.l.b16 %v425
    %v1584 = vunpack.c.h.b16 %v425
    %v1585 = vunpack.c.l.b16 %v426
    %v1586 = vunpack.c.h.b16 %v426
    %v1587 = vunpack.c.l.b16 %v427
    %v1588 = vunpack.c.h.b16 %v427
    %v1589 = vunpack.c.l.b16 %v428
    %v1590 = vunpack.c.h.b16 %v428
    %v1591 = vunpack.c.l.b16 %v429
    %v1592 = vunpack.c.h.b16 %v429
    %v1593 = vunpack.c.l.b16 %v430
    %v1594 = vunpack.c.h.b16 %v430
    %v1595 = vunpack.c.l.b16 %v431
    %v1596 = vunpack.c.h.b16 %v431
    %v1597 = vunpack.c.l.b16 %v432
    %v1598 = vunpack.c.h.b16 %v432
    %v1599 = vunpack.c.l.b16 %v433
    %v1600 = vunpack.c.h.b16 %v433
    %v1601 = vunpack.c.l.b16 %v434
    %v1602 = vunpack.c.h.b16 %v434
    %v1603 = vunpack.c.l.b16 %v435
    %v1604 = vunpack.c.h.b16 %v435
    %v1605 = vunpack.c.l.b16 %v436
    %v1606 = vunpack.c.h.b16 %v436
    %v1607 = vunpack.c.l.b16 %v437
    %v1608 = vunpack.c.h.b16 %v437
    %v1609 = vunpack.c.l.b16 %v438
    %v1610 = vunpack.c.h.b16 %v438
    %v1611 = vunpack.c.l.b16 %v439
    %v1612 = vunpack.c.h.b16 %v439
    %v1613 = vunpack.c.l.b16 %v440
    %v1614 = vunpack.c.h.b16 %v440
    %v1615 = vunpack.c.l.b16 %v441
    %v1616 = vunpack.c.h.b16 %v441
    %v1617 = vunpack.c.l.b16 %v442
    %v1618 = vunpack.c.h.b16 %v442
    %v1619 = vunpack.c.l.b16 %v443
    %v1620 = vunpack.c.h.b16 %v443
    %v1621 = vunpack.c.l.b16 %v444
    %v1622 = vunpack.c.h.b16 %v444
    %v1623 = vunpack.c.l.b16 %v445
    %v1624 = vunpack.c.h.b16 %v445
    %v1625 = vunpack.c.l.b16 %v446
    %v1626 = vunpack.c.h.b16 %v446
    %v1627 = vunpack.c.l.b16 %v447
    %v1628 = vunpack.c.h.b16 %v447
    %v1629 = vunpack.c.l.b16 %v448
    %v1630 = vunpack.c.h.b16 %v448
    %v1631 = vunpack.c.l.b16 %v449
    %v1632 = vunpack.c.h.b16 %v449
    %v1633 = vunpack.c.l.b16 %v450
    %v1634 = vunpack.c.h.b16 %v450
    %v1635 = vunpack.c.l.b16 %v451
    %v1636 = vunpack.c.h.b16 %v451
    %v1637 = vunpack.c.l.b16 %v452
    %v1638 = vunpack.c.h.b16 %v452
    %v1639 = vunpack.c.l.b16 %v453
    %v1640 = vunpack.c.h.b16 %v453
    %v1641 = vunpack.c.l.b16 %v454
    %v1642 = vunpack.c.h.b16 %v454
    %v1643 = vunpack.c.l.b16 %v455
    %v1644 = vunpack.c.h.b16 %v455
    %v1645 = vunpack.c.l.b16 %v456
    %v1646 = vunpack.c.h.b16 %v456
    %v1647 = vunpack.c.l.b16 %v457
    %v1648 = vunpack.c.h.b16 %v457
    %v1649 = vunpack.c.l.b16 %v458
    %v1650 = vunpack.c.h.b16 %v458
    %v1651 = vunpack.c.l.b16 %v459
    %v1652 = vunpack.c.h.b16 %v459
    %v1653 = vunpack.c.l.b16 %v460
    %v1654 = vunpack.c.h.b16 %v460
    %v1655 = vunpack.c.l.b16 %v461
    %v1656 = vunpack.c.h.b16 %v461
    %v1657 = vunpack.c.l.b16 %v462
    %v1658 = vunpack.c.h.b16 %v462
    %v1659 = vunpack.c.l.b16 %v463
    %v1660 = vunpack.c.h.b16 %v463
    %v1661 = vunpack.c.l.b16 %v464
    %v1662 = vunpack.c.h.b16 %v464
    %v1663 = vunpack.c.l.b16 %v465
    %v1664 = vunpack.c.h.b16 %v465
    %v1665 = vunpack.c.l.b16 %v466
    %v1666 = vunpack.c.h.b16 %v466
    %v1667 = vunpack.c.l.b16 %v467
    %v1668 = vunpack.c.h.b16 %v467
    %v1669 = vunpack.c.l.b16 %v468
    %v1670 = vunpack.c.h.b16 %v468
    %v1671 = vunpack.c.l.b16 %v469
    %v1672 = vunpack.c.h.b16 %v469
    %v1673 = vunpack.c.l.b16 %v470
    %v1674 = vunpack.c.h.b16 %v470
    %v1675 = vunpack.c.l.b16 %v471
    %v1676 = vunpack.c.h.b16 %v471
    %v1677 = vunpack.c.l.b16 %v472
    %v1678 = vunpack.c.h.b16 %v472
    %v1679 = vunpack.c.l.b16 %v473
    %v1680 = vunpack.c.h.b16 %v473
    %v1681 = vunpack.c.l.b16 %v474
    %v1682 = vunpack.c.h.b16 %v474
    %v1683 = vunpack.c.l.b16 %v475
    %v1684 = vunpack.c.h.b16 %v475
    %v1685 = vunpack.c.l.b16 %v476
    %v1686 = vunpack.c.h.b16 %v476
    %v1687 = vunpack.c.l.b16 %v477
    %v1688 = vunpack.c.h.b16 %v477
    %v1689 = vunpack.c.l.b16 %v478
    %v1690 = vunpack.c.h.b16 %v478
    %v1691 = vunpack.c.l.b16 %v479
    %v1692 = vunpack.c.h.b16 %v479
    %v1693 = vunpack.c.l.b16 %v480
    %v1694 = vunpack.c.h.b16 %v480
    %v1695 = vunpack.c.l.b16 %v481
    %v1696 = vunpack.c.h.b16 %v481
    %v1697 = vunpack.c.l.b16 %v482
    %v1698 = vunpack.c.h.b16 %v482
    %v1699 = vunpack.c.l.b16 %v483
    %v1700 = vunpack.c.h.b16 %v483
    %v1701 = vunpack.c.l.b16 %v484
    %v1702 = vunpack.c.h.b16 %v484
    %v1703 = vunpack.c.l.b16 %v485
    %v1704 = vunpack.c.h.b16 %v485
    %v1705 = vunpack.c.l.b16 %v486
    %v1706 = vunpack.c.h.b16 %v486
    %v1707 = vunpack.c.l.b16 %v487
    %v1708 = vunpack.c.h.b16 %v487
    %v1709 = vunpack.c.l.b16 %v488
    %v1710 = vunpack.c.h.b16 %v488
    %v1711 = vunpack.c.l.b16 %v489
    %v1712 = vunpack.c.h.b16 %v489
    %v1713 = vunpack.c.l.b16 %v490
    %v1714 = vunpack.c.h.b16 %v490
    %v1715 = vunpack.c.l.b16 %v491
    %v1716 = vunpack.c.h.b16 %v491
    %v1717 = vunpack.c.l.b16 %v492
    %v1718 = vunpack.c.h.b16 %v492
    %v1719 = vunpack.c.l.b16 %v493
    %v1720 = vunpack.c.h.b16 %v493
    %v1721 = vunpack.c.l.b16 %v494
    %v1722 = vunpack.c.h.b16 %v494
    %v1723 = vunpack.c.l.b16 %v495
    %v1724 = vunpack.c.h.b16 %v495
    %v1725 = vunpack.c.l.b16 %v496
    %v1726 = vunpack.c.h.b16 %v496
    %v1727 = vunpack.c.l.b16 %v497
    %v1728 = vunpack.c.h.b16 %v497
    %v1729 = vunpack.c.l.b16 %v498
    %v1730 = vunpack.c.h.b16 %v498
    %v1731 = vunpack.c.l.b16 %v499
    %v1732 = vunpack.c.h.b16 %v499
    %v1733 = vunpack.c.l.b16 %v500
    %v1734 = vunpack.c.h.b16 %v500
    %v1735 = vunpack.c.l.b16 %v501
    %v1736 = vunpack.c.h.b16 %v501
    %v1737 = vunpack.c.l.b16 %v502
    %v1738 = vunpack.c.h.b16 %v502
    %v1739 = vunpack.c.l.b16 %v503
    %v1740 = vunpack.c.h.b16 %v503
    %v1741 = vunpack.c.l.b16 %v504
    %v1742 = vunpack.c.h.b16 %v504
    %v1743 = vunpack.c.l.b16 %v505
    %v1744 = vunpack.c.h.b16 %v505
    %v1745 = vunpack.c.l.b16 %v506
    %v1746 = vunpack.c.h.b16 %v506
    %v1747 = vunpack.c.l.b16 %v507
    %v1748 = vunpack.c.h.b16 %v507
    %v1749 = vunpack.c.l.b16 %v508
    %v1750 = vunpack.c.h.b16 %v508
    %v1751 = vunpack.c.l.b16 %v509
    %v1752 = vunpack.c.h.b16 %v509
    %v1753 = vunpack.c.l.b16 %v510
    %v1754 = vunpack.c.h.b16 %v510
    %v1755 = vunpack.c.l.b16 %v511
    %v1756 = vunpack.c.h.b16 %v511
    %v1757 = vunpack.c.l.b16 %v512
    %v1758 = vunpack.c.h.b16 %v512
    %v1759 = vunpack.c.l.b16 %v513
    %v1760 = vunpack.c.h.b16 %v513
    %v1761 = vunpack.c.l.b16 %v514
    %v1762 = vunpack.c.h.b16 %v514
    %v1763 = vunpack.c.l.b16 %v515
    %v1764 = vunpack.c.h.b16 %v515
    %v1765 = vunpack.c.l.b16 %v516
    %v1766 = vunpack.c.h.b16 %v516
    %v1767 = vunpack.c.l.b16 %v517
    %v1768 = vunpack.c.h.b16 %v517
    %v1769 = vunpack.c.l.b16 %v518
    %v1770 = vunpack.c.h.b16 %v518
    %v1771 = vunpack.c.l.b16 %v519
    %v1772 = vunpack.c.h.b16 %v519
    %v1773 = vunpack.c.l.b16 %v520
    %v1774 = vunpack.c.h.b16 %v520
    %v1775 = vunpack.c.l.b16 %v521
    %v1776 = vunpack.c.h.b16 %v521
    %v1777 = vunpack.c.l.b16 %v522
    %v1778 = vunpack.c.h.b16 %v522
    %v1779 = vunpack.c.l.b16 %v523
    %v1780 = vunpack.c.h.b16 %v523
    %v1781 = vunpack.c.l.b16 %v524
    %v1782 = vunpack.c.h.b16 %v524
    %v1783 = vunpack.c.l.b16 %v525
    %v1784 = vunpack.c.h.b16 %v525
    %v1785 = vunpack.c.l.b16 %v526
    %v1786 = vunpack.c.h.b16 %v526
    %v1787 = vunpack.c.l.b16 %v527
    %v1788 = vunpack.c.h.b16 %v527
    %v1789 = vunpack.c.l.b16 %v528
    %v1790 = vunpack.c.h.b16 %v528
    %v1791 = vunpack.c.l.b16 %v529
    %v1792 = vunpack.c.h.b16 %v529
    %v1793 = vunpack.c.l.b16 %v530
    %v1794 = vunpack.c.h.b16 %v530
    %v1795 = vunpack.c.l.b16 %v531
    %v1796 = vunpack.c.h.b16 %v531
    %v1797 = vunpack.c.l.b16 %v532
    %v1798 = vunpack.c.h.b16 %v532
    %v1799 = vunpack.c.l.b16 %v533
    %v1800 = vunpack.c.h.b16 %v533
    %v1801 = vunpack.c.l.b16 %v534
    %v1802 = vunpack.c.h.b16 %v534
    %v1803 = vunpack.c.l.b16 %v535
    %v1804 = vunpack.c.h.b16 %v535
    %v1805 = vunpack.c.l.b16 %v536
    %v1806 = vunpack.c.h.b16 %v536
    %v1807 = vunpack.c.l.b16 %v537
    %v1808 = vunpack.c.h.b16 %v537
    %v1809 = vunpack.c.l.b16 %v538
    %v1810 = vunpack.c.h.b16 %v538
    %v1811 = vunpack.c.l.b16 %v539
    %v1812 = vunpack.c.h.b16 %v539
    %v1813 = vunpack.c.l.b16 %v540
    %v1814 = vunpack.c.h.b16 %v540
    %v1815 = vunpack.c.l.b16 %v541
    %v1816 = vunpack.c.h.b16 %v541
    %v1817 = vunpack.c.l.b16 %v542
    %v1818 = vunpack.c.h.b16 %v542
    %v1819 = vunpack.c.l.b16 %v543
    %v1820 = vunpack.c.h.b16 %v543
    %v1821 = vunpack.c.l.b16 %v544
    %v1822 = vunpack.c.h.b16 %v544
    %v1823 = vunpack.c.l.b16 %v545
    %v1824 = vunpack.c.h.b16 %v545
    %v1825 = vunpack.c.l.b16 %v546
    %v1826 = vunpack.c.h.b16 %v546
    %v1827 = vunpack.c.l.b16 %v547
    %v1828 = vunpack.c.h.b16 %v547
    %v1829 = vunpack.c.l.b16 %v548
    %v1830 = vunpack.c.h.b16 %v548
    %v1831 = vunpack.c.l.b16 %v549
    %v1832 = vunpack.c.h.b16 %v549
    %v1833 = vunpack.c.l.b16 %v550
    %v1834 = vunpack.c.h.b16 %v550
    %v1835 = vunpack.c.l.b16 %v551
    %v1836 = vunpack.c.h.b16 %v551
    %v1837 = vunpack.c.l.b16 %v552
    %v1838 = vunpack.c.h.b16 %v552
    %v1839 = vunpack.c.l.b16 %v553
    %v1840 = vunpack.c.h.b16 %v553
    %v1841 = vunpack.c.l.b16 %v554
    %v1842 = vunpack.c.h.b16 %v554
    %v1843 = vunpack.c.l.b16 %v555
    %v1844 = vunpack.c.h.b16 %v555
    %v1845 = vunpack.c.l.b16 %v556
    %v1846 = vunpack.c.h.b16 %v556
    %v1847 = vunpack.c.l.b16 %v557
    %v1848 = vunpack.c.h.b16 %v557
    %v1849 = vunpack.c.l.b16 %v558
    %v1850 = vunpack.c.h.b16 %v558
    %v1851 = vunpack.c.l.b16 %v559
    %v1852 = vunpack.c.h.b16 %v559
    %v1853 = vunpack.c.l.b16 %v560
    %v1854 = vunpack.c.h.b16 %v560
    %v1855 = vunpack.c.l.b16 %v561
    %v1856 = vunpack.c.h.b16 %v561
    %v1857 = vunpack.c.l.b16 %v562
    %v1858 = vunpack.c.h.b16 %v562
    %v1859 = vunpack.c.l.b16 %v563
    %v1860 = vunpack.c.h.b16 %v563
    %v1861 = vunpack.c.l.b16 %v564
    %v1862 = vunpack.c.h.b16 %v564
    %v1863 = vunpack.c.l.b16 %v565
    %v1864 = vunpack.c.h.b16 %v565
    %v1865 = vunpack.c.l.b16 %v566
    %v1866 = vunpack.c.h.b16 %v566
    %v1867 = vunpack.c.l.b16 %v567
    %v1868 = vunpack.c.h.b16 %v567
    %v1869 = vunpack.c.l.b16 %v568
    %v1870 = vunpack.c.h.b16 %v568
    %v1871 = vunpack.c.l.b16 %v569
    %v1872 = vunpack.c.h.b16 %v569
    %v1873 = vunpack.c.l.b16 %v570
    %v1874 = vunpack.c.h.b16 %v570
    %v1875 = vunpack.c.l.b16 %v571
    %v1876 = vunpack.c.h.b16 %v571
    %v1877 = vunpack.c.l.b16 %v572
    %v1878 = vunpack.c.h.b16 %v572
    %v1879 = vunpack.c.l.b16 %v573
    %v1880 = vunpack.c.h.b16 %v573
    %v1881 = vunpack.c.l.b16 %v574
    %v1882 = vunpack.c.h.b16 %v574
    %v1883 = vunpack.c.l.b16 %v575
    %v1884 = vunpack.c.h.b16 %v575
    %v1885 = vunpack.c.l.b16 %v576
    %v1886 = vunpack.c.h.b16 %v576
    %v1887 = vunpack.c.l.b16 %v577
    %v1888 = vunpack.c.h.b16 %v577
    %v1889 = vunpack.c.l.b16 %v578
    %v1890 = vunpack.c.h.b16 %v578
    %v1891 = vunpack.c.l.b16 %v579
    %v1892 = vunpack.c.h.b16 %v579
    %v1893 = vunpack.c.l.b16 %v580
    %v1894 = vunpack.c.h.b16 %v580
    %v1895 = vunpack.c.l.b16 %v581
    %v1896 = vunpack.c.h.b16 %v581
    %v1897 = vunpack.c.l.b16 %v582
    %v1898 = vunpack.c.h.b16 %v582
    %v1899 = vunpack.c.l.b16 %v583
    %v1900 = vunpack.c.h.b16 %v583
    %v1901 = vunpack.c.l.b16 %v584
    %v1902 = vunpack.c.h.b16 %v584
    %v1903 = vunpack.c.l.b16 %v585
    %v1904 = vunpack.c.h.b16 %v585
    %v1905 = vunpack.c.l.b16 %v586
    %v1906 = vunpack.c.h.b16 %v586
    %v1907 = vunpack.c.l.b16 %v587
    %v1908 = vunpack.c.h.b16 %v587
    %v1909 = vunpack.c.l.b16 %v588
    %v1910 = vunpack.c.h.b16 %v588
    %v1911 = vunpack.c.l.b16 %v589
    %v1912 = vunpack.c.h.b16 %v589
    %v1913 = vunpack.c.l.b16 %v590
    %v1914 = vunpack.c.h.b16 %v590
    %v1915 = vunpack.c.l.b16 %v591
    %v1916 = vunpack.c.h.b16 %v591
    %v1917 = vunpack.c.l.b16 %v592
    %v1918 = vunpack.c.h.b16 %v592
    %v1919 = vunpack.c.l.b16 %v593
    %v1920 = vunpack.c.h.b16 %v593
    %v1921 = vunpack.c.l.b16 %v594
    %v1922 = vunpack.c.h.b16 %v594
    %v1923 = vunpack.c.l.b16 %v595
    %v1924 = vunpack.c.h.b16 %v595
    %v1925 = vunpack.c.l.b16 %v596
    %v1926 = vunpack.c.h.b16 %v596
    %v1927 = vunpack.c.l.b16 %v597
    %v1928 = vunpack.c.h.b16 %v597
    %v1929 = vunpack.c.l.b16 %v598
    %v1930 = vunpack.c.h.b16 %v598
    %v1931 = vunpack.c.l.b16 %v599
    %v1932 = vunpack.c.h.b16 %v599
    %v1933 = vunpack.c.l.b16 %v600
    %v1934 = vunpack.c.h.b16 %v600
    %v1935 = vunpack.c.l.b16 %v601
    %v1936 = vunpack.c.h.b16 %v601
    %v1937 = vunpack.c.l.b16 %v602
    %v1938 = vunpack.c.h.b16 %v602
    %v1939 = vunpack.c.l.b16 %v603
    %v1940 = vunpack.c.h.b16 %v603
    %v1941 = vunpack.c.l.b16 %v604
    %v1942 = vunpack.c.h.b16 %v604
    %v1943 = vunpack.c.l.b16 %v605
    %v1944 = vunpack.c.h.b16 %v605
    %v1945 = vunpack.c.l.b16 %v606
    %v1946 = vunpack.c.h.b16 %v606
    %v1947 = vpack.c.b16 %v1171, %v1163
    %v1948 = vpack.c.b16 %v1172, %v1164
    %v1949 = vpack.c.b16 %v1173, %v1165
    %v1950 = vpack.c.b16 %v1174, %v1166
    %v1951 = vpack.c.b16 %v1175, %v1167
    %v1952 = vpack.c.b16 %v1176, %v1168
    %v1953 = vpack.c.b16 %v1177, %v1169
    %v1954 = vpack.c.b16 %v1178, %v1170
    %v1955 = vpack.c.b16 %v1187, %v1179
    %v1956 = vpack.c.b16 %v1188, %v1180
    %v1957 = vpack.c.b16 %v1189, %v1181
    %v1958 = vpack.c.b16 %v1190, %v1182
    %v1959 = vpack.c.b16 %v1191, %v1183
    %v1960 = vpack.c.b16 %v1192, %v1184
    %v1961 = vpack.c.b16 %v1193, %v1185
    %v1962 = vpack.c.b16 %v1194, %v1186
    %v1963 = vpack.c.b16 %v1203, %v1195
    %v1964 = vpack.c.b16 %v1204, %v1196
    %v1965 = vpack.c.b16 %v1205, %v1197
    %v1966 = vpack.c.b16 %v1206, %v1198
    %v1967 = vpack.c.b16 %v1207, %v1199
    %v1968 = vpack.c.b16 %v1208, %v1200
    %v1969 = vpack.c.b16 %v1209, %v1201
    %v1970 = vpack.c.b16 %v1210, %v1202
    %v1971 = vpack.c.b16 %v1219, %v1211
    %v1972 = vpack.c.b16 %v1220, %v1212
    %v1973 = vpack.c.b16 %v1221, %v1213
    %v1974 = vpack.c.b16 %v1222, %v1214
    %v1975 = vpack.c.b16 %v1223, %v1215
    %v1976 = vpack.c.b16 %v1224, %v1216
    %v1977 = vpack.c.b16 %v1225, %v1217
    %v1978 = vpack.c.b16 %v1226, %v1218
    %v1979 = vpack.c.b16 %v1235, %v1227
    %v1980 = vpack.c.b16 %v1236, %v1228
    %v1981 = vpack.c.b16 %v1237, %v1229
    %v1982 = vpack.c.b16 %v1238, %v1230
    %v1983 = vpack.c.b16 %v1239, %v1231
    %v1984 = vpack.c.b16 %v1240, %v1232
    %v1985 = vpack.c.b16 %v1241, %v1233
    %v1986 = vpack.c.b16 %v1242, %v1234
    %v1987 = vpack.c.b16 %v1251, %v1243
    %v1988 = vpack.c.b16 %v1252, %v1244
    %v1989 = vpack.c.b16 %v1253, %v1245
    %v1990 = vpack.c.b16 %v1254, %v1246
    %v1991 = vpack.c.b16 %v1255, %v1247
    %v1992 = vpack.c.b16 %v1256, %v1248
    %v1993 = vpack.c.b16 %v1257, %v1249
    %v1994 = vpack.c.b16 %v1258, %v1250
    %v1995 = vpack.c.b16 %v1267, %v1259
    %v1996 = vpack.c.b16 %v1268, %v1260
    %v1997 = vpack.c.b16 %v1269, %v1261
    %v1998 = vpack.c.b16 %v1270, %v1262
    %v1999 = vpack.c.b16 %v1271, %v1263
    %v2000 = vpack.c.b16 %v1272, %v1264
    %v2001 = vpack.c.b16 %v1273, %v1265
    %v2002 = vpack.c.b16 %v1274, %v1266
    %v2003 = vpack.c.b16 %v1283, %v1275
    %v2004 = vpack.c.b16 %v1284, %v1276
    %v2005 = vpack.c.b16 %v1285, %v1277
    %v2006 = vpack.c.b16 %v1286, %v1278
    %v2007 = vpack.c.b16 %v1287, %v1279
    %v2008 = vpack.c.b16 %v1288, %v1280
    %v2009 = vpack.c.b16 %v1289, %v1281
    %v2010 = vpack.c.b16 %v1290, %v1282
    %v2011 = vpack.c.b16 %v1299, %v1291
    %v2012 = vpack.c.b16 %v1300, %v1292
    %v2013 = vpack.c.b16 %v1301, %v1293
    %v2014 = vpack.c.b16 %v1302, %v1294
    %v2015 = vpack.c.b16 %v1303, %v1295
    %v2016 = vpack.c.b16 %v1304, %v1296
    %v2017 = vpack.c.b16 %v1305, %v1297
    %v2018 = vpack.c.b16 %v1306, %v1298
    %v2019 = vpack.c.b16 %v1315, %v1307
    %v2020 = vpack.c.b16 %v1316, %v1308
    %v2021 = vpack.c.b16 %v1317, %v1309
    %v2022 = vpack.c.b16 %v1318, %v1310
    %v2023 = vpack.c.b16 %v1319, %v1311
    %v2024 = vpack.c.b16 %v1320, %v1312
    %v2025 = vpack.c.b16 %v1321, %v1313
    %v2026 = vpack.c.b16 %v1322, %v1314
    %v2027 = vpack.c.b16 %v1331, %v1323
    %v2028 = vpack.c.b16 %v1332, %v1324
    %v2029 = vpack.c.b16 %v1333, %v1325
    %v2030 = vpack.c.b16 %v1334, %v1326
    %v2031 = vpack.c.b16 %v1335, %v1327
    %v2032 = vpack.c.b16 %v1336, %v1328
    %v2033 = vpack.c.b16 %v1337, %v1329
    %v2034 = vpack.c.b16 %v1338, %v1330
    %v2035 = vpack.c.b16 %v1347, %v1339
    %v2036 = vpack.c.b16 %v1348, %v1340
    %v2037 = vpack.c.b16 %v1349, %v1341
    %v2038 = vpack.c.b16 %v1350, %v1342
    %v2039 = vpack.c.b16 %v1351, %v1343
    %v2040 = vpack.c.b16 %v1352, %v1344
    %v2041 = vpack.c.b16 %v1353, %v1345
    %v2042 = vpack.c.b16 %v1354, %v1346
    %v2043 = vpack.c.b16 %v1363, %v1355
    %v2044 = vpack.c.b16 %v1364, %v1356
    %v2045 = vpack.c.b16 %v1365, %v1357
    %v2046 = vpack.c.b16 %v1366, %v1358
    %v2047 = vpack.c.b16 %v1367, %v1359
    %v2048 = vpack.c.b16 %v1368, %v1360
    %v2049 = vpack.c.b16 %v1369, %v1361
    %v2050 = vpack.c.b16 %v1370, %v1362
    %v2051 = vpack.c.b16 %v1379, %v1371
    %v2052 = vpack.c.b16 %v1380, %v1372
    %v2053 = vpack.c.b16 %v1381, %v1373
    %v2054 = vpack.c.b16 %v1382, %v1374
    %v2055 = vpack.c.b16 %v1383, %v1375
    %v2056 = vpack.c.b16 %v1384, %v1376
    %v2057 = vpack.c.b16 %v1385, %v1377
    %v2058 = vpack.c.b16 %v1386, %v1378
    %v2059 = vpack.c.b16 %v1395, %v1387
    %v2060 = vpack.c.b16 %v1396, %v1388
    %v2061 = vpack.c.b16 %v1397, %v1389
    %v2062 = vpack.c.b16 %v1398, %v1390
    %v2063 = vpack.c.b16 %v1399, %v1391
    %v2064 = vpack.c.b16 %v1400, %v1392
    %v2065 = vpack.c.b16 %v1401, %v1393
    %v2066 = vpack.c.b16 %v1402, %v1394
    %v2067 = vpack.c.b16 %v1411, %v1403
    %v2068 = vpack.c.b16 %v1412, %v1404
    %v2069 = vpack.c.b16 %v1413, %v1405
    %v2070 = vpack.c.b16 %v1414, %v1406
    %v2071 = vpack.c.b16 %v1415, %v1407
    %v2072 = vpack.c.b16 %v1416, %v1408
    %v2073 = vpack.c.b16 %v1417, %v1409
    %v2074 = vpack.c.b16 %v1418, %v1410
    %v2075 = vpack.c.b16 %v1427, %v1419
    %v2076 = vpack.c.b16 %v1428, %v1420
    %v2077 = vpack.c.b16 %v1429, %v1421
    %v2078 = vpack.c.b16 %v1430, %v1422
    %v2079 = vpack.c.b16 %v1431, %v1423
    %v2080 = vpack.c.b16 %v1432, %v1424
    %v2081 = vpack.c.b16 %v1433, %v1425
    %v2082 = vpack.c.b16 %v1434, %v1426
    %v2083 = vpack.c.b16 %v1443, %v1435
    %v2084 = vpack.c.b16 %v1444, %v1436
    %v2085 = vpack.c.b16 %v1445, %v1437
    %v2086 = vpack.c.b16 %v1446, %v1438
    %v2087 = vpack.c.b16 %v1447, %v1439
    %v2088 = vpack.c.b16 %v1448, %v1440
    %v2089 = vpack.c.b16 %v1449, %v1441
    %v2090 = vpack.c.b16 %v1450, %v1442
    %v2091 = vpack.c.b16 %v1459, %v1451
    %v2092 = vpack.c.b16 %v1460, %v1452
    %v2093 = vpack.c.b16 %v1461, %v1453
    %v2094 = vpack.c.b16 %v1462, %v1454
    %v2095 = vpack.c.b16 %v1463, %v1455
    %v2096 = vpack.c.b16 %v1464, %v1456
    %v2097 = vpack.c.b16 %v1465, %v1457
    %v2098 = vpack.c.b16 %v1466, %v1458
    %v2099 = vpack.c.b16 %v1475, %v1467
    %v2100 = vpack.c.b16 %v1476, %v1468
    %v2101 = vpack.c.b16 %v1477, %v1469
    %v2102 = vpack.c.b16 %v1478, %v1470
    %v2103 = vpack.c.b16 %v1479, %v1471
    %v2104 = vpack.c.b16 %v1480, %v1472
    %v2105 = vpack.c.b16 %v1481, %v1473
    %v2106 = vpack.c.b16 %v1482, %v1474
    %v2107 = vpack.c.b16 %v1491, %v1483
    %v2108 = vpack.c.b16 %v1492, %v1484
    %v2109 = vpack.c.b16 %v1493, %v1485
    %v2110 = vpack.c.b16 %v1494, %v1486
    %v2111 = vpack.c.b16 %v1495, %v1487
    %v2112 = vpack.c.b16 %v1496, %v1488
    %v2113 = vpack.c.b16 %v1497, %v1489
    %v2114 = vpack.c.b16 %v1498, %v1490
    %v2115 = vpack.c.b16 %v1507, %v1499
    %v2116 = vpack.c.b16 %v1508, %v1500
    %v2117 = vpack.c.b16 %v1509, %v1501
    %v2118 = vpack.c.b16 %v1510, %v1502
    %v2119 = vpack.c.b16 %v1511, %v1503
    %v2120 = vpack.c.b16 %v1512, %v1504
    %v2121 = vpack.c.b16 %v1513, %v1505
    %v2122 = vpack.c.b16 %v1514, %v1506
    %v2123 = vpack.c.b16 %v1523, %v1515
    %v2124 = vpack.c.b16 %v1524, %v1516
    %v2125 = vpack.c.b16 %v1525, %v1517
    %v2126 = vpack.c.b16 %v1526, %v1518
    %v2127 = vpack.c.b16 %v1527, %v1519
    %v2128 = vpack.c.b16 %v1528, %v1520
    %v2129 = vpack.c.b16 %v1529, %v1521
    %v2130 = vpack.c.b16 %v1530, %v1522
    %v2131 = vpack.c.b16 %v1539, %v1531
    %v2132 = vpack.c.b16 %v1540, %v1532
    %v2133 = vpack.c.b16 %v1541, %v1533
    %v2134 = vpack.c.b16 %v1542, %v1534
    %v2135 = vpack.c.b16 %v1543, %v1535
    %v2136 = vpack.c.b16 %v1544, %v1536
    %v2137 = vpack.c.b16 %v1545, %v1537
    %v2138 = vpack.c.b16 %v1546, %v1538
    %v2139 = vpack.c.b16 %v1555, %v1547
    %v2140 = vpack.c.b16 %v1556, %v1548
    %v2141 = vpack.c.b16 %v1557, %v1549
    %v2142 = vpack.c.b16 %v1558, %v1550
    %v2143 = vpack.c.b16 %v1559, %v1551
    %v2144 = vpack.c.b16 %v1560, %v1552
    %v2145 = vpack.c.b16 %v1561, %v1553
    %v2146 = vpack.c.b16 %v1562, %v1554
    %v2147 = vpack.c.b16 %v1571, %v1563
    %v2148 = vpack.c.b16 %v1572, %v1564
    %v2149 = vpack.c.b16 %v1573, %v1565
    %v2150 = vpack.c.b16 %v1574, %v1566
    %v2151 = vpack.c.b16 %v1575, %v1567
    %v2152 = vpack.c.b16 %v1576, %v1568
    %v2153 = vpack.c.b16 %v1577, %v1569
    %v2154 = vpack.c.b16 %v1578, %v1570
    %v2155 = vpack.c.b16 %v1587, %v1579
    %v2156 = vpack.c.b16 %v1588, %v1580
    %v2157 = vpack.c.b16 %v1589, %v1581
    %v2158 = vpack.c.b16 %v1590, %v1582
    %v2159 = vpack.c.b16 %v1591, %v1583
    %v2160 = vpack.c.b16 %v1592, %v1584
    %v2161 = vpack.c.b16 %v1593, %v1585
    %v2162 = vpack.c.b16 %v1594, %v1586
    %v2163 = vpack.c.b16 %v1603, %v1595
    %v2164 = vpack.c.b16 %v1604, %v1596
    %v2165 = vpack.c.b16 %v1605, %v1597
    %v2166 = vpack.c.b16 %v1606, %v1598
    %v2167 = vpack.c.b16 %v1607, %v1599
    %v2168 = vpack.c.b16 %v1608, %v1600
    %v2169 = vpack.c.b16 %v1609, %v1601
    %v2170 = vpack.c.b16 %v1610, %v1602
    %v2171 = vpack.c.b16 %v1619, %v1611
    %v2172 = vpack.c.b16 %v1620, %v1612
    %v2173 = vpack.c.b16 %v1621, %v1613
    %v2174 = vpack.c.b16 %v1622, %v1614
    %v2175 = vpack.c.b16 %v1623, %v1615
    %v2176 = vpack.c.b16 %v1624, %v1616
    %v2177 = vpack.c.b16 %v1625, %v1617
    %v2178 = vpack.c.b16 %v1626, %v1618
    %v2179 = vpack.c.b16 %v1635, %v1627
    %v2180 = vpack.c.b16 %v1636, %v1628
    %v2181 = vpack.c.b16 %v1637, %v1629
    %v2182 = vpack.c.b16 %v1638, %v1630
    %v2183 = vpack.c.b16 %v1639, %v1631
    %v2184 = vpack.c.b16 %v1640, %v1632
    %v2185 = vpack.c.b16 %v1641, %v1633
    %v2186 = vpack.c.b16 %v1642, %v1634
    %v2187 = vpack.c.b16 %v1651, %v1643
    %v2188 = vpack.c.b16 %v1652, %v1644
    %v2189 = vpack.c.b16 %v1653, %v1645
    %v2190 = vpack.c.b16 %v1654, %v1646
    %v2191 = vpack.c.b16 %v1655, %v1647
    %v2192 = vpack.c.b16 %v1656, %v1648
    %v2193 = vpack.c.b16 %v1657, %v1649
    %v2194 = vpack.c.b16 %v1658, %v1650
    %v2195 = vpack.c.b16 %v1667, %v1659
    %v2196 = vpack.c.b16 %v1668, %v1660
    %v2197 = vpack.c.b16 %v1669, %v1661
    %v2198 = vpack.c.b16 %v1670, %v1662
    %v2199 = vpack.c.b16 %v1671, %v1663
    %v2200 = vpack.c.b16 %v1672, %v1664
    %v2201 = vpack.c.b16 %v1673, %v1665
    %v2202 = vpack.c.b16 %v1674, %v1666
    %v2203 = vpack.c.b16 %v1683, %v1675
    %v2204 = vpack.c.b16 %v1684, %v1676
    %v2205 = vpack.c.b16 %v1685, %v1677
    %v2206 = vpack.c.b16 %v1686, %v1678
    %v2207 = vpack.c.b16 %v1687, %v1679
    %v2208 = vpack.c.b16 %v1688, %v1680
    %v2209 = vpack.c.b16 %v1689, %v1681
    %v2210 = vpack.c.b16 %v1690, %v1682
    %v2211 = vpack.c.b16 %v1699, %v1691
    %v2212 = vpack.c.b16 %v1700, %v1692
    %v2213 = vpack.c.b16 %v1701, %v1693
    %v2214 = vpack.c.b16 %v1702, %v1694
    %v2215 = vpack.c.b16 %v1703, %v1695
    %v2216 = vpack.c.b16 %v1704, %v1696
    %v2217 = vpack.c.b16 %v1705, %v1697
    %v2218 = vpack.c.b16 %v1706, %v1698
    %v2219 = vpack.c.b16 %v1715, %v1707
    %v2220 = vpack.c.b16 %v1716, %v1708
    %v2221 = vpack.c.b16 %v1717, %v1709
    %v2222 = vpack.c.b16 %v1718, %v1710
    %v2223 = vpack.c.b16 %v1719, %v1711
    %v2224 = vpack.c.b16 %v1720, %v1712
    %v2225 = vpack.c.b16 %v1721, %v1713
    %v2226 = vpack.c.b16 %v1722, %v1714
    %v2227 = vpack.c.b16 %v1731, %v1723
    %v2228 = vpack.c.b16 %v1732, %v1724
    %v2229 = vpack.c.b16 %v1733, %v1725
    %v2230 = vpack.c.b16 %v1734, %v1726
    %v2231 = vpack.c.b16 %v1735, %v1727
    %v2232 = vpack.c.b16 %v1736, %v1728
    %v2233 = vpack.c.b16 %v1737, %v1729
    %v2234 = vpack.c.b16 %v1738, %v1730
    %v2235 = vpack.c.b16 %v1747, %v1739
    %v2236 = vpack.c.b16 %v1748, %v1740
    %v2237 = vpack.c.b16 %v1749, %v1741
    %v2238 = vpack.c.b16 %v1750, %v1742
    %v2239 = vpack.c.b16 %v1751, %v1743
    %v2240 = vpack.c.b16 %v1752, %v1744
    %v2241 = vpack.c.b16 %v1753, %v1745
    %v2242 = vpack.c.b16 %v1754, %v1746
    %v2243 = vpack.c.b16 %v1763, %v1755
    %v2244 = vpack.c.b16 %v1764, %v1756
    %v2245 = vpack.c.b16 %v1765, %v1757
    %v2246 = vpack.c.b16 %v1766, %v1758
    %v2247 = vpack.c.b16 %v1767, %v1759
    %v2248 = vpack.c.b16 %v1768, %v1760
    %v2249 = vpack.c.b16 %v1769, %v1761
    %v2250 = vpack.c.b16 %v1770, %v1762
    %v2251 = vpack.c.b16 %v1779, %v1771
    %v2252 = vpack.c.b16 %v1780, %v1772
    %v2253 = vpack.c.b16 %v1781, %v1773
    %v2254 = vpack.c.b16 %v1782, %v1774
    %v2255 = vpack.c.b16 %v1783, %v1775
    %v2256 = vpack.c.b16 %v1784, %v1776
    %v2257 = vpack.c.b16 %v1785, %v1777
    %v2258 = vpack.c.b16 %v1786, %v1778
    %v2259 = vpack.c.b16 %v1795, %v1787
    %v2260 = vpack.c.b16 %v1796, %v1788
    %v2261 = vpack.c.b16 %v1797, %v1789
    %v2262 = vpack.c.b16 %v1798, %v1790
    %v2263 = vpack.c.b16 %v1799, %v1791
    %v2264 = vpack.c.b16 %v1800, %v1792
    %v2265 = vpack.c.b16 %v1801, %v1793
    %v2266 = vpack.c.b16 %v1802, %v1794
    %v2267 = vpack.c.b16 %v1811, %v1803
    %v2268 = vpack.c.b16 %v1812, %v1804
    %v2269 = vpack.c.b16 %v1813, %v1805
    %v2270 = vpack.c.b16 %v1814, %v1806
    %v2271 = vpack.c.b16 %v1815, %v1807
    %v2272 = vpack.c.b16 %v1816, %v1808
    %v2273 = vpack.c.b16 %v1817, %v1809
    %v2274 = vpack.c.b16 %v1818, %v1810
    %v2275 = vpack.c.b16 %v1827, %v1819
    %v2276 = vpack.c.b16 %v1828, %v1820
    %v2277 = vpack.c.b16 %v1829, %v1821
    %v2278 = vpack.c.b16 %v1830, %v1822
    %v2279 = vpack.c.b16 %v1831, %v1823
    %v2280 = vpack.c.b16 %v1832, %v1824
    %v2281 = vpack.c.b16 %v1833, %v1825
    %v2282 = vpack.c.b16 %v1834, %v1826
    %v2283 = vpack.c.b16 %v1843, %v1835
    %v2284 = vpack.c.b16 %v1844, %v1836
    %v2285 = vpack.c.b16 %v1845, %v1837
    %v2286 = vpack.c.b16 %v1846, %v1838
    %v2287 = vpack.c.b16 %v1847, %v1839
    %v2288 = vpack.c.b16 %v1848, %v1840
    %v2289 = vpack.c.b16 %v1849, %v1841
    %v2290 = vpack.c.b16 %v1850, %v1842
    %v2291 = vpack.c.b16 %v1859, %v1851
    %v2292 = vpack.c.b16 %v1860, %v1852
    %v2293 = vpack.c.b16 %v1861, %v1853
    %v2294 = vpack.c.b16 %v1862, %v1854
    %v2295 = vpack.c.b16 %v1863, %v1855
    %v2296 = vpack.c.b16 %v1864, %v1856
    %v2297 = vpack.c.b16 %v1865, %v1857
    %v2298 = vpack.c.b16 %v1866, %v1858
    %v2299 = vpack.c.b16 %v1875, %v1867
    %v2300 = vpack.c.b16 %v1876, %v1868
    %v2301 = vpack.c.b16 %v1877, %v1869
    %v2302 = vpack.c.b16 %v1878, %v1870
    %v2303 = vpack.c.b16 %v1879, %v1871
    %v2304 = vpack.c.b16 %v1880, %v1872
    %v2305 = vpack.c.b16 %v1881, %v1873
    %v2306 = vpack.c.b16 %v1882, %v1874
    %v2307 = vpack.c.b16 %v1891, %v1883
    %v2308 = vpack.c.b16 %v1892, %v1884
    %v2309 = vpack.c.b16 %v1893, %v1885
    %v2310 = vpack.c.b16 %v1894, %v1886
    %v2311 = vpack.c.b16 %v1895, %v1887
    %v2312 = vpack.c.b16 %v1896, %v1888
    %v2313 = vpack.c.b16 %v1897, %v1889
    %v2314 = vpack.c.b16 %v1898, %v1890
    %v2315 = vpack.c.b16 %v1907, %v1899
    %v2316 = vpack.c.b16 %v1908, %v1900
    %v2317 = vpack.c.b16 %v1909, %v1901
    %v2318 = vpack.c.b16 %v1910, %v1902
    %v2319 = vpack.c.b16 %v1911, %v1903
    %v2320 = vpack.c.b16 %v1912, %v1904
    %v2321 = vpack.c.b16 %v1913, %v1905
    %v2322 = vpack.c.b16 %v1914, %v1906
    %v2323 = vpack.c.b16 %v1923, %v1915
    %v2324 = vpack.c.b16 %v1924, %v1916
    %v2325 = vpack.c.b16 %v1925, %v1917
    %v2326 = vpack.c.b16 %v1926, %v1918
    %v2327 = vpack.c.b16 %v1927, %v1919
    %v2328 = vpack.c.b16 %v1928, %v1920
    %v2329 = vpack.c.b16 %v1929, %v1921
    %v2330 = vpack.c.b16 %v1930, %v1922
    %v2331 = vpack.c.b16 %v1939, %v1931
    %v2332 = vpack.c.b16 %v1940, %v1932
    %v2333 = vpack.c.b16 %v1941, %v1933
    %v2334 = vpack.c.b16 %v1942, %v1934
    %v2335 = vpack.c.b16 %v1943, %v1935
    %v2336 = vpack.c.b16 %v1944, %v1936
    %v2337 = vpack.c.b16 %v1945, %v1937
    %v2338 = vpack.c.b16 %v1946, %v1938
    %v2732 = vsel %vm655, %v211, 0
    %2734 = vmatpush.bf16.msra.mxu0 %v2003
    %2735 = vmatpush.bf16.msra.mxu0 %v1995
    %2736 = vmatpush.bf16.msra.mxu0 %v1987
    %2737 = vmatpush.bf16.msra.mxu0 %v1979
    %2738 = vmatpush.bf16.msra.mxu0 %v1971
    %2739 = vmatpush.bf16.msra.mxu0 %v1963
    %2740 = vmatpush.bf16.msra.mxu0 %v1955
    %2741 = vmatpush.bf16.msra.mxu0 %v1947
    %2742 = vmatmul.bf16.gmra.mxu0 %v205
    %v2743 = vpop.f32.mrf.mxu0
    %v2744 = vadd.f32 %v669, %v2743
    %v2745 = vpop.f32.mrf.mxu0
    %v2746 = vadd.f32 %v671, %v2745
    %2747 = vdwg.mxu0
    %2748 = vmatpush.bf16.msra.mxu0 %v2067
    %2749 = vmatpush.bf16.msra.mxu0 %v2059
    %2750 = vmatpush.bf16.msra.mxu0 %v2051
    %2751 = vmatpush.bf16.msra.mxu0 %v2043
    %2752 = vmatpush.bf16.msra.mxu0 %v2035
    %2753 = vmatpush.bf16.msra.mxu0 %v2027
    %2754 = vmatpush.bf16.msra.mxu0 %v2019
    %2755 = vmatpush.bf16.msra.mxu0 %v2011
    %2756 = vmatmul.bf16.gmra.mxu0 %v206
    %v2757 = vpop.f32.mrf.mxu0
    %v2758 = vadd.f32 %v2744, %v2757
    %v2759 = vpop.f32.mrf.mxu0
    %v2760 = vadd.f32 %v2746, %v2759
    %2761 = vdwg.mxu0
    %2762 = vmatpush.bf16.msra.mxu0 %v2131
    %2763 = vmatpush.bf16.msra.mxu0 %v2123
    %2764 = vmatpush.bf16.msra.mxu0 %v2115
    %2765 = vmatpush.bf16.msra.mxu0 %v2107
    %2766 = vmatpush.bf16.msra.mxu0 %v2099
    %2767 = vmatpush.bf16.msra.mxu0 %v2091
    %2768 = vmatpush.bf16.msra.mxu0 %v2083
    %2769 = vmatpush.bf16.msra.mxu0 %v2075
    %2770 = vmatmul.bf16.gmra.mxu0 %v207
    %v2771 = vpop.f32.mrf.mxu0
    %v2772 = vadd.f32 %v2758, %v2771
    %v2773 = vpop.f32.mrf.mxu0
    %v2774 = vadd.f32 %v2760, %v2773
    %2775 = vdwg.mxu0
    %2776 = vmatpush.bf16.msra.mxu0 %v2195
    %2777 = vmatpush.bf16.msra.mxu0 %v2187
    %2778 = vmatpush.bf16.msra.mxu0 %v2179
    %2779 = vmatpush.bf16.msra.mxu0 %v2171
    %2780 = vmatpush.bf16.msra.mxu0 %v2163
    %2781 = vmatpush.bf16.msra.mxu0 %v2155
    %2782 = vmatpush.bf16.msra.mxu0 %v2147
    %2783 = vmatpush.bf16.msra.mxu0 %v2139
    %2784 = vmatmul.bf16.gmra.mxu0 %v208
    %v2785 = vpop.f32.mrf.mxu0
    %v2786 = vadd.f32 %v2772, %v2785
    %v2787 = vpop.f32.mrf.mxu0
    %v2788 = vadd.f32 %v2774, %v2787
    %2789 = vdwg.mxu0
    %2790 = vmatpush.bf16.msra.mxu0 %v2259
    %2791 = vmatpush.bf16.msra.mxu0 %v2251
    %2792 = vmatpush.bf16.msra.mxu0 %v2243
    %2793 = vmatpush.bf16.msra.mxu0 %v2235
    %2794 = vmatpush.bf16.msra.mxu0 %v2227
    %2795 = vmatpush.bf16.msra.mxu0 %v2219
    %2796 = vmatpush.bf16.msra.mxu0 %v2211
    %2797 = vmatpush.bf16.msra.mxu0 %v2203
    %2798 = vmatmul.bf16.gmra.mxu0 %v209
    %v2799 = vpop.f32.mrf.mxu0
    %v2800 = vadd.f32 %v2786, %v2799
    %v2801 = vpop.f32.mrf.mxu0
    %v2802 = vadd.f32 %v2788, %v2801
    %2803 = vdwg.mxu0
    %2804 = vmatpush.bf16.msra.mxu0 %v2323
    %2805 = vmatpush.bf16.msra.mxu0 %v2315
    %2806 = vmatpush.bf16.msra.mxu0 %v2307
    %2807 = vmatpush.bf16.msra.mxu0 %v2299
    %2808 = vmatpush.bf16.msra.mxu0 %v2291
    %2809 = vmatpush.bf16.msra.mxu0 %v2283
    %2810 = vmatpush.bf16.msra.mxu0 %v2275
    %2811 = vmatpush.bf16.msra.mxu0 %v2267
    %2812 = vmatmul.bf16.gmra.mxu0 %v210
    %v2813 = vpop.f32.mrf.mxu0
    %v2814 = vadd.f32 %v2800, %v2813
    %v2815 = vpop.f32.mrf.mxu0
    %v2816 = vadd.f32 %v2802, %v2815
    %2817 = vdwg.mxu0
    %2818 = vmatpush.bf16.msra.mxu0 0
    %2819 = vmatpush.bf16.msra.mxu0 0
    %2820 = vmatpush.bf16.msra.mxu0 0
    %2821 = vmatpush.bf16.msra.mxu0 0
    %2822 = vmatpush.bf16.msra.mxu0 0
    %2823 = vmatpush.bf16.msra.mxu0 0
    %2824 = vmatpush.bf16.msra.mxu0 0
    %2825 = vmatpush.bf16.msra.mxu0 %v2331
    %2826 = vmatmul.bf16.gmra.mxu0 %v2732
    %v2827 = vpop.f32.mrf.mxu0
    %v2828 = vadd.f32 %v2814, %v2827
    %v2829 = vpop.f32.mrf.mxu0
    %v2830 = vadd.f32 %v2816, %v2829
    %2831 = vdwg.mxu0
    %2832 = vmatpush.bf16.msra.mxu0 %v2004
    %2833 = vmatpush.bf16.msra.mxu0 %v1996
    %2834 = vmatpush.bf16.msra.mxu0 %v1988
    %2835 = vmatpush.bf16.msra.mxu0 %v1980
    %2836 = vmatpush.bf16.msra.mxu0 %v1972
    %2837 = vmatpush.bf16.msra.mxu0 %v1964
    %2838 = vmatpush.bf16.msra.mxu0 %v1956
    %2839 = vmatpush.bf16.msra.mxu0 %v1948
    %2840 = vmatmul.bf16.gmra.mxu0 %v205
    %v2841 = vpop.f32.mrf.mxu0
    %v2842 = vadd.f32 %v683, %v2841
    %v2843 = vpop.f32.mrf.mxu0
    %v2844 = vadd.f32 %v685, %v2843
    %2845 = vdwg.mxu0
    %2846 = vmatpush.bf16.msra.mxu0 %v2068
    %2847 = vmatpush.bf16.msra.mxu0 %v2060
    %2848 = vmatpush.bf16.msra.mxu0 %v2052
    %2849 = vmatpush.bf16.msra.mxu0 %v2044
    %2850 = vmatpush.bf16.msra.mxu0 %v2036
    %2851 = vmatpush.bf16.msra.mxu0 %v2028
    %2852 = vmatpush.bf16.msra.mxu0 %v2020
    %2853 = vmatpush.bf16.msra.mxu0 %v2012
    %2854 = vmatmul.bf16.gmra.mxu0 %v206
    %v2855 = vpop.f32.mrf.mxu0
    %v2856 = vadd.f32 %v2842, %v2855
    %v2857 = vpop.f32.mrf.mxu0
    %v2858 = vadd.f32 %v2844, %v2857
    %2859 = vdwg.mxu0
    %2860 = vmatpush.bf16.msra.mxu0 %v2132
    %2861 = vmatpush.bf16.msra.mxu0 %v2124
    %2862 = vmatpush.bf16.msra.mxu0 %v2116
    %2863 = vmatpush.bf16.msra.mxu0 %v2108
    %2864 = vmatpush.bf16.msra.mxu0 %v2100
    %2865 = vmatpush.bf16.msra.mxu0 %v2092
    %2866 = vmatpush.bf16.msra.mxu0 %v2084
    %2867 = vmatpush.bf16.msra.mxu0 %v2076
    %2868 = vmatmul.bf16.gmra.mxu0 %v207
    %v2869 = vpop.f32.mrf.mxu0
    %v2870 = vadd.f32 %v2856, %v2869
    %v2871 = vpop.f32.mrf.mxu0
    %v2872 = vadd.f32 %v2858, %v2871
    %2873 = vdwg.mxu0
    %2874 = vmatpush.bf16.msra.mxu0 %v2196
    %2875 = vmatpush.bf16.msra.mxu0 %v2188
    %2876 = vmatpush.bf16.msra.mxu0 %v2180
    %2877 = vmatpush.bf16.msra.mxu0 %v2172
    %2878 = vmatpush.bf16.msra.mxu0 %v2164
    %2879 = vmatpush.bf16.msra.mxu0 %v2156
    %2880 = vmatpush.bf16.msra.mxu0 %v2148
    %2881 = vmatpush.bf16.msra.mxu0 %v2140
    %2882 = vmatmul.bf16.gmra.mxu0 %v208
    %v2883 = vpop.f32.mrf.mxu0
    %v2884 = vadd.f32 %v2870, %v2883
    %v2885 = vpop.f32.mrf.mxu0
    %v2886 = vadd.f32 %v2872, %v2885
    %2887 = vdwg.mxu0
    %2888 = vmatpush.bf16.msra.mxu0 %v2260
    %2889 = vmatpush.bf16.msra.mxu0 %v2252
    %2890 = vmatpush.bf16.msra.mxu0 %v2244
    %2891 = vmatpush.bf16.msra.mxu0 %v2236
    %2892 = vmatpush.bf16.msra.mxu0 %v2228
    %2893 = vmatpush.bf16.msra.mxu0 %v2220
    %2894 = vmatpush.bf16.msra.mxu0 %v2212
    %2895 = vmatpush.bf16.msra.mxu0 %v2204
    %2896 = vmatmul.bf16.gmra.mxu0 %v209
    %v2897 = vpop.f32.mrf.mxu0
    %v2898 = vadd.f32 %v2884, %v2897
    %v2899 = vpop.f32.mrf.mxu0
    %v2900 = vadd.f32 %v2886, %v2899
    %2901 = vdwg.mxu0
    %2902 = vmatpush.bf16.msra.mxu0 %v2324
    %2903 = vmatpush.bf16.msra.mxu0 %v2316
    %2904 = vmatpush.bf16.msra.mxu0 %v2308
    %2905 = vmatpush.bf16.msra.mxu0 %v2300
    %2906 = vmatpush.bf16.msra.mxu0 %v2292
    %2907 = vmatpush.bf16.msra.mxu0 %v2284
    %2908 = vmatpush.bf16.msra.mxu0 %v2276
    %2909 = vmatpush.bf16.msra.mxu0 %v2268
    %2910 = vmatmul.bf16.gmra.mxu0 %v210
    %v2911 = vpop.f32.mrf.mxu0
    %v2912 = vadd.f32 %v2898, %v2911
    %v2913 = vpop.f32.mrf.mxu0
    %v2914 = vadd.f32 %v2900, %v2913
    %2915 = vdwg.mxu0
    %2916 = vmatpush.bf16.msra.mxu0 0
    %2917 = vmatpush.bf16.msra.mxu0 0
    %2918 = vmatpush.bf16.msra.mxu0 0
    %2919 = vmatpush.bf16.msra.mxu0 0
    %2920 = vmatpush.bf16.msra.mxu0 0
    %2921 = vmatpush.bf16.msra.mxu0 0
    %2922 = vmatpush.bf16.msra.mxu0 0
    %2923 = vmatpush.bf16.msra.mxu0 %v2332
    %2924 = vmatmul.bf16.gmra.mxu0 %v2732
    %v2925 = vpop.f32.mrf.mxu0
    %v2926 = vadd.f32 %v2912, %v2925
    %v2927 = vpop.f32.mrf.mxu0
    %v2928 = vadd.f32 %v2914, %v2927
    %2929 = vdwg.mxu0
    %2930 = vmatpush.bf16.msra.mxu0 %v2005
    %2931 = vmatpush.bf16.msra.mxu0 %v1997
    %2932 = vmatpush.bf16.msra.mxu0 %v1989
    %2933 = vmatpush.bf16.msra.mxu0 %v1981
    %2934 = vmatpush.bf16.msra.mxu0 %v1973
    %2935 = vmatpush.bf16.msra.mxu0 %v1965
    %2936 = vmatpush.bf16.msra.mxu0 %v1957
    %2937 = vmatpush.bf16.msra.mxu0 %v1949
    %2938 = vmatmul.bf16.gmra.mxu0 %v205
    %v2939 = vpop.f32.mrf.mxu0
    %v2940 = vadd.f32 %v697, %v2939
    %v2941 = vpop.f32.mrf.mxu0
    %v2942 = vadd.f32 %v699, %v2941
    %2943 = vdwg.mxu0
    %2944 = vmatpush.bf16.msra.mxu0 %v2069
    %2945 = vmatpush.bf16.msra.mxu0 %v2061
    %2946 = vmatpush.bf16.msra.mxu0 %v2053
    %2947 = vmatpush.bf16.msra.mxu0 %v2045
    %2948 = vmatpush.bf16.msra.mxu0 %v2037
    %2949 = vmatpush.bf16.msra.mxu0 %v2029
    %2950 = vmatpush.bf16.msra.mxu0 %v2021
    %2951 = vmatpush.bf16.msra.mxu0 %v2013
    %2952 = vmatmul.bf16.gmra.mxu0 %v206
    %v2953 = vpop.f32.mrf.mxu0
    %v2954 = vadd.f32 %v2940, %v2953
    %v2955 = vpop.f32.mrf.mxu0
    %v2956 = vadd.f32 %v2942, %v2955
    %2957 = vdwg.mxu0
    %2958 = vmatpush.bf16.msra.mxu0 %v2133
    %2959 = vmatpush.bf16.msra.mxu0 %v2125
    %2960 = vmatpush.bf16.msra.mxu0 %v2117
    %2961 = vmatpush.bf16.msra.mxu0 %v2109
    %2962 = vmatpush.bf16.msra.mxu0 %v2101
    %2963 = vmatpush.bf16.msra.mxu0 %v2093
    %2964 = vmatpush.bf16.msra.mxu0 %v2085
    %2965 = vmatpush.bf16.msra.mxu0 %v2077
    %2966 = vmatmul.bf16.gmra.mxu0 %v207
    %v2967 = vpop.f32.mrf.mxu0
    %v2968 = vadd.f32 %v2954, %v2967
    %v2969 = vpop.f32.mrf.mxu0
    %v2970 = vadd.f32 %v2956, %v2969
    %2971 = vdwg.mxu0
    %2972 = vmatpush.bf16.msra.mxu0 %v2197
    %2973 = vmatpush.bf16.msra.mxu0 %v2189
    %2974 = vmatpush.bf16.msra.mxu0 %v2181
    %2975 = vmatpush.bf16.msra.mxu0 %v2173
    %2976 = vmatpush.bf16.msra.mxu0 %v2165
    %2977 = vmatpush.bf16.msra.mxu0 %v2157
    %2978 = vmatpush.bf16.msra.mxu0 %v2149
    %2979 = vmatpush.bf16.msra.mxu0 %v2141
    %2980 = vmatmul.bf16.gmra.mxu0 %v208
    %v2981 = vpop.f32.mrf.mxu0
    %v2982 = vadd.f32 %v2968, %v2981
    %v2983 = vpop.f32.mrf.mxu0
    %v2984 = vadd.f32 %v2970, %v2983
    %2985 = vdwg.mxu0
    %2986 = vmatpush.bf16.msra.mxu0 %v2261
    %2987 = vmatpush.bf16.msra.mxu0 %v2253
    %2988 = vmatpush.bf16.msra.mxu0 %v2245
    %2989 = vmatpush.bf16.msra.mxu0 %v2237
    %2990 = vmatpush.bf16.msra.mxu0 %v2229
    %2991 = vmatpush.bf16.msra.mxu0 %v2221
    %2992 = vmatpush.bf16.msra.mxu0 %v2213
    %2993 = vmatpush.bf16.msra.mxu0 %v2205
    %2994 = vmatmul.bf16.gmra.mxu0 %v209
    %v2995 = vpop.f32.mrf.mxu0
    %v2996 = vadd.f32 %v2982, %v2995
    %v2997 = vpop.f32.mrf.mxu0
    %v2998 = vadd.f32 %v2984, %v2997
    %2999 = vdwg.mxu0
    %3000 = vmatpush.bf16.msra.mxu0 %v2325
    %3001 = vmatpush.bf16.msra.mxu0 %v2317
    %3002 = vmatpush.bf16.msra.mxu0 %v2309
    %3003 = vmatpush.bf16.msra.mxu0 %v2301
    %3004 = vmatpush.bf16.msra.mxu0 %v2293
    %3005 = vmatpush.bf16.msra.mxu0 %v2285
    %3006 = vmatpush.bf16.msra.mxu0 %v2277
    %3007 = vmatpush.bf16.msra.mxu0 %v2269
    %3008 = vmatmul.bf16.gmra.mxu0 %v210
    %v3009 = vpop.f32.mrf.mxu0
    %v3010 = vadd.f32 %v2996, %v3009
    %v3011 = vpop.f32.mrf.mxu0
    %v3012 = vadd.f32 %v2998, %v3011
    %3013 = vdwg.mxu0
    %3014 = vmatpush.bf16.msra.mxu0 0
    %3015 = vmatpush.bf16.msra.mxu0 0
    %3016 = vmatpush.bf16.msra.mxu0 0
    %3017 = vmatpush.bf16.msra.mxu0 0
    %3018 = vmatpush.bf16.msra.mxu0 0
    %3019 = vmatpush.bf16.msra.mxu0 0
    %3020 = vmatpush.bf16.msra.mxu0 0
    %3021 = vmatpush.bf16.msra.mxu0 %v2333
    %3022 = vmatmul.bf16.gmra.mxu0 %v2732
    %v3023 = vpop.f32.mrf.mxu0
    %v3024 = vadd.f32 %v3010, %v3023
    %v3025 = vpop.f32.mrf.mxu0
    %v3026 = vadd.f32 %v3012, %v3025
    %3027 = vdwg.mxu0
    %3028 = vmatpush.bf16.msra.mxu0 %v2006
    %3029 = vmatpush.bf16.msra.mxu0 %v1998
    %3030 = vmatpush.bf16.msra.mxu0 %v1990
    %3031 = vmatpush.bf16.msra.mxu0 %v1982
    %3032 = vmatpush.bf16.msra.mxu0 %v1974
    %3033 = vmatpush.bf16.msra.mxu0 %v1966
    %3034 = vmatpush.bf16.msra.mxu0 %v1958
    %3035 = vmatpush.bf16.msra.mxu0 %v1950
    %3036 = vmatmul.bf16.gmra.mxu0 %v205
    %v3037 = vpop.f32.mrf.mxu0
    %v3038 = vadd.f32 %v711, %v3037
    %v3039 = vpop.f32.mrf.mxu0
    %v3040 = vadd.f32 %v713, %v3039
    %3041 = vdwg.mxu0
    %3042 = vmatpush.bf16.msra.mxu0 %v2070
    %3043 = vmatpush.bf16.msra.mxu0 %v2062
    %3044 = vmatpush.bf16.msra.mxu0 %v2054
    %3045 = vmatpush.bf16.msra.mxu0 %v2046
    %3046 = vmatpush.bf16.msra.mxu0 %v2038
    %3047 = vmatpush.bf16.msra.mxu0 %v2030
    %3048 = vmatpush.bf16.msra.mxu0 %v2022
    %3049 = vmatpush.bf16.msra.mxu0 %v2014
    %3050 = vmatmul.bf16.gmra.mxu0 %v206
    %v3051 = vpop.f32.mrf.mxu0
    %v3052 = vadd.f32 %v3038, %v3051
    %v3053 = vpop.f32.mrf.mxu0
    %v3054 = vadd.f32 %v3040, %v3053
    %3055 = vdwg.mxu0
    %3056 = vmatpush.bf16.msra.mxu0 %v2134
    %3057 = vmatpush.bf16.msra.mxu0 %v2126
    %3058 = vmatpush.bf16.msra.mxu0 %v2118
    %3059 = vmatpush.bf16.msra.mxu0 %v2110
    %3060 = vmatpush.bf16.msra.mxu0 %v2102
    %3061 = vmatpush.bf16.msra.mxu0 %v2094
    %3062 = vmatpush.bf16.msra.mxu0 %v2086
    %3063 = vmatpush.bf16.msra.mxu0 %v2078
    %3064 = vmatmul.bf16.gmra.mxu0 %v207
    %v3065 = vpop.f32.mrf.mxu0
    %v3066 = vadd.f32 %v3052, %v3065
    %v3067 = vpop.f32.mrf.mxu0
    %v3068 = vadd.f32 %v3054, %v3067
    %3069 = vdwg.mxu0
    %3070 = vmatpush.bf16.msra.mxu0 %v2198
    %3071 = vmatpush.bf16.msra.mxu0 %v2190
    %3072 = vmatpush.bf16.msra.mxu0 %v2182
    %3073 = vmatpush.bf16.msra.mxu0 %v2174
    %3074 = vmatpush.bf16.msra.mxu0 %v2166
    %3075 = vmatpush.bf16.msra.mxu0 %v2158
    %3076 = vmatpush.bf16.msra.mxu0 %v2150
    %3077 = vmatpush.bf16.msra.mxu0 %v2142
    %3078 = vmatmul.bf16.gmra.mxu0 %v208
    %v3079 = vpop.f32.mrf.mxu0
    %v3080 = vadd.f32 %v3066, %v3079
    %v3081 = vpop.f32.mrf.mxu0
    %v3082 = vadd.f32 %v3068, %v3081
    %3083 = vdwg.mxu0
    %3084 = vmatpush.bf16.msra.mxu0 %v2262
    %3085 = vmatpush.bf16.msra.mxu0 %v2254
    %3086 = vmatpush.bf16.msra.mxu0 %v2246
    %3087 = vmatpush.bf16.msra.mxu0 %v2238
    %3088 = vmatpush.bf16.msra.mxu0 %v2230
    %3089 = vmatpush.bf16.msra.mxu0 %v2222
    %3090 = vmatpush.bf16.msra.mxu0 %v2214
    %3091 = vmatpush.bf16.msra.mxu0 %v2206
    %3092 = vmatmul.bf16.gmra.mxu0 %v209
    %v3093 = vpop.f32.mrf.mxu0
    %v3094 = vadd.f32 %v3080, %v3093
    %v3095 = vpop.f32.mrf.mxu0
    %v3096 = vadd.f32 %v3082, %v3095
    %3097 = vdwg.mxu0
    %3098 = vmatpush.bf16.msra.mxu0 %v2326
    %3099 = vmatpush.bf16.msra.mxu0 %v2318
    %3100 = vmatpush.bf16.msra.mxu0 %v2310
    %3101 = vmatpush.bf16.msra.mxu0 %v2302
    %3102 = vmatpush.bf16.msra.mxu0 %v2294
    %3103 = vmatpush.bf16.msra.mxu0 %v2286
    %3104 = vmatpush.bf16.msra.mxu0 %v2278
    %3105 = vmatpush.bf16.msra.mxu0 %v2270
    %3106 = vmatmul.bf16.gmra.mxu0 %v210
    %v3107 = vpop.f32.mrf.mxu0
    %v3108 = vadd.f32 %v3094, %v3107
    %v3109 = vpop.f32.mrf.mxu0
    %v3110 = vadd.f32 %v3096, %v3109
    %3111 = vdwg.mxu0
    %3112 = vmatpush.bf16.msra.mxu0 0
    %3113 = vmatpush.bf16.msra.mxu0 0
    %3114 = vmatpush.bf16.msra.mxu0 0
    %3115 = vmatpush.bf16.msra.mxu0 0
    %3116 = vmatpush.bf16.msra.mxu0 0
    %3117 = vmatpush.bf16.msra.mxu0 0
    %3118 = vmatpush.bf16.msra.mxu0 0
    %3119 = vmatpush.bf16.msra.mxu0 %v2334
    %3120 = vmatmul.bf16.gmra.mxu0 %v2732
    %v3121 = vpop.f32.mrf.mxu0
    %v3122 = vadd.f32 %v3108, %v3121
    %v3123 = vpop.f32.mrf.mxu0
    %v3124 = vadd.f32 %v3110, %v3123
    %3125 = vdwg.mxu0
    %3126 = vmatpush.bf16.msra.mxu0 %v2007
    %3127 = vmatpush.bf16.msra.mxu0 %v1999
    %3128 = vmatpush.bf16.msra.mxu0 %v1991
    %3129 = vmatpush.bf16.msra.mxu0 %v1983
    %3130 = vmatpush.bf16.msra.mxu0 %v1975
    %3131 = vmatpush.bf16.msra.mxu0 %v1967
    %3132 = vmatpush.bf16.msra.mxu0 %v1959
    %3133 = vmatpush.bf16.msra.mxu0 %v1951
    %3134 = vmatmul.bf16.gmra.mxu0 %v205
    %v3135 = vpop.f32.mrf.mxu0
    %v3136 = vadd.f32 %v725, %v3135
    %v3137 = vpop.f32.mrf.mxu0
    %v3138 = vadd.f32 %v727, %v3137
    %3139 = vdwg.mxu0
    %3140 = vmatpush.bf16.msra.mxu0 %v2071
    %3141 = vmatpush.bf16.msra.mxu0 %v2063
    %3142 = vmatpush.bf16.msra.mxu0 %v2055
    %3143 = vmatpush.bf16.msra.mxu0 %v2047
    %3144 = vmatpush.bf16.msra.mxu0 %v2039
    %3145 = vmatpush.bf16.msra.mxu0 %v2031
    %3146 = vmatpush.bf16.msra.mxu0 %v2023
    %3147 = vmatpush.bf16.msra.mxu0 %v2015
    %3148 = vmatmul.bf16.gmra.mxu0 %v206
    %v3149 = vpop.f32.mrf.mxu0
    %v3150 = vadd.f32 %v3136, %v3149
    %v3151 = vpop.f32.mrf.mxu0
    %v3152 = vadd.f32 %v3138, %v3151
    %3153 = vdwg.mxu0
    %3154 = vmatpush.bf16.msra.mxu0 %v2135
    %3155 = vmatpush.bf16.msra.mxu0 %v2127
    %3156 = vmatpush.bf16.msra.mxu0 %v2119
    %3157 = vmatpush.bf16.msra.mxu0 %v2111
    %3158 = vmatpush.bf16.msra.mxu0 %v2103
    %3159 = vmatpush.bf16.msra.mxu0 %v2095
    %3160 = vmatpush.bf16.msra.mxu0 %v2087
    %3161 = vmatpush.bf16.msra.mxu0 %v2079
    %3162 = vmatmul.bf16.gmra.mxu0 %v207
    %v3163 = vpop.f32.mrf.mxu0
    %v3164 = vadd.f32 %v3150, %v3163
    %v3165 = vpop.f32.mrf.mxu0
    %v3166 = vadd.f32 %v3152, %v3165
    %3167 = vdwg.mxu0
    %3168 = vmatpush.bf16.msra.mxu0 %v2199
    %3169 = vmatpush.bf16.msra.mxu0 %v2191
    %3170 = vmatpush.bf16.msra.mxu0 %v2183
    %3171 = vmatpush.bf16.msra.mxu0 %v2175
    %3172 = vmatpush.bf16.msra.mxu0 %v2167
    %3173 = vmatpush.bf16.msra.mxu0 %v2159
    %3174 = vmatpush.bf16.msra.mxu0 %v2151
    %3175 = vmatpush.bf16.msra.mxu0 %v2143
    %3176 = vmatmul.bf16.gmra.mxu0 %v208
    %v3177 = vpop.f32.mrf.mxu0
    %v3178 = vadd.f32 %v3164, %v3177
    %v3179 = vpop.f32.mrf.mxu0
    %v3180 = vadd.f32 %v3166, %v3179
    %3181 = vdwg.mxu0
    %3182 = vmatpush.bf16.msra.mxu0 %v2263
    %3183 = vmatpush.bf16.msra.mxu0 %v2255
    %3184 = vmatpush.bf16.msra.mxu0 %v2247
    %3185 = vmatpush.bf16.msra.mxu0 %v2239
    %3186 = vmatpush.bf16.msra.mxu0 %v2231
    %3187 = vmatpush.bf16.msra.mxu0 %v2223
    %3188 = vmatpush.bf16.msra.mxu0 %v2215
    %3189 = vmatpush.bf16.msra.mxu0 %v2207
    %3190 = vmatmul.bf16.gmra.mxu0 %v209
    %v3191 = vpop.f32.mrf.mxu0
    %v3192 = vadd.f32 %v3178, %v3191
    %v3193 = vpop.f32.mrf.mxu0
    %v3194 = vadd.f32 %v3180, %v3193
    %3195 = vdwg.mxu0
    %3196 = vmatpush.bf16.msra.mxu0 %v2327
    %3197 = vmatpush.bf16.msra.mxu0 %v2319
    %3198 = vmatpush.bf16.msra.mxu0 %v2311
    %3199 = vmatpush.bf16.msra.mxu0 %v2303
    %3200 = vmatpush.bf16.msra.mxu0 %v2295
    %3201 = vmatpush.bf16.msra.mxu0 %v2287
    %3202 = vmatpush.bf16.msra.mxu0 %v2279
    %3203 = vmatpush.bf16.msra.mxu0 %v2271
    %3204 = vmatmul.bf16.gmra.mxu0 %v210
    %v3205 = vpop.f32.mrf.mxu0
    %v3206 = vadd.f32 %v3192, %v3205
    %v3207 = vpop.f32.mrf.mxu0
    %v3208 = vadd.f32 %v3194, %v3207
    %3209 = vdwg.mxu0
    %3210 = vmatpush.bf16.msra.mxu0 0
    %3211 = vmatpush.bf16.msra.mxu0 0
    %3212 = vmatpush.bf16.msra.mxu0 0
    %3213 = vmatpush.bf16.msra.mxu0 0
    %3214 = vmatpush.bf16.msra.mxu0 0
    %3215 = vmatpush.bf16.msra.mxu0 0
    %3216 = vmatpush.bf16.msra.mxu0 0
    %3217 = vmatpush.bf16.msra.mxu0 %v2335
    %3218 = vmatmul.bf16.gmra.mxu0 %v2732
    %v3219 = vpop.f32.mrf.mxu0
    %v3220 = vadd.f32 %v3206, %v3219
    %v3221 = vpop.f32.mrf.mxu0
    %v3222 = vadd.f32 %v3208, %v3221
    %3223 = vdwg.mxu0
    %3224 = vmatpush.bf16.msra.mxu0 %v2008
    %3225 = vmatpush.bf16.msra.mxu0 %v2000
    %3226 = vmatpush.bf16.msra.mxu0 %v1992
    %3227 = vmatpush.bf16.msra.mxu0 %v1984
    %3228 = vmatpush.bf16.msra.mxu0 %v1976
    %3229 = vmatpush.bf16.msra.mxu0 %v1968
    %3230 = vmatpush.bf16.msra.mxu0 %v1960
    %3231 = vmatpush.bf16.msra.mxu0 %v1952
    %3232 = vmatmul.bf16.gmra.mxu0 %v205
    %v3233 = vpop.f32.mrf.mxu0
    %v3234 = vadd.f32 %v739, %v3233
    %v3235 = vpop.f32.mrf.mxu0
    %v3236 = vadd.f32 %v741, %v3235
    %3237 = vdwg.mxu0
    %3238 = vmatpush.bf16.msra.mxu0 %v2072
    %3239 = vmatpush.bf16.msra.mxu0 %v2064
    %3240 = vmatpush.bf16.msra.mxu0 %v2056
    %3241 = vmatpush.bf16.msra.mxu0 %v2048
    %3242 = vmatpush.bf16.msra.mxu0 %v2040
    %3243 = vmatpush.bf16.msra.mxu0 %v2032
    %3244 = vmatpush.bf16.msra.mxu0 %v2024
    %3245 = vmatpush.bf16.msra.mxu0 %v2016
    %3246 = vmatmul.bf16.gmra.mxu0 %v206
    %v3247 = vpop.f32.mrf.mxu0
    %v3248 = vadd.f32 %v3234, %v3247
    %v3249 = vpop.f32.mrf.mxu0
    %v3250 = vadd.f32 %v3236, %v3249
    %3251 = vdwg.mxu0
    %3252 = vmatpush.bf16.msra.mxu0 %v2136
    %3253 = vmatpush.bf16.msra.mxu0 %v2128
    %3254 = vmatpush.bf16.msra.mxu0 %v2120
    %3255 = vmatpush.bf16.msra.mxu0 %v2112
    %3256 = vmatpush.bf16.msra.mxu0 %v2104
    %3257 = vmatpush.bf16.msra.mxu0 %v2096
    %3258 = vmatpush.bf16.msra.mxu0 %v2088
    %3259 = vmatpush.bf16.msra.mxu0 %v2080
    %3260 = vmatmul.bf16.gmra.mxu0 %v207
    %v3261 = vpop.f32.mrf.mxu0
    %v3262 = vadd.f32 %v3248, %v3261
    %v3263 = vpop.f32.mrf.mxu0
    %v3264 = vadd.f32 %v3250, %v3263
    %3265 = vdwg.mxu0
    %3266 = vmatpush.bf16.msra.mxu0 %v2200
    %3267 = vmatpush.bf16.msra.mxu0 %v2192
    %3268 = vmatpush.bf16.msra.mxu0 %v2184
    %3269 = vmatpush.bf16.msra.mxu0 %v2176
    %3270 = vmatpush.bf16.msra.mxu0 %v2168
    %3271 = vmatpush.bf16.msra.mxu0 %v2160
    %3272 = vmatpush.bf16.msra.mxu0 %v2152
    %3273 = vmatpush.bf16.msra.mxu0 %v2144
    %3274 = vmatmul.bf16.gmra.mxu0 %v208
    %v3275 = vpop.f32.mrf.mxu0
    %v3276 = vadd.f32 %v3262, %v3275
    %v3277 = vpop.f32.mrf.mxu0
    %v3278 = vadd.f32 %v3264, %v3277
    %3279 = vdwg.mxu0
    %3280 = vmatpush.bf16.msra.mxu0 %v2264
    %3281 = vmatpush.bf16.msra.mxu0 %v2256
    %3282 = vmatpush.bf16.msra.mxu0 %v2248
    %3283 = vmatpush.bf16.msra.mxu0 %v2240
    %3284 = vmatpush.bf16.msra.mxu0 %v2232
    %3285 = vmatpush.bf16.msra.mxu0 %v2224
    %3286 = vmatpush.bf16.msra.mxu0 %v2216
    %3287 = vmatpush.bf16.msra.mxu0 %v2208
    %3288 = vmatmul.bf16.gmra.mxu0 %v209
    %v3289 = vpop.f32.mrf.mxu0
    %v3290 = vadd.f32 %v3276, %v3289
    %v3291 = vpop.f32.mrf.mxu0
    %v3292 = vadd.f32 %v3278, %v3291
    %3293 = vdwg.mxu0
    %3294 = vmatpush.bf16.msra.mxu0 %v2328
    %3295 = vmatpush.bf16.msra.mxu0 %v2320
    %3296 = vmatpush.bf16.msra.mxu0 %v2312
    %3297 = vmatpush.bf16.msra.mxu0 %v2304
    %3298 = vmatpush.bf16.msra.mxu0 %v2296
    %3299 = vmatpush.bf16.msra.mxu0 %v2288
    %3300 = vmatpush.bf16.msra.mxu0 %v2280
    %3301 = vmatpush.bf16.msra.mxu0 %v2272
    %3302 = vmatmul.bf16.gmra.mxu0 %v210
    %v3303 = vpop.f32.mrf.mxu0
    %v3304 = vadd.f32 %v3290, %v3303
    %v3305 = vpop.f32.mrf.mxu0
    %v3306 = vadd.f32 %v3292, %v3305
    %3307 = vdwg.mxu0
    %3308 = vmatpush.bf16.msra.mxu0 0
    %3309 = vmatpush.bf16.msra.mxu0 0
    %3310 = vmatpush.bf16.msra.mxu0 0
    %3311 = vmatpush.bf16.msra.mxu0 0
    %3312 = vmatpush.bf16.msra.mxu0 0
    %3313 = vmatpush.bf16.msra.mxu0 0
    %3314 = vmatpush.bf16.msra.mxu0 0
    %3315 = vmatpush.bf16.msra.mxu0 %v2336
    %3316 = vmatmul.bf16.gmra.mxu0 %v2732
    %v3317 = vpop.f32.mrf.mxu0
    %v3318 = vadd.f32 %v3304, %v3317
    %v3319 = vpop.f32.mrf.mxu0
    %v3320 = vadd.f32 %v3306, %v3319
    %3321 = vdwg.mxu0
    %3322 = vmatpush.bf16.msra.mxu0 %v2009
    %3323 = vmatpush.bf16.msra.mxu0 %v2001
    %3324 = vmatpush.bf16.msra.mxu0 %v1993
    %3325 = vmatpush.bf16.msra.mxu0 %v1985
    %3326 = vmatpush.bf16.msra.mxu0 %v1977
    %3327 = vmatpush.bf16.msra.mxu0 %v1969
    %3328 = vmatpush.bf16.msra.mxu0 %v1961
    %3329 = vmatpush.bf16.msra.mxu0 %v1953
    %3330 = vmatmul.bf16.gmra.mxu0 %v205
    %v3331 = vpop.f32.mrf.mxu0
    %v3332 = vadd.f32 %v753, %v3331
    %v3333 = vpop.f32.mrf.mxu0
    %v3334 = vadd.f32 %v755, %v3333
    %3335 = vdwg.mxu0
    %3336 = vmatpush.bf16.msra.mxu0 %v2073
    %3337 = vmatpush.bf16.msra.mxu0 %v2065
    %3338 = vmatpush.bf16.msra.mxu0 %v2057
    %3339 = vmatpush.bf16.msra.mxu0 %v2049
    %3340 = vmatpush.bf16.msra.mxu0 %v2041
    %3341 = vmatpush.bf16.msra.mxu0 %v2033
    %3342 = vmatpush.bf16.msra.mxu0 %v2025
    %3343 = vmatpush.bf16.msra.mxu0 %v2017
    %3344 = vmatmul.bf16.gmra.mxu0 %v206
    %v3345 = vpop.f32.mrf.mxu0
    %v3346 = vadd.f32 %v3332, %v3345
    %v3347 = vpop.f32.mrf.mxu0
    %v3348 = vadd.f32 %v3334, %v3347
    %3349 = vdwg.mxu0
    %3350 = vmatpush.bf16.msra.mxu0 %v2137
    %3351 = vmatpush.bf16.msra.mxu0 %v2129
    %3352 = vmatpush.bf16.msra.mxu0 %v2121
    %3353 = vmatpush.bf16.msra.mxu0 %v2113
    %3354 = vmatpush.bf16.msra.mxu0 %v2105
    %3355 = vmatpush.bf16.msra.mxu0 %v2097
    %3356 = vmatpush.bf16.msra.mxu0 %v2089
    %3357 = vmatpush.bf16.msra.mxu0 %v2081
    %3358 = vmatmul.bf16.gmra.mxu0 %v207
    %v3359 = vpop.f32.mrf.mxu0
    %v3360 = vadd.f32 %v3346, %v3359
    %v3361 = vpop.f32.mrf.mxu0
    %v3362 = vadd.f32 %v3348, %v3361
    %3363 = vdwg.mxu0
    %3364 = vmatpush.bf16.msra.mxu0 %v2201
    %3365 = vmatpush.bf16.msra.mxu0 %v2193
    %3366 = vmatpush.bf16.msra.mxu0 %v2185
    %3367 = vmatpush.bf16.msra.mxu0 %v2177
    %3368 = vmatpush.bf16.msra.mxu0 %v2169
    %3369 = vmatpush.bf16.msra.mxu0 %v2161
    %3370 = vmatpush.bf16.msra.mxu0 %v2153
    %3371 = vmatpush.bf16.msra.mxu0 %v2145
    %3372 = vmatmul.bf16.gmra.mxu0 %v208
    %v3373 = vpop.f32.mrf.mxu0
    %v3374 = vadd.f32 %v3360, %v3373
    %v3375 = vpop.f32.mrf.mxu0
    %v3376 = vadd.f32 %v3362, %v3375
    %3377 = vdwg.mxu0
    %3378 = vmatpush.bf16.msra.mxu0 %v2265
    %3379 = vmatpush.bf16.msra.mxu0 %v2257
    %3380 = vmatpush.bf16.msra.mxu0 %v2249
    %3381 = vmatpush.bf16.msra.mxu0 %v2241
    %3382 = vmatpush.bf16.msra.mxu0 %v2233
    %3383 = vmatpush.bf16.msra.mxu0 %v2225
    %3384 = vmatpush.bf16.msra.mxu0 %v2217
    %3385 = vmatpush.bf16.msra.mxu0 %v2209
    %3386 = vmatmul.bf16.gmra.mxu0 %v209
    %v3387 = vpop.f32.mrf.mxu0
    %v3388 = vadd.f32 %v3374, %v3387
    %v3389 = vpop.f32.mrf.mxu0
    %v3390 = vadd.f32 %v3376, %v3389
    %3391 = vdwg.mxu0
    %3392 = vmatpush.bf16.msra.mxu0 %v2329
    %3393 = vmatpush.bf16.msra.mxu0 %v2321
    %3394 = vmatpush.bf16.msra.mxu0 %v2313
    %3395 = vmatpush.bf16.msra.mxu0 %v2305
    %3396 = vmatpush.bf16.msra.mxu0 %v2297
    %3397 = vmatpush.bf16.msra.mxu0 %v2289
    %3398 = vmatpush.bf16.msra.mxu0 %v2281
    %3399 = vmatpush.bf16.msra.mxu0 %v2273
    %3400 = vmatmul.bf16.gmra.mxu0 %v210
    %v3401 = vpop.f32.mrf.mxu0
    %v3402 = vadd.f32 %v3388, %v3401
    %v3403 = vpop.f32.mrf.mxu0
    %v3404 = vadd.f32 %v3390, %v3403
    %3405 = vdwg.mxu0
    %3406 = vmatpush.bf16.msra.mxu0 0
    %3407 = vmatpush.bf16.msra.mxu0 0
    %3408 = vmatpush.bf16.msra.mxu0 0
    %3409 = vmatpush.bf16.msra.mxu0 0
    %3410 = vmatpush.bf16.msra.mxu0 0
    %3411 = vmatpush.bf16.msra.mxu0 0
    %3412 = vmatpush.bf16.msra.mxu0 0
    %3413 = vmatpush.bf16.msra.mxu0 %v2337
    %3414 = vmatmul.bf16.gmra.mxu0 %v2732
    %v3415 = vpop.f32.mrf.mxu0
    %v3416 = vadd.f32 %v3402, %v3415
    %v3417 = vpop.f32.mrf.mxu0
    %v3418 = vadd.f32 %v3404, %v3417
    %3419 = vdwg.mxu0
    %3420 = vmatpush.bf16.msra.mxu0 %v2010
    %3421 = vmatpush.bf16.msra.mxu0 %v2002
    %3422 = vmatpush.bf16.msra.mxu0 %v1994
    %3423 = vmatpush.bf16.msra.mxu0 %v1986
    %3424 = vmatpush.bf16.msra.mxu0 %v1978
    %3425 = vmatpush.bf16.msra.mxu0 %v1970
    %3426 = vmatpush.bf16.msra.mxu0 %v1962
    %3427 = vmatpush.bf16.msra.mxu0 %v1954
    %3428 = vmatmul.bf16.gmra.mxu0 %v205
    %v3429 = vpop.f32.mrf.mxu0
    %v3430 = vadd.f32 %v767, %v3429
    %v3431 = vpop.f32.mrf.mxu0
    %v3432 = vadd.f32 %v769, %v3431
    %3433 = vdwg.mxu0
    %3434 = vmatpush.bf16.msra.mxu0 %v2074
    %3435 = vmatpush.bf16.msra.mxu0 %v2066
    %3436 = vmatpush.bf16.msra.mxu0 %v2058
    %3437 = vmatpush.bf16.msra.mxu0 %v2050
    %3438 = vmatpush.bf16.msra.mxu0 %v2042
    %3439 = vmatpush.bf16.msra.mxu0 %v2034
    %3440 = vmatpush.bf16.msra.mxu0 %v2026
    %3441 = vmatpush.bf16.msra.mxu0 %v2018
    %3442 = vmatmul.bf16.gmra.mxu0 %v206
    %v3443 = vpop.f32.mrf.mxu0
    %v3444 = vadd.f32 %v3430, %v3443
    %v3445 = vpop.f32.mrf.mxu0
    %v3446 = vadd.f32 %v3432, %v3445
    %3447 = vdwg.mxu0
    %3448 = vmatpush.bf16.msra.mxu0 %v2138
    %3449 = vmatpush.bf16.msra.mxu0 %v2130
    %3450 = vmatpush.bf16.msra.mxu0 %v2122
    %3451 = vmatpush.bf16.msra.mxu0 %v2114
    %3452 = vmatpush.bf16.msra.mxu0 %v2106
    %3453 = vmatpush.bf16.msra.mxu0 %v2098
    %3454 = vmatpush.bf16.msra.mxu0 %v2090
    %3455 = vmatpush.bf16.msra.mxu0 %v2082
    %3456 = vmatmul.bf16.gmra.mxu0 %v207
    %v3457 = vpop.f32.mrf.mxu0
    %v3458 = vadd.f32 %v3444, %v3457
    %v3459 = vpop.f32.mrf.mxu0
    %v3460 = vadd.f32 %v3446, %v3459
    %3461 = vdwg.mxu0
    %3462 = vmatpush.bf16.msra.mxu0 %v2202
    %3463 = vmatpush.bf16.msra.mxu0 %v2194
    %3464 = vmatpush.bf16.msra.mxu0 %v2186
    %3465 = vmatpush.bf16.msra.mxu0 %v2178
    %3466 = vmatpush.bf16.msra.mxu0 %v2170
    %3467 = vmatpush.bf16.msra.mxu0 %v2162
    %3468 = vmatpush.bf16.msra.mxu0 %v2154
    %3469 = vmatpush.bf16.msra.mxu0 %v2146
    %3470 = vmatmul.bf16.gmra.mxu0 %v208
    %v3471 = vpop.f32.mrf.mxu0
    %v3472 = vadd.f32 %v3458, %v3471
    %v3473 = vpop.f32.mrf.mxu0
    %v3474 = vadd.f32 %v3460, %v3473
    %3475 = vdwg.mxu0
    %3476 = vmatpush.bf16.msra.mxu0 %v2266
    %3477 = vmatpush.bf16.msra.mxu0 %v2258
    %3478 = vmatpush.bf16.msra.mxu0 %v2250
    %3479 = vmatpush.bf16.msra.mxu0 %v2242
    %3480 = vmatpush.bf16.msra.mxu0 %v2234
    %3481 = vmatpush.bf16.msra.mxu0 %v2226
    %3482 = vmatpush.bf16.msra.mxu0 %v2218
    %3483 = vmatpush.bf16.msra.mxu0 %v2210
    %3484 = vmatmul.bf16.gmra.mxu0 %v209
    %v3485 = vpop.f32.mrf.mxu0
    %v3486 = vadd.f32 %v3472, %v3485
    %v3487 = vpop.f32.mrf.mxu0
    %v3488 = vadd.f32 %v3474, %v3487
    %3489 = vdwg.mxu0
    %3490 = vmatpush.bf16.msra.mxu0 %v2330
    %3491 = vmatpush.bf16.msra.mxu0 %v2322
    %3492 = vmatpush.bf16.msra.mxu0 %v2314
    %3493 = vmatpush.bf16.msra.mxu0 %v2306
    %3494 = vmatpush.bf16.msra.mxu0 %v2298
    %3495 = vmatpush.bf16.msra.mxu0 %v2290
    %3496 = vmatpush.bf16.msra.mxu0 %v2282
    %3497 = vmatpush.bf16.msra.mxu0 %v2274
    %3498 = vmatmul.bf16.gmra.mxu0 %v210
    %v3499 = vpop.f32.mrf.mxu0
    %v3500 = vadd.f32 %v3486, %v3499
    %v3501 = vpop.f32.mrf.mxu0
    %v3502 = vadd.f32 %v3488, %v3501
    %3503 = vdwg.mxu0
    %3504 = vmatpush.bf16.msra.mxu0 0
    %3505 = vmatpush.bf16.msra.mxu0 0
    %3506 = vmatpush.bf16.msra.mxu0 0
    %3507 = vmatpush.bf16.msra.mxu0 0
    %3508 = vmatpush.bf16.msra.mxu0 0
    %3509 = vmatpush.bf16.msra.mxu0 0
    %3510 = vmatpush.bf16.msra.mxu0 0
    %3511 = vmatpush.bf16.msra.mxu0 %v2338
    %3512 = vmatmul.bf16.gmra.mxu0 %v2732
    %v3513 = vpop.f32.mrf.mxu0
    %v3514 = vadd.f32 %v3500, %v3513
    %v3515 = vpop.f32.mrf.mxu0
    %v3516 = vadd.f32 %v3502, %v3515
    %3517 = vdwg.mxu0
    %v3518 = vld [vmem:[#allocation11] sm:$0xff]
    %v3520 = vperm.slane %v3518, 0
    %v3521 = vperm.slane %v3518, 1
    %v3522 = vperm.slane %v3518, 2
    %v3523 = vperm.slane %v3518, 3
    %v3524 = vperm.slane %v3518, 4
    %v3525 = vperm.slane %v3518, 5
    %v3526 = vperm.slane %v3518, 6
    %v3527 = vperm.slane %v3518, 7
    %v3536 = vadd.f32 %v2828, %v3520
    %v3537 = vadd.f32 %v2926, %v3521
    %v3538 = vadd.f32 %v3024, %v3522
    %v3539 = vadd.f32 %v3122, %v3523
    %v3540 = vadd.f32 %v3220, %v3524
    %v3541 = vadd.f32 %v3318, %v3525
    %v3542 = vadd.f32 %v3416, %v3526
    %v3543 = vadd.f32 %v3514, %v3527
    %v3544 = vadd.f32 %v2830, %v3520
    %v3545 = vadd.f32 %v2928, %v3521
    %v3546 = vadd.f32 %v3026, %v3522
    %v3547 = vadd.f32 %v3124, %v3523
    %v3548 = vadd.f32 %v3222, %v3524
    %v3549 = vadd.f32 %v3320, %v3525
    %v3550 = vadd.f32 %v3418, %v3526
    %v3551 = vadd.f32 %v3516, %v3527
    %vm3552 = vcmp.gt.f32.partialorder %v3536, 0.0
    %vm3553 = vcmp.gt.f32.partialorder %v3537, 0.0
    %vm3554 = vcmp.gt.f32.partialorder %v3538, 0.0
    %vm3555 = vcmp.gt.f32.partialorder %v3539, 0.0
    %vm3556 = vcmp.gt.f32.partialorder %v3540, 0.0
    %vm3557 = vcmp.gt.f32.partialorder %v3541, 0.0
    %vm3558 = vcmp.gt.f32.partialorder %v3542, 0.0
    %vm3559 = vcmp.gt.f32.partialorder %v3543, 0.0
    %vm3560 = vcmp.gt.f32.partialorder %v3544, 0.0
    %vm3561 = vcmp.gt.f32.partialorder %v3545, 0.0
    %vm3562 = vcmp.gt.f32.partialorder %v3546, 0.0
    %vm3563 = vcmp.gt.f32.partialorder %v3547, 0.0
    %vm3564 = vcmp.gt.f32.partialorder %v3548, 0.0
    %vm3565 = vcmp.gt.f32.partialorder %v3549, 0.0
    %vm3566 = vcmp.gt.f32.partialorder %v3550, 0.0
    %vm3567 = vcmp.gt.f32.partialorder %v3551, 0.0
    %v3568 = vmul.f32 %v3536, 0.2
    %v3569 = vmul.f32 %v3537, 0.2
    %v3570 = vmul.f32 %v3538, 0.2
    %v3571 = vmul.f32 %v3539, 0.2
    %v3572 = vmul.f32 %v3540, 0.2
    %v3573 = vmul.f32 %v3541, 0.2
    %v3574 = vmul.f32 %v3542, 0.2
    %v3575 = vmul.f32 %v3543, 0.2
    %v3576 = vmul.f32 %v3544, 0.2
    %v3577 = vmul.f32 %v3545, 0.2
    %v3578 = vmul.f32 %v3546, 0.2
    %v3579 = vmul.f32 %v3547, 0.2
    %v3580 = vmul.f32 %v3548, 0.2
    %v3581 = vmul.f32 %v3549, 0.2
    %v3582 = vmul.f32 %v3550, 0.2
    %v3583 = vmul.f32 %v3551, 0.2
    %v3584 = vsel %vm3552, %v3536, %v3568
    %v3585 = vsel %vm3553, %v3537, %v3569
    %v3586 = vsel %vm3554, %v3538, %v3570
    %v3587 = vsel %vm3555, %v3539, %v3571
    %v3588 = vsel %vm3556, %v3540, %v3572
    %v3589 = vsel %vm3557, %v3541, %v3573
    %v3590 = vsel %vm3558, %v3542, %v3574
    %v3591 = vsel %vm3559, %v3543, %v3575
    %v3592 = vsel %vm3560, %v3544, %v3576
    %v3593 = vsel %vm3561, %v3545, %v3577
    %v3594 = vsel %vm3562, %v3546, %v3578
    %v3595 = vsel %vm3563, %v3547, %v3579
    %v3596 = vsel %vm3564, %v3548, %v3580
    %v3597 = vsel %vm3565, %v3549, %v3581
    %v3598 = vsel %vm3566, %v3550, %v3582
    %v3599 = vsel %vm3567, %v3551, %v3583
    %v3600 = vpack.c.bf16 %v3592, %v3584
    %v3601 = vpack.c.bf16 %v3593, %v3585
    %v3602 = vpack.c.bf16 %v3594, %v3586
    %v3603 = vpack.c.bf16 %v3595, %v3587
    %v3604 = vpack.c.bf16 %v3596, %v3588
    %v3605 = vpack.c.bf16 %v3597, %v3589
    %v3606 = vpack.c.bf16 %v3598, %v3590
    %v3607 = vpack.c.bf16 %v3599, %v3591
    %v3608 = vld [vmem:[#allocation12] sm:$0xff]
    %v3609 = vld [vmem:[#allocation12 + $0x8] sm:$0xff]
    %v3610 = vld [vmem:[#allocation12 + $0x10] sm:$0xff]
    %v3611 = vld [vmem:[#allocation12 + $0x18] sm:$0xff]
    %v3612 = vld [vmem:[#allocation12 + $0x20] sm:$0xff]
    %v3613 = vld [vmem:[#allocation12 + $0x28] sm:$0xff]
    %v3614 = vld [vmem:[#allocation12 + $0x30] sm:$0xff]
    %v3615 = vld [vmem:[#allocation12 + $0x38] sm:$0xff]
    %v3616 = vld [vmem:[#allocation12 + $0x40] sm:$0xff]
    %v3617 = vld [vmem:[#allocation12 + $0x48] sm:$0xff]
    %v3618 = vld [vmem:[#allocation12 + $0x50] sm:$0xff]
    %v3619 = vld [vmem:[#allocation12 + $0x58] sm:$0xff]
    %v3620 = vld [vmem:[#allocation12 + $0x60] sm:$0xff]
    %v3621 = vld [vmem:[#allocation12 + $0x68] sm:$0xff]
    %v3622 = vld [vmem:[#allocation12 + $0x70] sm:$0xff]
    %v3623 = vld [vmem:[#allocation12 + $0x78] sm:$0xff]
    %v3624 = vld [vmem:[#allocation12 + $0x80] sm:$0xff]
    %v3625 = vld [vmem:[#allocation12 + $0x88] sm:$0xff]
    %v3626 = vld [vmem:[#allocation12 + $0x90] sm:$0xff]
    %v3627 = vld [vmem:[#allocation12 + $0x98] sm:$0xff]
    %v3628 = vld [vmem:[#allocation12 + $0xa0] sm:$0xff]
    %v3629 = vld [vmem:[#allocation12 + $0xa8] sm:$0xff]
    %v3630 = vld [vmem:[#allocation12 + $0xb0] sm:$0xff]
    %v3631 = vld [vmem:[#allocation12 + $0xb8] sm:$0xff]
    %v3632 = vld [vmem:[#allocation12 + $0xc0] sm:$0xff]
    %v3633 = vld [vmem:[#allocation12 + $0xc8] sm:$0xff]
    %v3634 = vld [vmem:[#allocation12 + $0xd0] sm:$0xff]
    %v3635 = vld [vmem:[#allocation12 + $0xd8] sm:$0xff]
    %v3636 = vld [vmem:[#allocation12 + $0xe0] sm:$0xff]
    %v3637 = vld [vmem:[#allocation12 + $0xe8] sm:$0xff]
    %v3638 = vld [vmem:[#allocation12 + $0xf0] sm:$0xff]
    %v3639 = vld [vmem:[#allocation12 + $0xf8] sm:$0xff]
    %v3640 = vld [vmem:[#allocation12 + $0x100] sm:$0xff]
    %v3641 = vld [vmem:[#allocation12 + $0x108] sm:$0xff]
    %v3642 = vld [vmem:[#allocation12 + $0x110] sm:$0xff]
    %v3643 = vld [vmem:[#allocation12 + $0x118] sm:$0xff]
    %v3644 = vld [vmem:[#allocation12 + $0x120] sm:$0xff]
    %v3645 = vld [vmem:[#allocation12 + $0x128] sm:$0xff]
    %v3646 = vld [vmem:[#allocation12 + $0x130] sm:$0xff]
    %v3647 = vld [vmem:[#allocation12 + $0x138] sm:$0xff]
    %v3648 = vld [vmem:[#allocation12 + $0x140] sm:$0xff]
    %v3649 = vld [vmem:[#allocation12 + $0x148] sm:$0xff]
    %v3650 = vld [vmem:[#allocation12 + $0x150] sm:$0xff]
    %v3651 = vld [vmem:[#allocation12 + $0x158] sm:$0xff]
    %v3652 = vld [vmem:[#allocation12 + $0x160] sm:$0xff]
    %v3653 = vld [vmem:[#allocation12 + $0x168] sm:$0xff]
    %v3654 = vld [vmem:[#allocation12 + $0x170] sm:$0xff]
    %v3655 = vld [vmem:[#allocation12 + $0x178] sm:$0xff]
    %v3656 = vld [vmem:[#allocation12 + $0x180] sm:$0xff]
    %v3657 = vld [vmem:[#allocation12 + $0x188] sm:$0xff]
    %v3658 = vld [vmem:[#allocation12 + $0x190] sm:$0xff]
    %v3659 = vld [vmem:[#allocation12 + $0x198] sm:$0xff]
    %v3660 = vld [vmem:[#allocation12 + $0x1a0] sm:$0xff]
    %v3661 = vld [vmem:[#allocation12 + $0x1a8] sm:$0xff]
    %v3662 = vld [vmem:[#allocation12 + $0x1b0] sm:$0xff]
    %v3663 = vld [vmem:[#allocation12 + $0x1b8] sm:$0xff]
    %v3664 = vld [vmem:[#allocation12 + $0x1c0] sm:$0xff]
    %v3665 = vld [vmem:[#allocation12 + $0x1c8] sm:$0xff]
    %v3666 = vld [vmem:[#allocation12 + $0x1d0] sm:$0xff]
    %v3667 = vld [vmem:[#allocation12 + $0x1d8] sm:$0xff]
    %v3668 = vld [vmem:[#allocation12 + $0x1e0] sm:$0xff]
    %v3669 = vld [vmem:[#allocation12 + $0x1e8] sm:$0xff]
    %v3670 = vld [vmem:[#allocation12 + $0x1f0] sm:$0xff]
    %v3671 = vld [vmem:[#allocation12 + $0x1f8] sm:$0xff]
    %v3672 = vld [vmem:[#allocation12 + $0x200] sm:$0xff]
    %v3673 = vld [vmem:[#allocation12 + $0x208] sm:$0xff]
    %v3674 = vld [vmem:[#allocation12 + $0x210] sm:$0xff]
    %v3675 = vld [vmem:[#allocation12 + $0x218] sm:$0xff]
    %v3676 = vld [vmem:[#allocation12 + $0x220] sm:$0xff]
    %v3677 = vld [vmem:[#allocation12 + $0x228] sm:$0xff]
    %v3678 = vld [vmem:[#allocation12 + $0x230] sm:$0xff]
    %v3679 = vld [vmem:[#allocation12 + $0x238] sm:$0xff]
    %v3680 = vld [vmem:[#allocation12 + $0x240] sm:$0xff]
    %v3681 = vld [vmem:[#allocation12 + $0x248] sm:$0xff]
    %v3682 = vld [vmem:[#allocation12 + $0x250] sm:$0xff]
    %v3683 = vld [vmem:[#allocation12 + $0x258] sm:$0xff]
    %v3684 = vld [vmem:[#allocation12 + $0x260] sm:$0xff]
    %v3685 = vld [vmem:[#allocation12 + $0x268] sm:$0xff]
    %v3686 = vld [vmem:[#allocation12 + $0x270] sm:$0xff]
    %v3687 = vld [vmem:[#allocation12 + $0x278] sm:$0xff]
    %v3688 = vld [vmem:[#allocation12 + $0x280] sm:$0xff]
    %v3689 = vld [vmem:[#allocation12 + $0x288] sm:$0xff]
    %v3690 = vld [vmem:[#allocation12 + $0x290] sm:$0xff]
    %v3691 = vld [vmem:[#allocation12 + $0x298] sm:$0xff]
    %v3692 = vld [vmem:[#allocation12 + $0x2a0] sm:$0xff]
    %v3693 = vld [vmem:[#allocation12 + $0x2a8] sm:$0xff]
    %v3694 = vld [vmem:[#allocation12 + $0x2b0] sm:$0xff]
    %v3695 = vld [vmem:[#allocation12 + $0x2b8] sm:$0xff]
    %v3696 = vld [vmem:[#allocation12 + $0x2c0] sm:$0xff]
    %v3697 = vld [vmem:[#allocation12 + $0x2c8] sm:$0xff]
    %v3698 = vld [vmem:[#allocation12 + $0x2d0] sm:$0xff]
    %v3699 = vld [vmem:[#allocation12 + $0x2d8] sm:$0xff]
    %v3700 = vld [vmem:[#allocation12 + $0x2e0] sm:$0xff]
    %v3701 = vld [vmem:[#allocation12 + $0x2e8] sm:$0xff]
    %v3702 = vld [vmem:[#allocation12 + $0x2f0] sm:$0xff]
    %v3703 = vld [vmem:[#allocation12 + $0x2f8] sm:$0xff]
    %v3704 = vld [vmem:[#allocation12 + $0x300] sm:$0xff]
    %v3705 = vld [vmem:[#allocation12 + $0x308] sm:$0xff]
    %v3706 = vld [vmem:[#allocation12 + $0x310] sm:$0xff]
    %v3707 = vld [vmem:[#allocation12 + $0x318] sm:$0xff]
    %v3708 = vld [vmem:[#allocation12 + $0x320] sm:$0xff]
    %v3709 = vld [vmem:[#allocation12 + $0x328] sm:$0xff]
    %v3710 = vld [vmem:[#allocation12 + $0x330] sm:$0xff]
    %v3711 = vld [vmem:[#allocation12 + $0x338] sm:$0xff]
    %v3712 = vld [vmem:[#allocation12 + $0x340] sm:$0xff]
    %v3713 = vld [vmem:[#allocation12 + $0x348] sm:$0xff]
    %v3714 = vld [vmem:[#allocation12 + $0x350] sm:$0xff]
    %v3715 = vld [vmem:[#allocation12 + $0x358] sm:$0xff]
    %v3716 = vld [vmem:[#allocation12 + $0x360] sm:$0xff]
    %v3717 = vld [vmem:[#allocation12 + $0x368] sm:$0xff]
    %v3718 = vld [vmem:[#allocation12 + $0x370] sm:$0xff]
    %v3719 = vld [vmem:[#allocation12 + $0x378] sm:$0xff]
    %v3720 = vld [vmem:[#allocation12 + $0x380] sm:$0xff]
    %v3721 = vld [vmem:[#allocation12 + $0x388] sm:$0xff]
    %v3722 = vld [vmem:[#allocation12 + $0x390] sm:$0xff]
    %v3723 = vld [vmem:[#allocation12 + $0x398] sm:$0xff]
    %v3724 = vld [vmem:[#allocation12 + $0x3a0] sm:$0xff]
    %v3725 = vld [vmem:[#allocation12 + $0x3a8] sm:$0xff]
    %v3726 = vld [vmem:[#allocation12 + $0x3b0] sm:$0xff]
    %v3727 = vld [vmem:[#allocation12 + $0x3b8] sm:$0xff]
    %v3728 = vld [vmem:[#allocation12 + $0x3c0] sm:$0xff]
    %v3729 = vld [vmem:[#allocation12 + $0x3c8] sm:$0xff]
    %v3730 = vld [vmem:[#allocation12 + $0x3d0] sm:$0xff]
    %v3731 = vld [vmem:[#allocation12 + $0x3d8] sm:$0xff]
    %v3732 = vld [vmem:[#allocation12 + $0x3e0] sm:$0xff]
    %v3733 = vld [vmem:[#allocation12 + $0x3e8] sm:$0xff]
    %v3734 = vld [vmem:[#allocation12 + $0x3f0] sm:$0xff]
    %v3735 = vld [vmem:[#allocation12 + $0x3f8] sm:$0xff]
    %v3736 = vld [vmem:[#allocation12 + $0x400] sm:$0xff]
    %v3737 = vld [vmem:[#allocation12 + $0x408] sm:$0xff]
    %v3738 = vld [vmem:[#allocation12 + $0x410] sm:$0xff]
    %v3739 = vld [vmem:[#allocation12 + $0x418] sm:$0xff]
    %v3740 = vld [vmem:[#allocation12 + $0x420] sm:$0xff]
    %v3741 = vld [vmem:[#allocation12 + $0x428] sm:$0xff]
    %v3742 = vld [vmem:[#allocation12 + $0x430] sm:$0xff]
    %v3743 = vld [vmem:[#allocation12 + $0x438] sm:$0xff]
    %v3744 = vld [vmem:[#allocation12 + $0x440] sm:$0xff]
    %v3745 = vld [vmem:[#allocation12 + $0x448] sm:$0xff]
    %v3746 = vld [vmem:[#allocation12 + $0x450] sm:$0xff]
    %v3747 = vld [vmem:[#allocation12 + $0x458] sm:$0xff]
    %v3748 = vld [vmem:[#allocation12 + $0x460] sm:$0xff]
    %v3749 = vld [vmem:[#allocation12 + $0x468] sm:$0xff]
    %v3750 = vld [vmem:[#allocation12 + $0x470] sm:$0xff]
    %v3751 = vld [vmem:[#allocation12 + $0x478] sm:$0xff]
    %v3752 = vld [vmem:[#allocation12 + $0x480] sm:$0xff]
    %v3753 = vld [vmem:[#allocation12 + $0x488] sm:$0xff]
    %v3754 = vld [vmem:[#allocation12 + $0x490] sm:$0xff]
    %v3755 = vld [vmem:[#allocation12 + $0x498] sm:$0xff]
    %v3756 = vld [vmem:[#allocation12 + $0x4a0] sm:$0xff]
    %v3757 = vld [vmem:[#allocation12 + $0x4a8] sm:$0xff]
    %v3758 = vld [vmem:[#allocation12 + $0x4b0] sm:$0xff]
    %v3759 = vld [vmem:[#allocation12 + $0x4b8] sm:$0xff]
    %v3760 = vld [vmem:[#allocation12 + $0x4c0] sm:$0xff]
    %v3761 = vld [vmem:[#allocation12 + $0x4c8] sm:$0xff]
    %v3762 = vld [vmem:[#allocation12 + $0x4d0] sm:$0xff]
    %v3763 = vld [vmem:[#allocation12 + $0x4d8] sm:$0xff]
    %v3764 = vld [vmem:[#allocation12 + $0x4e0] sm:$0xff]
    %v3765 = vld [vmem:[#allocation12 + $0x4e8] sm:$0xff]
    %v3766 = vld [vmem:[#allocation12 + $0x4f0] sm:$0xff]
    %v3767 = vld [vmem:[#allocation12 + $0x4f8] sm:$0xff]
    %v3768 = vld [vmem:[#allocation12 + $0x500] sm:$0xff]
    %v3769 = vld [vmem:[#allocation12 + $0x508] sm:$0xff]
    %v3770 = vld [vmem:[#allocation12 + $0x510] sm:$0xff]
    %v3771 = vld [vmem:[#allocation12 + $0x518] sm:$0xff]
    %v3772 = vld [vmem:[#allocation12 + $0x520] sm:$0xff]
    %v3773 = vld [vmem:[#allocation12 + $0x528] sm:$0xff]
    %v3774 = vld [vmem:[#allocation12 + $0x530] sm:$0xff]
    %v3775 = vld [vmem:[#allocation12 + $0x538] sm:$0xff]
    %v3776 = vld [vmem:[#allocation12 + $0x540] sm:$0xff]
    %v3777 = vld [vmem:[#allocation12 + $0x548] sm:$0xff]
    %v3778 = vld [vmem:[#allocation12 + $0x550] sm:$0xff]
    %v3779 = vld [vmem:[#allocation12 + $0x558] sm:$0xff]
    %v3780 = vld [vmem:[#allocation12 + $0x560] sm:$0xff]
    %v3781 = vld [vmem:[#allocation12 + $0x568] sm:$0xff]
    %v3782 = vld [vmem:[#allocation12 + $0x570] sm:$0xff]
    %v3783 = vld [vmem:[#allocation12 + $0x578] sm:$0xff]
    %v3784 = vld [vmem:[#allocation12 + $0x580] sm:$0xff]
    %v3785 = vld [vmem:[#allocation12 + $0x588] sm:$0xff]
    %v3786 = vld [vmem:[#allocation12 + $0x590] sm:$0xff]
    %v3787 = vld [vmem:[#allocation12 + $0x598] sm:$0xff]
    %v3788 = vld [vmem:[#allocation12 + $0x5a0] sm:$0xff]
    %v3789 = vld [vmem:[#allocation12 + $0x5a8] sm:$0xff]
    %v3790 = vld [vmem:[#allocation12 + $0x5b0] sm:$0xff]
    %v3791 = vld [vmem:[#allocation12 + $0x5b8] sm:$0xff]
    %v3792 = vld [vmem:[#allocation12 + $0x5c0] sm:$0xff]
    %v3793 = vld [vmem:[#allocation12 + $0x5c8] sm:$0xff]
    %v3794 = vld [vmem:[#allocation12 + $0x5d0] sm:$0xff]
    %v3795 = vld [vmem:[#allocation12 + $0x5d8] sm:$0xff]
    %v3796 = vld [vmem:[#allocation12 + $0x5e0] sm:$0xff]
    %v3797 = vld [vmem:[#allocation12 + $0x5e8] sm:$0xff]
    %v3798 = vld [vmem:[#allocation12 + $0x5f0] sm:$0xff]
    %v3799 = vld [vmem:[#allocation12 + $0x5f8] sm:$0xff]
    %v3800 = vld [vmem:[#allocation12 + $0x600] sm:$0xff]
    %v3801 = vld [vmem:[#allocation12 + $0x608] sm:$0xff]
    %v3802 = vld [vmem:[#allocation12 + $0x610] sm:$0xff]
    %v3803 = vld [vmem:[#allocation12 + $0x618] sm:$0xff]
    %v3804 = vld [vmem:[#allocation12 + $0x620] sm:$0xff]
    %v3805 = vld [vmem:[#allocation12 + $0x628] sm:$0xff]
    %v3806 = vld [vmem:[#allocation12 + $0x630] sm:$0xff]
    %v3807 = vld [vmem:[#allocation12 + $0x638] sm:$0xff]
    %v3808 = vld [vmem:[#allocation12 + $0x640] sm:$0xff]
    %v3809 = vld [vmem:[#allocation12 + $0x648] sm:$0xff]
    %v3810 = vld [vmem:[#allocation12 + $0x650] sm:$0xff]
    %v3811 = vld [vmem:[#allocation12 + $0x658] sm:$0xff]
    %v3812 = vld [vmem:[#allocation12 + $0x660] sm:$0xff]
    %v3813 = vld [vmem:[#allocation12 + $0x668] sm:$0xff]
    %v3814 = vld [vmem:[#allocation12 + $0x670] sm:$0xff]
    %v3815 = vld [vmem:[#allocation12 + $0x678] sm:$0xff]
    %v3816 = vld [vmem:[#allocation12 + $0x680] sm:$0xff]
    %v3817 = vld [vmem:[#allocation12 + $0x688] sm:$0xff]
    %v3818 = vld [vmem:[#allocation12 + $0x690] sm:$0xff]
    %v3819 = vld [vmem:[#allocation12 + $0x698] sm:$0xff]
    %v3820 = vld [vmem:[#allocation12 + $0x6a0] sm:$0xff]
    %v3821 = vld [vmem:[#allocation12 + $0x6a8] sm:$0xff]
    %v3822 = vld [vmem:[#allocation12 + $0x6b0] sm:$0xff]
    %v3823 = vld [vmem:[#allocation12 + $0x6b8] sm:$0xff]
    %v3824 = vld [vmem:[#allocation12 + $0x6c0] sm:$0xff]
    %v3825 = vld [vmem:[#allocation12 + $0x6c8] sm:$0xff]
    %v3826 = vld [vmem:[#allocation12 + $0x6d0] sm:$0xff]
    %v3827 = vld [vmem:[#allocation12 + $0x6d8] sm:$0xff]
    %v3828 = vld [vmem:[#allocation12 + $0x6e0] sm:$0xff]
    %v3829 = vld [vmem:[#allocation12 + $0x6e8] sm:$0xff]
    %v3830 = vld [vmem:[#allocation12 + $0x6f0] sm:$0xff]
    %v3831 = vld [vmem:[#allocation12 + $0x6f8] sm:$0xff]
    %v3832 = vld [vmem:[#allocation12 + $0x700] sm:$0xff]
    %v3833 = vld [vmem:[#allocation12 + $0x708] sm:$0xff]
    %v3834 = vld [vmem:[#allocation12 + $0x710] sm:$0xff]
    %v3835 = vld [vmem:[#allocation12 + $0x718] sm:$0xff]
    %v3836 = vld [vmem:[#allocation12 + $0x720] sm:$0xff]
    %v3837 = vld [vmem:[#allocation12 + $0x728] sm:$0xff]
    %v3838 = vld [vmem:[#allocation12 + $0x730] sm:$0xff]
    %v3839 = vld [vmem:[#allocation12 + $0x738] sm:$0xff]
    %v3840 = vld [vmem:[#allocation12 + $0x740] sm:$0xff]
    %v3841 = vld [vmem:[#allocation12 + $0x748] sm:$0xff]
    %v3842 = vld [vmem:[#allocation12 + $0x750] sm:$0xff]
    %v3843 = vld [vmem:[#allocation12 + $0x758] sm:$0xff]
    %v3844 = vld [vmem:[#allocation12 + $0x760] sm:$0xff]
    %v3845 = vld [vmem:[#allocation12 + $0x768] sm:$0xff]
    %v3846 = vld [vmem:[#allocation12 + $0x770] sm:$0xff]
    %v3847 = vld [vmem:[#allocation12 + $0x778] sm:$0xff]
    %v3848 = vld [vmem:[#allocation12 + $0x780] sm:$0xff]
    %v3849 = vld [vmem:[#allocation12 + $0x788] sm:$0xff]
    %v3850 = vld [vmem:[#allocation12 + $0x790] sm:$0xff]
    %v3851 = vld [vmem:[#allocation12 + $0x798] sm:$0xff]
    %v3852 = vld [vmem:[#allocation12 + $0x7a0] sm:$0xff]
    %v3853 = vld [vmem:[#allocation12 + $0x7a8] sm:$0xff]
    %v3854 = vld [vmem:[#allocation12 + $0x7b0] sm:$0xff]
    %v3855 = vld [vmem:[#allocation12 + $0x7b8] sm:$0xff]
    %v3856 = vld [vmem:[#allocation12 + $0x7c0] sm:$0xff]
    %v3857 = vld [vmem:[#allocation12 + $0x7c8] sm:$0xff]
    %v3858 = vld [vmem:[#allocation12 + $0x7d0] sm:$0xff]
    %v3859 = vld [vmem:[#allocation12 + $0x7d8] sm:$0xff]
    %v3860 = vld [vmem:[#allocation12 + $0x7e0] sm:$0xff]
    %v3861 = vld [vmem:[#allocation12 + $0x7e8] sm:$0xff]
    %v3862 = vld [vmem:[#allocation12 + $0x7f0] sm:$0xff]
    %v3863 = vld [vmem:[#allocation12 + $0x7f8] sm:$0xff]
    %v3864 = vld [vmem:[#allocation14] sm:$0xf]
    %v3866 = vperm.slane %v3864, 0
    %v3867 = vperm.slane %v3864, 1
    %v3868 = vperm.slane %v3864, 2
    %v3869 = vperm.slane %v3864, 3
    %v4130 = vunpack.c.l.b16 %v3608
    %v4131 = vunpack.c.h.b16 %v3608
    %v4132 = vunpack.c.l.b16 %v3609
    %v4133 = vunpack.c.h.b16 %v3609
    %v4134 = vunpack.c.l.b16 %v3610
    %v4135 = vunpack.c.h.b16 %v3610
    %v4136 = vunpack.c.l.b16 %v3611
    %v4137 = vunpack.c.h.b16 %v3611
    %v4138 = vunpack.c.l.b16 %v3612
    %v4139 = vunpack.c.h.b16 %v3612
    %v4140 = vunpack.c.l.b16 %v3613
    %v4141 = vunpack.c.h.b16 %v3613
    %v4142 = vunpack.c.l.b16 %v3614
    %v4143 = vunpack.c.h.b16 %v3614
    %v4144 = vunpack.c.l.b16 %v3615
    %v4145 = vunpack.c.h.b16 %v3615
    %v4146 = vunpack.c.l.b16 %v3616
    %v4147 = vunpack.c.h.b16 %v3616
    %v4148 = vunpack.c.l.b16 %v3617
    %v4149 = vunpack.c.h.b16 %v3617
    %v4150 = vunpack.c.l.b16 %v3618
    %v4151 = vunpack.c.h.b16 %v3618
    %v4152 = vunpack.c.l.b16 %v3619
    %v4153 = vunpack.c.h.b16 %v3619
    %v4154 = vunpack.c.l.b16 %v3620
    %v4155 = vunpack.c.h.b16 %v3620
    %v4156 = vunpack.c.l.b16 %v3621
    %v4157 = vunpack.c.h.b16 %v3621
    %v4158 = vunpack.c.l.b16 %v3622
    %v4159 = vunpack.c.h.b16 %v3622
    %v4160 = vunpack.c.l.b16 %v3623
    %v4161 = vunpack.c.h.b16 %v3623
    %v4162 = vunpack.c.l.b16 %v3624
    %v4163 = vunpack.c.h.b16 %v3624
    %v4164 = vunpack.c.l.b16 %v3625
    %v4165 = vunpack.c.h.b16 %v3625
    %v4166 = vunpack.c.l.b16 %v3626
    %v4167 = vunpack.c.h.b16 %v3626
    %v4168 = vunpack.c.l.b16 %v3627
    %v4169 = vunpack.c.h.b16 %v3627
    %v4170 = vunpack.c.l.b16 %v3628
    %v4171 = vunpack.c.h.b16 %v3628
    %v4172 = vunpack.c.l.b16 %v3629
    %v4173 = vunpack.c.h.b16 %v3629
    %v4174 = vunpack.c.l.b16 %v3630
    %v4175 = vunpack.c.h.b16 %v3630
    %v4176 = vunpack.c.l.b16 %v3631
    %v4177 = vunpack.c.h.b16 %v3631
    %v4178 = vunpack.c.l.b16 %v3632
    %v4179 = vunpack.c.h.b16 %v3632
    %v4180 = vunpack.c.l.b16 %v3633
    %v4181 = vunpack.c.h.b16 %v3633
    %v4182 = vunpack.c.l.b16 %v3634
    %v4183 = vunpack.c.h.b16 %v3634
    %v4184 = vunpack.c.l.b16 %v3635
    %v4185 = vunpack.c.h.b16 %v3635
    %v4186 = vunpack.c.l.b16 %v3636
    %v4187 = vunpack.c.h.b16 %v3636
    %v4188 = vunpack.c.l.b16 %v3637
    %v4189 = vunpack.c.h.b16 %v3637
    %v4190 = vunpack.c.l.b16 %v3638
    %v4191 = vunpack.c.h.b16 %v3638
    %v4192 = vunpack.c.l.b16 %v3639
    %v4193 = vunpack.c.h.b16 %v3639
    %v4194 = vunpack.c.l.b16 %v3640
    %v4195 = vunpack.c.h.b16 %v3640
    %v4196 = vunpack.c.l.b16 %v3641
    %v4197 = vunpack.c.h.b16 %v3641
    %v4198 = vunpack.c.l.b16 %v3642
    %v4199 = vunpack.c.h.b16 %v3642
    %v4200 = vunpack.c.l.b16 %v3643
    %v4201 = vunpack.c.h.b16 %v3643
    %v4202 = vunpack.c.l.b16 %v3644
    %v4203 = vunpack.c.h.b16 %v3644
    %v4204 = vunpack.c.l.b16 %v3645
    %v4205 = vunpack.c.h.b16 %v3645
    %v4206 = vunpack.c.l.b16 %v3646
    %v4207 = vunpack.c.h.b16 %v3646
    %v4208 = vunpack.c.l.b16 %v3647
    %v4209 = vunpack.c.h.b16 %v3647
    %v4210 = vunpack.c.l.b16 %v3648
    %v4211 = vunpack.c.h.b16 %v3648
    %v4212 = vunpack.c.l.b16 %v3649
    %v4213 = vunpack.c.h.b16 %v3649
    %v4214 = vunpack.c.l.b16 %v3650
    %v4215 = vunpack.c.h.b16 %v3650
    %v4216 = vunpack.c.l.b16 %v3651
    %v4217 = vunpack.c.h.b16 %v3651
    %v4218 = vunpack.c.l.b16 %v3652
    %v4219 = vunpack.c.h.b16 %v3652
    %v4220 = vunpack.c.l.b16 %v3653
    %v4221 = vunpack.c.h.b16 %v3653
    %v4222 = vunpack.c.l.b16 %v3654
    %v4223 = vunpack.c.h.b16 %v3654
    %v4224 = vunpack.c.l.b16 %v3655
    %v4225 = vunpack.c.h.b16 %v3655
    %v4226 = vunpack.c.l.b16 %v3656
    %v4227 = vunpack.c.h.b16 %v3656
    %v4228 = vunpack.c.l.b16 %v3657
    %v4229 = vunpack.c.h.b16 %v3657
    %v4230 = vunpack.c.l.b16 %v3658
    %v4231 = vunpack.c.h.b16 %v3658
    %v4232 = vunpack.c.l.b16 %v3659
    %v4233 = vunpack.c.h.b16 %v3659
    %v4234 = vunpack.c.l.b16 %v3660
    %v4235 = vunpack.c.h.b16 %v3660
    %v4236 = vunpack.c.l.b16 %v3661
    %v4237 = vunpack.c.h.b16 %v3661
    %v4238 = vunpack.c.l.b16 %v3662
    %v4239 = vunpack.c.h.b16 %v3662
    %v4240 = vunpack.c.l.b16 %v3663
    %v4241 = vunpack.c.h.b16 %v3663
    %v4242 = vunpack.c.l.b16 %v3664
    %v4243 = vunpack.c.h.b16 %v3664
    %v4244 = vunpack.c.l.b16 %v3665
    %v4245 = vunpack.c.h.b16 %v3665
    %v4246 = vunpack.c.l.b16 %v3666
    %v4247 = vunpack.c.h.b16 %v3666
    %v4248 = vunpack.c.l.b16 %v3667
    %v4249 = vunpack.c.h.b16 %v3667
    %v4250 = vunpack.c.l.b16 %v3668
    %v4251 = vunpack.c.h.b16 %v3668
    %v4252 = vunpack.c.l.b16 %v3669
    %v4253 = vunpack.c.h.b16 %v3669
    %v4254 = vunpack.c.l.b16 %v3670
    %v4255 = vunpack.c.h.b16 %v3670
    %v4256 = vunpack.c.l.b16 %v3671
    %v4257 = vunpack.c.h.b16 %v3671
    %v4258 = vunpack.c.l.b16 %v3672
    %v4259 = vunpack.c.h.b16 %v3672
    %v4260 = vunpack.c.l.b16 %v3673
    %v4261 = vunpack.c.h.b16 %v3673
    %v4262 = vunpack.c.l.b16 %v3674
    %v4263 = vunpack.c.h.b16 %v3674
    %v4264 = vunpack.c.l.b16 %v3675
    %v4265 = vunpack.c.h.b16 %v3675
    %v4266 = vunpack.c.l.b16 %v3676
    %v4267 = vunpack.c.h.b16 %v3676
    %v4268 = vunpack.c.l.b16 %v3677
    %v4269 = vunpack.c.h.b16 %v3677
    %v4270 = vunpack.c.l.b16 %v3678
    %v4271 = vunpack.c.h.b16 %v3678
    %v4272 = vunpack.c.l.b16 %v3679
    %v4273 = vunpack.c.h.b16 %v3679
    %v4274 = vunpack.c.l.b16 %v3680
    %v4275 = vunpack.c.h.b16 %v3680
    %v4276 = vunpack.c.l.b16 %v3681
    %v4277 = vunpack.c.h.b16 %v3681
    %v4278 = vunpack.c.l.b16 %v3682
    %v4279 = vunpack.c.h.b16 %v3682
    %v4280 = vunpack.c.l.b16 %v3683
    %v4281 = vunpack.c.h.b16 %v3683
    %v4282 = vunpack.c.l.b16 %v3684
    %v4283 = vunpack.c.h.b16 %v3684
    %v4284 = vunpack.c.l.b16 %v3685
    %v4285 = vunpack.c.h.b16 %v3685
    %v4286 = vunpack.c.l.b16 %v3686
    %v4287 = vunpack.c.h.b16 %v3686
    %v4288 = vunpack.c.l.b16 %v3687
    %v4289 = vunpack.c.h.b16 %v3687
    %v4290 = vunpack.c.l.b16 %v3688
    %v4291 = vunpack.c.h.b16 %v3688
    %v4292 = vunpack.c.l.b16 %v3689
    %v4293 = vunpack.c.h.b16 %v3689
    %v4294 = vunpack.c.l.b16 %v3690
    %v4295 = vunpack.c.h.b16 %v3690
    %v4296 = vunpack.c.l.b16 %v3691
    %v4297 = vunpack.c.h.b16 %v3691
    %v4298 = vunpack.c.l.b16 %v3692
    %v4299 = vunpack.c.h.b16 %v3692
    %v4300 = vunpack.c.l.b16 %v3693
    %v4301 = vunpack.c.h.b16 %v3693
    %v4302 = vunpack.c.l.b16 %v3694
    %v4303 = vunpack.c.h.b16 %v3694
    %v4304 = vunpack.c.l.b16 %v3695
    %v4305 = vunpack.c.h.b16 %v3695
    %v4306 = vunpack.c.l.b16 %v3696
    %v4307 = vunpack.c.h.b16 %v3696
    %v4308 = vunpack.c.l.b16 %v3697
    %v4309 = vunpack.c.h.b16 %v3697
    %v4310 = vunpack.c.l.b16 %v3698
    %v4311 = vunpack.c.h.b16 %v3698
    %v4312 = vunpack.c.l.b16 %v3699
    %v4313 = vunpack.c.h.b16 %v3699
    %v4314 = vunpack.c.l.b16 %v3700
    %v4315 = vunpack.c.h.b16 %v3700
    %v4316 = vunpack.c.l.b16 %v3701
    %v4317 = vunpack.c.h.b16 %v3701
    %v4318 = vunpack.c.l.b16 %v3702
    %v4319 = vunpack.c.h.b16 %v3702
    %v4320 = vunpack.c.l.b16 %v3703
    %v4321 = vunpack.c.h.b16 %v3703
    %v4322 = vunpack.c.l.b16 %v3704
    %v4323 = vunpack.c.h.b16 %v3704
    %v4324 = vunpack.c.l.b16 %v3705
    %v4325 = vunpack.c.h.b16 %v3705
    %v4326 = vunpack.c.l.b16 %v3706
    %v4327 = vunpack.c.h.b16 %v3706
    %v4328 = vunpack.c.l.b16 %v3707
    %v4329 = vunpack.c.h.b16 %v3707
    %v4330 = vunpack.c.l.b16 %v3708
    %v4331 = vunpack.c.h.b16 %v3708
    %v4332 = vunpack.c.l.b16 %v3709
    %v4333 = vunpack.c.h.b16 %v3709
    %v4334 = vunpack.c.l.b16 %v3710
    %v4335 = vunpack.c.h.b16 %v3710
    %v4336 = vunpack.c.l.b16 %v3711
    %v4337 = vunpack.c.h.b16 %v3711
    %v4338 = vunpack.c.l.b16 %v3712
    %v4339 = vunpack.c.h.b16 %v3712
    %v4340 = vunpack.c.l.b16 %v3713
    %v4341 = vunpack.c.h.b16 %v3713
    %v4342 = vunpack.c.l.b16 %v3714
    %v4343 = vunpack.c.h.b16 %v3714
    %v4344 = vunpack.c.l.b16 %v3715
    %v4345 = vunpack.c.h.b16 %v3715
    %v4346 = vunpack.c.l.b16 %v3716
    %v4347 = vunpack.c.h.b16 %v3716
    %v4348 = vunpack.c.l.b16 %v3717
    %v4349 = vunpack.c.h.b16 %v3717
    %v4350 = vunpack.c.l.b16 %v3718
    %v4351 = vunpack.c.h.b16 %v3718
    %v4352 = vunpack.c.l.b16 %v3719
    %v4353 = vunpack.c.h.b16 %v3719
    %v4354 = vunpack.c.l.b16 %v3720
    %v4355 = vunpack.c.h.b16 %v3720
    %v4356 = vunpack.c.l.b16 %v3721
    %v4357 = vunpack.c.h.b16 %v3721
    %v4358 = vunpack.c.l.b16 %v3722
    %v4359 = vunpack.c.h.b16 %v3722
    %v4360 = vunpack.c.l.b16 %v3723
    %v4361 = vunpack.c.h.b16 %v3723
    %v4362 = vunpack.c.l.b16 %v3724
    %v4363 = vunpack.c.h.b16 %v3724
    %v4364 = vunpack.c.l.b16 %v3725
    %v4365 = vunpack.c.h.b16 %v3725
    %v4366 = vunpack.c.l.b16 %v3726
    %v4367 = vunpack.c.h.b16 %v3726
    %v4368 = vunpack.c.l.b16 %v3727
    %v4369 = vunpack.c.h.b16 %v3727
    %v4370 = vunpack.c.l.b16 %v3728
    %v4371 = vunpack.c.h.b16 %v3728
    %v4372 = vunpack.c.l.b16 %v3729
    %v4373 = vunpack.c.h.b16 %v3729
    %v4374 = vunpack.c.l.b16 %v3730
    %v4375 = vunpack.c.h.b16 %v3730
    %v4376 = vunpack.c.l.b16 %v3731
    %v4377 = vunpack.c.h.b16 %v3731
    %v4378 = vunpack.c.l.b16 %v3732
    %v4379 = vunpack.c.h.b16 %v3732
    %v4380 = vunpack.c.l.b16 %v3733
    %v4381 = vunpack.c.h.b16 %v3733
    %v4382 = vunpack.c.l.b16 %v3734
    %v4383 = vunpack.c.h.b16 %v3734
    %v4384 = vunpack.c.l.b16 %v3735
    %v4385 = vunpack.c.h.b16 %v3735
    %v4386 = vunpack.c.l.b16 %v3736
    %v4387 = vunpack.c.h.b16 %v3736
    %v4388 = vunpack.c.l.b16 %v3737
    %v4389 = vunpack.c.h.b16 %v3737
    %v4390 = vunpack.c.l.b16 %v3738
    %v4391 = vunpack.c.h.b16 %v3738
    %v4392 = vunpack.c.l.b16 %v3739
    %v4393 = vunpack.c.h.b16 %v3739
    %v4394 = vunpack.c.l.b16 %v3740
    %v4395 = vunpack.c.h.b16 %v3740
    %v4396 = vunpack.c.l.b16 %v3741
    %v4397 = vunpack.c.h.b16 %v3741
    %v4398 = vunpack.c.l.b16 %v3742
    %v4399 = vunpack.c.h.b16 %v3742
    %v4400 = vunpack.c.l.b16 %v3743
    %v4401 = vunpack.c.h.b16 %v3743
    %v4402 = vunpack.c.l.b16 %v3744
    %v4403 = vunpack.c.h.b16 %v3744
    %v4404 = vunpack.c.l.b16 %v3745
    %v4405 = vunpack.c.h.b16 %v3745
    %v4406 = vunpack.c.l.b16 %v3746
    %v4407 = vunpack.c.h.b16 %v3746
    %v4408 = vunpack.c.l.b16 %v3747
    %v4409 = vunpack.c.h.b16 %v3747
    %v4410 = vunpack.c.l.b16 %v3748
    %v4411 = vunpack.c.h.b16 %v3748
    %v4412 = vunpack.c.l.b16 %v3749
    %v4413 = vunpack.c.h.b16 %v3749
    %v4414 = vunpack.c.l.b16 %v3750
    %v4415 = vunpack.c.h.b16 %v3750
    %v4416 = vunpack.c.l.b16 %v3751
    %v4417 = vunpack.c.h.b16 %v3751
    %v4418 = vunpack.c.l.b16 %v3752
    %v4419 = vunpack.c.h.b16 %v3752
    %v4420 = vunpack.c.l.b16 %v3753
    %v4421 = vunpack.c.h.b16 %v3753
    %v4422 = vunpack.c.l.b16 %v3754
    %v4423 = vunpack.c.h.b16 %v3754
    %v4424 = vunpack.c.l.b16 %v3755
    %v4425 = vunpack.c.h.b16 %v3755
    %v4426 = vunpack.c.l.b16 %v3756
    %v4427 = vunpack.c.h.b16 %v3756
    %v4428 = vunpack.c.l.b16 %v3757
    %v4429 = vunpack.c.h.b16 %v3757
    %v4430 = vunpack.c.l.b16 %v3758
    %v4431 = vunpack.c.h.b16 %v3758
    %v4432 = vunpack.c.l.b16 %v3759
    %v4433 = vunpack.c.h.b16 %v3759
    %v4434 = vunpack.c.l.b16 %v3760
    %v4435 = vunpack.c.h.b16 %v3760
    %v4436 = vunpack.c.l.b16 %v3761
    %v4437 = vunpack.c.h.b16 %v3761
    %v4438 = vunpack.c.l.b16 %v3762
    %v4439 = vunpack.c.h.b16 %v3762
    %v4440 = vunpack.c.l.b16 %v3763
    %v4441 = vunpack.c.h.b16 %v3763
    %v4442 = vunpack.c.l.b16 %v3764
    %v4443 = vunpack.c.h.b16 %v3764
    %v4444 = vunpack.c.l.b16 %v3765
    %v4445 = vunpack.c.h.b16 %v3765
    %v4446 = vunpack.c.l.b16 %v3766
    %v4447 = vunpack.c.h.b16 %v3766
    %v4448 = vunpack.c.l.b16 %v3767
    %v4449 = vunpack.c.h.b16 %v3767
    %v4450 = vunpack.c.l.b16 %v3768
    %v4451 = vunpack.c.h.b16 %v3768
    %v4452 = vunpack.c.l.b16 %v3769
    %v4453 = vunpack.c.h.b16 %v3769
    %v4454 = vunpack.c.l.b16 %v3770
    %v4455 = vunpack.c.h.b16 %v3770
    %v4456 = vunpack.c.l.b16 %v3771
    %v4457 = vunpack.c.h.b16 %v3771
    %v4458 = vunpack.c.l.b16 %v3772
    %v4459 = vunpack.c.h.b16 %v3772
    %v4460 = vunpack.c.l.b16 %v3773
    %v4461 = vunpack.c.h.b16 %v3773
    %v4462 = vunpack.c.l.b16 %v3774
    %v4463 = vunpack.c.h.b16 %v3774
    %v4464 = vunpack.c.l.b16 %v3775
    %v4465 = vunpack.c.h.b16 %v3775
    %v4466 = vunpack.c.l.b16 %v3776
    %v4467 = vunpack.c.h.b16 %v3776
    %v4468 = vunpack.c.l.b16 %v3777
    %v4469 = vunpack.c.h.b16 %v3777
    %v4470 = vunpack.c.l.b16 %v3778
    %v4471 = vunpack.c.h.b16 %v3778
    %v4472 = vunpack.c.l.b16 %v3779
    %v4473 = vunpack.c.h.b16 %v3779
    %v4474 = vunpack.c.l.b16 %v3780
    %v4475 = vunpack.c.h.b16 %v3780
    %v4476 = vunpack.c.l.b16 %v3781
    %v4477 = vunpack.c.h.b16 %v3781
    %v4478 = vunpack.c.l.b16 %v3782
    %v4479 = vunpack.c.h.b16 %v3782
    %v4480 = vunpack.c.l.b16 %v3783
    %v4481 = vunpack.c.h.b16 %v3783
    %v4482 = vunpack.c.l.b16 %v3784
    %v4483 = vunpack.c.h.b16 %v3784
    %v4484 = vunpack.c.l.b16 %v3785
    %v4485 = vunpack.c.h.b16 %v3785
    %v4486 = vunpack.c.l.b16 %v3786
    %v4487 = vunpack.c.h.b16 %v3786
    %v4488 = vunpack.c.l.b16 %v3787
    %v4489 = vunpack.c.h.b16 %v3787
    %v4490 = vunpack.c.l.b16 %v3788
    %v4491 = vunpack.c.h.b16 %v3788
    %v4492 = vunpack.c.l.b16 %v3789
    %v4493 = vunpack.c.h.b16 %v3789
    %v4494 = vunpack.c.l.b16 %v3790
    %v4495 = vunpack.c.h.b16 %v3790
    %v4496 = vunpack.c.l.b16 %v3791
    %v4497 = vunpack.c.h.b16 %v3791
    %v4498 = vunpack.c.l.b16 %v3792
    %v4499 = vunpack.c.h.b16 %v3792
    %v4500 = vunpack.c.l.b16 %v3793
    %v4501 = vunpack.c.h.b16 %v3793
    %v4502 = vunpack.c.l.b16 %v3794
    %v4503 = vunpack.c.h.b16 %v3794
    %v4504 = vunpack.c.l.b16 %v3795
    %v4505 = vunpack.c.h.b16 %v3795
    %v4506 = vunpack.c.l.b16 %v3796
    %v4507 = vunpack.c.h.b16 %v3796
    %v4508 = vunpack.c.l.b16 %v3797
    %v4509 = vunpack.c.h.b16 %v3797
    %v4510 = vunpack.c.l.b16 %v3798
    %v4511 = vunpack.c.h.b16 %v3798
    %v4512 = vunpack.c.l.b16 %v3799
    %v4513 = vunpack.c.h.b16 %v3799
    %v4514 = vunpack.c.l.b16 %v3800
    %v4515 = vunpack.c.h.b16 %v3800
    %v4516 = vunpack.c.l.b16 %v3801
    %v4517 = vunpack.c.h.b16 %v3801
    %v4518 = vunpack.c.l.b16 %v3802
    %v4519 = vunpack.c.h.b16 %v3802
    %v4520 = vunpack.c.l.b16 %v3803
    %v4521 = vunpack.c.h.b16 %v3803
    %v4522 = vunpack.c.l.b16 %v3804
    %v4523 = vunpack.c.h.b16 %v3804
    %v4524 = vunpack.c.l.b16 %v3805
    %v4525 = vunpack.c.h.b16 %v3805
    %v4526 = vunpack.c.l.b16 %v3806
    %v4527 = vunpack.c.h.b16 %v3806
    %v4528 = vunpack.c.l.b16 %v3807
    %v4529 = vunpack.c.h.b16 %v3807
    %v4530 = vunpack.c.l.b16 %v3808
    %v4531 = vunpack.c.h.b16 %v3808
    %v4532 = vunpack.c.l.b16 %v3809
    %v4533 = vunpack.c.h.b16 %v3809
    %v4534 = vunpack.c.l.b16 %v3810
    %v4535 = vunpack.c.h.b16 %v3810
    %v4536 = vunpack.c.l.b16 %v3811
    %v4537 = vunpack.c.h.b16 %v3811
    %v4538 = vunpack.c.l.b16 %v3812
    %v4539 = vunpack.c.h.b16 %v3812
    %v4540 = vunpack.c.l.b16 %v3813
    %v4541 = vunpack.c.h.b16 %v3813
    %v4542 = vunpack.c.l.b16 %v3814
    %v4543 = vunpack.c.h.b16 %v3814
    %v4544 = vunpack.c.l.b16 %v3815
    %v4545 = vunpack.c.h.b16 %v3815
    %v4546 = vunpack.c.l.b16 %v3816
    %v4547 = vunpack.c.h.b16 %v3816
    %v4548 = vunpack.c.l.b16 %v3817
    %v4549 = vunpack.c.h.b16 %v3817
    %v4550 = vunpack.c.l.b16 %v3818
    %v4551 = vunpack.c.h.b16 %v3818
    %v4552 = vunpack.c.l.b16 %v3819
    %v4553 = vunpack.c.h.b16 %v3819
    %v4554 = vunpack.c.l.b16 %v3820
    %v4555 = vunpack.c.h.b16 %v3820
    %v4556 = vunpack.c.l.b16 %v3821
    %v4557 = vunpack.c.h.b16 %v3821
    %v4558 = vunpack.c.l.b16 %v3822
    %v4559 = vunpack.c.h.b16 %v3822
    %v4560 = vunpack.c.l.b16 %v3823
    %v4561 = vunpack.c.h.b16 %v3823
    %v4562 = vunpack.c.l.b16 %v3824
    %v4563 = vunpack.c.h.b16 %v3824
    %v4564 = vunpack.c.l.b16 %v3825
    %v4565 = vunpack.c.h.b16 %v3825
    %v4566 = vunpack.c.l.b16 %v3826
    %v4567 = vunpack.c.h.b16 %v3826
    %v4568 = vunpack.c.l.b16 %v3827
    %v4569 = vunpack.c.h.b16 %v3827
    %v4570 = vunpack.c.l.b16 %v3828
    %v4571 = vunpack.c.h.b16 %v3828
    %v4572 = vunpack.c.l.b16 %v3829
    %v4573 = vunpack.c.h.b16 %v3829
    %v4574 = vunpack.c.l.b16 %v3830
    %v4575 = vunpack.c.h.b16 %v3830
    %v4576 = vunpack.c.l.b16 %v3831
    %v4577 = vunpack.c.h.b16 %v3831
    %v4578 = vunpack.c.l.b16 %v3832
    %v4579 = vunpack.c.h.b16 %v3832
    %v4580 = vunpack.c.l.b16 %v3833
    %v4581 = vunpack.c.h.b16 %v3833
    %v4582 = vunpack.c.l.b16 %v3834
    %v4583 = vunpack.c.h.b16 %v3834
    %v4584 = vunpack.c.l.b16 %v3835
    %v4585 = vunpack.c.h.b16 %v3835
    %v4586 = vunpack.c.l.b16 %v3836
    %v4587 = vunpack.c.h.b16 %v3836
    %v4588 = vunpack.c.l.b16 %v3837
    %v4589 = vunpack.c.h.b16 %v3837
    %v4590 = vunpack.c.l.b16 %v3838
    %v4591 = vunpack.c.h.b16 %v3838
    %v4592 = vunpack.c.l.b16 %v3839
    %v4593 = vunpack.c.h.b16 %v3839
    %v4594 = vunpack.c.l.b16 %v3840
    %v4595 = vunpack.c.h.b16 %v3840
    %v4596 = vunpack.c.l.b16 %v3841
    %v4597 = vunpack.c.h.b16 %v3841
    %v4598 = vunpack.c.l.b16 %v3842
    %v4599 = vunpack.c.h.b16 %v3842
    %v4600 = vunpack.c.l.b16 %v3843
    %v4601 = vunpack.c.h.b16 %v3843
    %v4602 = vunpack.c.l.b16 %v3844
    %v4603 = vunpack.c.h.b16 %v3844
    %v4604 = vunpack.c.l.b16 %v3845
    %v4605 = vunpack.c.h.b16 %v3845
    %v4606 = vunpack.c.l.b16 %v3846
    %v4607 = vunpack.c.h.b16 %v3846
    %v4608 = vunpack.c.l.b16 %v3847
    %v4609 = vunpack.c.h.b16 %v3847
    %v4610 = vunpack.c.l.b16 %v3848
    %v4611 = vunpack.c.h.b16 %v3848
    %v4612 = vunpack.c.l.b16 %v3849
    %v4613 = vunpack.c.h.b16 %v3849
    %v4614 = vunpack.c.l.b16 %v3850
    %v4615 = vunpack.c.h.b16 %v3850
    %v4616 = vunpack.c.l.b16 %v3851
    %v4617 = vunpack.c.h.b16 %v3851
    %v4618 = vunpack.c.l.b16 %v3852
    %v4619 = vunpack.c.h.b16 %v3852
    %v4620 = vunpack.c.l.b16 %v3853
    %v4621 = vunpack.c.h.b16 %v3853
    %v4622 = vunpack.c.l.b16 %v3854
    %v4623 = vunpack.c.h.b16 %v3854
    %v4624 = vunpack.c.l.b16 %v3855
    %v4625 = vunpack.c.h.b16 %v3855
    %v4626 = vunpack.c.l.b16 %v3856
    %v4627 = vunpack.c.h.b16 %v3856
    %v4628 = vunpack.c.l.b16 %v3857
    %v4629 = vunpack.c.h.b16 %v3857
    %v4630 = vunpack.c.l.b16 %v3858
    %v4631 = vunpack.c.h.b16 %v3858
    %v4632 = vunpack.c.l.b16 %v3859
    %v4633 = vunpack.c.h.b16 %v3859
    %v4634 = vunpack.c.l.b16 %v3860
    %v4635 = vunpack.c.h.b16 %v3860
    %v4636 = vunpack.c.l.b16 %v3861
    %v4637 = vunpack.c.h.b16 %v3861
    %v4638 = vunpack.c.l.b16 %v3862
    %v4639 = vunpack.c.h.b16 %v3862
    %v4640 = vunpack.c.l.b16 %v3863
    %v4641 = vunpack.c.h.b16 %v3863
    %v4642 = vpack.c.b16 %v4134, %v4130
    %v4643 = vpack.c.b16 %v4135, %v4131
    %v4644 = vpack.c.b16 %v4136, %v4132
    %v4645 = vpack.c.b16 %v4137, %v4133
    %v4646 = vpack.c.b16 %v4142, %v4138
    %v4647 = vpack.c.b16 %v4143, %v4139
    %v4648 = vpack.c.b16 %v4144, %v4140
    %v4649 = vpack.c.b16 %v4145, %v4141
    %v4650 = vpack.c.b16 %v4150, %v4146
    %v4651 = vpack.c.b16 %v4151, %v4147
    %v4652 = vpack.c.b16 %v4152, %v4148
    %v4653 = vpack.c.b16 %v4153, %v4149
    %v4654 = vpack.c.b16 %v4158, %v4154
    %v4655 = vpack.c.b16 %v4159, %v4155
    %v4656 = vpack.c.b16 %v4160, %v4156
    %v4657 = vpack.c.b16 %v4161, %v4157
    %v4658 = vpack.c.b16 %v4166, %v4162
    %v4659 = vpack.c.b16 %v4167, %v4163
    %v4660 = vpack.c.b16 %v4168, %v4164
    %v4661 = vpack.c.b16 %v4169, %v4165
    %v4662 = vpack.c.b16 %v4174, %v4170
    %v4663 = vpack.c.b16 %v4175, %v4171
    %v4664 = vpack.c.b16 %v4176, %v4172
    %v4665 = vpack.c.b16 %v4177, %v4173
    %v4666 = vpack.c.b16 %v4182, %v4178
    %v4667 = vpack.c.b16 %v4183, %v4179
    %v4668 = vpack.c.b16 %v4184, %v4180
    %v4669 = vpack.c.b16 %v4185, %v4181
    %v4670 = vpack.c.b16 %v4190, %v4186
    %v4671 = vpack.c.b16 %v4191, %v4187
    %v4672 = vpack.c.b16 %v4192, %v4188
    %v4673 = vpack.c.b16 %v4193, %v4189
    %v4674 = vpack.c.b16 %v4198, %v4194
    %v4675 = vpack.c.b16 %v4199, %v4195
    %v4676 = vpack.c.b16 %v4200, %v4196
    %v4677 = vpack.c.b16 %v4201, %v4197
    %v4678 = vpack.c.b16 %v4206, %v4202
    %v4679 = vpack.c.b16 %v4207, %v4203
    %v4680 = vpack.c.b16 %v4208, %v4204
    %v4681 = vpack.c.b16 %v4209, %v4205
    %v4682 = vpack.c.b16 %v4214, %v4210
    %v4683 = vpack.c.b16 %v4215, %v4211
    %v4684 = vpack.c.b16 %v4216, %v4212
    %v4685 = vpack.c.b16 %v4217, %v4213
    %v4686 = vpack.c.b16 %v4222, %v4218
    %v4687 = vpack.c.b16 %v4223, %v4219
    %v4688 = vpack.c.b16 %v4224, %v4220
    %v4689 = vpack.c.b16 %v4225, %v4221
    %v4690 = vpack.c.b16 %v4230, %v4226
    %v4691 = vpack.c.b16 %v4231, %v4227
    %v4692 = vpack.c.b16 %v4232, %v4228
    %v4693 = vpack.c.b16 %v4233, %v4229
    %v4694 = vpack.c.b16 %v4238, %v4234
    %v4695 = vpack.c.b16 %v4239, %v4235
    %v4696 = vpack.c.b16 %v4240, %v4236
    %v4697 = vpack.c.b16 %v4241, %v4237
    %v4698 = vpack.c.b16 %v4246, %v4242
    %v4699 = vpack.c.b16 %v4247, %v4243
    %v4700 = vpack.c.b16 %v4248, %v4244
    %v4701 = vpack.c.b16 %v4249, %v4245
    %v4702 = vpack.c.b16 %v4254, %v4250
    %v4703 = vpack.c.b16 %v4255, %v4251
    %v4704 = vpack.c.b16 %v4256, %v4252
    %v4705 = vpack.c.b16 %v4257, %v4253
    %v4706 = vpack.c.b16 %v4262, %v4258
    %v4707 = vpack.c.b16 %v4263, %v4259
    %v4708 = vpack.c.b16 %v4264, %v4260
    %v4709 = vpack.c.b16 %v4265, %v4261
    %v4710 = vpack.c.b16 %v4270, %v4266
    %v4711 = vpack.c.b16 %v4271, %v4267
    %v4712 = vpack.c.b16 %v4272, %v4268
    %v4713 = vpack.c.b16 %v4273, %v4269
    %v4714 = vpack.c.b16 %v4278, %v4274
    %v4715 = vpack.c.b16 %v4279, %v4275
    %v4716 = vpack.c.b16 %v4280, %v4276
    %v4717 = vpack.c.b16 %v4281, %v4277
    %v4718 = vpack.c.b16 %v4286, %v4282
    %v4719 = vpack.c.b16 %v4287, %v4283
    %v4720 = vpack.c.b16 %v4288, %v4284
    %v4721 = vpack.c.b16 %v4289, %v4285
    %v4722 = vpack.c.b16 %v4294, %v4290
    %v4723 = vpack.c.b16 %v4295, %v4291
    %v4724 = vpack.c.b16 %v4296, %v4292
    %v4725 = vpack.c.b16 %v4297, %v4293
    %v4726 = vpack.c.b16 %v4302, %v4298
    %v4727 = vpack.c.b16 %v4303, %v4299
    %v4728 = vpack.c.b16 %v4304, %v4300
    %v4729 = vpack.c.b16 %v4305, %v4301
    %v4730 = vpack.c.b16 %v4310, %v4306
    %v4731 = vpack.c.b16 %v4311, %v4307
    %v4732 = vpack.c.b16 %v4312, %v4308
    %v4733 = vpack.c.b16 %v4313, %v4309
    %v4734 = vpack.c.b16 %v4318, %v4314
    %v4735 = vpack.c.b16 %v4319, %v4315
    %v4736 = vpack.c.b16 %v4320, %v4316
    %v4737 = vpack.c.b16 %v4321, %v4317
    %v4738 = vpack.c.b16 %v4326, %v4322
    %v4739 = vpack.c.b16 %v4327, %v4323
    %v4740 = vpack.c.b16 %v4328, %v4324
    %v4741 = vpack.c.b16 %v4329, %v4325
    %v4742 = vpack.c.b16 %v4334, %v4330
    %v4743 = vpack.c.b16 %v4335, %v4331
    %v4744 = vpack.c.b16 %v4336, %v4332
    %v4745 = vpack.c.b16 %v4337, %v4333
    %v4746 = vpack.c.b16 %v4342, %v4338
    %v4747 = vpack.c.b16 %v4343, %v4339
    %v4748 = vpack.c.b16 %v4344, %v4340
    %v4749 = vpack.c.b16 %v4345, %v4341
    %v4750 = vpack.c.b16 %v4350, %v4346
    %v4751 = vpack.c.b16 %v4351, %v4347
    %v4752 = vpack.c.b16 %v4352, %v4348
    %v4753 = vpack.c.b16 %v4353, %v4349
    %v4754 = vpack.c.b16 %v4358, %v4354
    %v4755 = vpack.c.b16 %v4359, %v4355
    %v4756 = vpack.c.b16 %v4360, %v4356
    %v4757 = vpack.c.b16 %v4361, %v4357
    %v4758 = vpack.c.b16 %v4366, %v4362
    %v4759 = vpack.c.b16 %v4367, %v4363
    %v4760 = vpack.c.b16 %v4368, %v4364
    %v4761 = vpack.c.b16 %v4369, %v4365
    %v4762 = vpack.c.b16 %v4374, %v4370
    %v4763 = vpack.c.b16 %v4375, %v4371
    %v4764 = vpack.c.b16 %v4376, %v4372
    %v4765 = vpack.c.b16 %v4377, %v4373
    %v4766 = vpack.c.b16 %v4382, %v4378
    %v4767 = vpack.c.b16 %v4383, %v4379
    %v4768 = vpack.c.b16 %v4384, %v4380
    %v4769 = vpack.c.b16 %v4385, %v4381
    %v4770 = vpack.c.b16 %v4390, %v4386
    %v4771 = vpack.c.b16 %v4391, %v4387
    %v4772 = vpack.c.b16 %v4392, %v4388
    %v4773 = vpack.c.b16 %v4393, %v4389
    %v4774 = vpack.c.b16 %v4398, %v4394
    %v4775 = vpack.c.b16 %v4399, %v4395
    %v4776 = vpack.c.b16 %v4400, %v4396
    %v4777 = vpack.c.b16 %v4401, %v4397
    %v4778 = vpack.c.b16 %v4406, %v4402
    %v4779 = vpack.c.b16 %v4407, %v4403
    %v4780 = vpack.c.b16 %v4408, %v4404
    %v4781 = vpack.c.b16 %v4409, %v4405
    %v4782 = vpack.c.b16 %v4414, %v4410
    %v4783 = vpack.c.b16 %v4415, %v4411
    %v4784 = vpack.c.b16 %v4416, %v4412
    %v4785 = vpack.c.b16 %v4417, %v4413
    %v4786 = vpack.c.b16 %v4422, %v4418
    %v4787 = vpack.c.b16 %v4423, %v4419
    %v4788 = vpack.c.b16 %v4424, %v4420
    %v4789 = vpack.c.b16 %v4425, %v4421
    %v4790 = vpack.c.b16 %v4430, %v4426
    %v4791 = vpack.c.b16 %v4431, %v4427
    %v4792 = vpack.c.b16 %v4432, %v4428
    %v4793 = vpack.c.b16 %v4433, %v4429
    %v4794 = vpack.c.b16 %v4438, %v4434
    %v4795 = vpack.c.b16 %v4439, %v4435
    %v4796 = vpack.c.b16 %v4440, %v4436
    %v4797 = vpack.c.b16 %v4441, %v4437
    %v4798 = vpack.c.b16 %v4446, %v4442
    %v4799 = vpack.c.b16 %v4447, %v4443
    %v4800 = vpack.c.b16 %v4448, %v4444
    %v4801 = vpack.c.b16 %v4449, %v4445
    %v4802 = vpack.c.b16 %v4454, %v4450
    %v4803 = vpack.c.b16 %v4455, %v4451
    %v4804 = vpack.c.b16 %v4456, %v4452
    %v4805 = vpack.c.b16 %v4457, %v4453
    %v4806 = vpack.c.b16 %v4462, %v4458
    %v4807 = vpack.c.b16 %v4463, %v4459
    %v4808 = vpack.c.b16 %v4464, %v4460
    %v4809 = vpack.c.b16 %v4465, %v4461
    %v4810 = vpack.c.b16 %v4470, %v4466
    %v4811 = vpack.c.b16 %v4471, %v4467
    %v4812 = vpack.c.b16 %v4472, %v4468
    %v4813 = vpack.c.b16 %v4473, %v4469
    %v4814 = vpack.c.b16 %v4478, %v4474
    %v4815 = vpack.c.b16 %v4479, %v4475
    %v4816 = vpack.c.b16 %v4480, %v4476
    %v4817 = vpack.c.b16 %v4481, %v4477
    %v4818 = vpack.c.b16 %v4486, %v4482
    %v4819 = vpack.c.b16 %v4487, %v4483
    %v4820 = vpack.c.b16 %v4488, %v4484
    %v4821 = vpack.c.b16 %v4489, %v4485
    %v4822 = vpack.c.b16 %v4494, %v4490
    %v4823 = vpack.c.b16 %v4495, %v4491
    %v4824 = vpack.c.b16 %v4496, %v4492
    %v4825 = vpack.c.b16 %v4497, %v4493
    %v4826 = vpack.c.b16 %v4502, %v4498
    %v4827 = vpack.c.b16 %v4503, %v4499
    %v4828 = vpack.c.b16 %v4504, %v4500
    %v4829 = vpack.c.b16 %v4505, %v4501
    %v4830 = vpack.c.b16 %v4510, %v4506
    %v4831 = vpack.c.b16 %v4511, %v4507
    %v4832 = vpack.c.b16 %v4512, %v4508
    %v4833 = vpack.c.b16 %v4513, %v4509
    %v4834 = vpack.c.b16 %v4518, %v4514
    %v4835 = vpack.c.b16 %v4519, %v4515
    %v4836 = vpack.c.b16 %v4520, %v4516
    %v4837 = vpack.c.b16 %v4521, %v4517
    %v4838 = vpack.c.b16 %v4526, %v4522
    %v4839 = vpack.c.b16 %v4527, %v4523
    %v4840 = vpack.c.b16 %v4528, %v4524
    %v4841 = vpack.c.b16 %v4529, %v4525
    %v4842 = vpack.c.b16 %v4534, %v4530
    %v4843 = vpack.c.b16 %v4535, %v4531
    %v4844 = vpack.c.b16 %v4536, %v4532
    %v4845 = vpack.c.b16 %v4537, %v4533
    %v4846 = vpack.c.b16 %v4542, %v4538
    %v4847 = vpack.c.b16 %v4543, %v4539
    %v4848 = vpack.c.b16 %v4544, %v4540
    %v4849 = vpack.c.b16 %v4545, %v4541
    %v4850 = vpack.c.b16 %v4550, %v4546
    %v4851 = vpack.c.b16 %v4551, %v4547
    %v4852 = vpack.c.b16 %v4552, %v4548
    %v4853 = vpack.c.b16 %v4553, %v4549
    %v4854 = vpack.c.b16 %v4558, %v4554
    %v4855 = vpack.c.b16 %v4559, %v4555
    %v4856 = vpack.c.b16 %v4560, %v4556
    %v4857 = vpack.c.b16 %v4561, %v4557
    %v4858 = vpack.c.b16 %v4566, %v4562
    %v4859 = vpack.c.b16 %v4567, %v4563
    %v4860 = vpack.c.b16 %v4568, %v4564
    %v4861 = vpack.c.b16 %v4569, %v4565
    %v4862 = vpack.c.b16 %v4574, %v4570
    %v4863 = vpack.c.b16 %v4575, %v4571
    %v4864 = vpack.c.b16 %v4576, %v4572
    %v4865 = vpack.c.b16 %v4577, %v4573
    %v4866 = vpack.c.b16 %v4582, %v4578
    %v4867 = vpack.c.b16 %v4583, %v4579
    %v4868 = vpack.c.b16 %v4584, %v4580
    %v4869 = vpack.c.b16 %v4585, %v4581
    %v4870 = vpack.c.b16 %v4590, %v4586
    %v4871 = vpack.c.b16 %v4591, %v4587
    %v4872 = vpack.c.b16 %v4592, %v4588
    %v4873 = vpack.c.b16 %v4593, %v4589
    %v4874 = vpack.c.b16 %v4598, %v4594
    %v4875 = vpack.c.b16 %v4599, %v4595
    %v4876 = vpack.c.b16 %v4600, %v4596
    %v4877 = vpack.c.b16 %v4601, %v4597
    %v4878 = vpack.c.b16 %v4606, %v4602
    %v4879 = vpack.c.b16 %v4607, %v4603
    %v4880 = vpack.c.b16 %v4608, %v4604
    %v4881 = vpack.c.b16 %v4609, %v4605
    %v4882 = vpack.c.b16 %v4614, %v4610
    %v4883 = vpack.c.b16 %v4615, %v4611
    %v4884 = vpack.c.b16 %v4616, %v4612
    %v4885 = vpack.c.b16 %v4617, %v4613
    %v4886 = vpack.c.b16 %v4622, %v4618
    %v4887 = vpack.c.b16 %v4623, %v4619
    %v4888 = vpack.c.b16 %v4624, %v4620
    %v4889 = vpack.c.b16 %v4625, %v4621
    %v4890 = vpack.c.b16 %v4630, %v4626
    %v4891 = vpack.c.b16 %v4631, %v4627
    %v4892 = vpack.c.b16 %v4632, %v4628
    %v4893 = vpack.c.b16 %v4633, %v4629
    %v4894 = vpack.c.b16 %v4638, %v4634
    %v4895 = vpack.c.b16 %v4639, %v4635
    %v4896 = vpack.c.b16 %v4640, %v4636
    %v4897 = vpack.c.b16 %v4641, %v4637
    %5154 = vmatpush.bf16.msra.mxu0 %v4670
    %5155 = vmatpush.bf16.msra.mxu0 %v4666
    %5156 = vmatpush.bf16.msra.mxu0 %v4662
    %5157 = vmatpush.bf16.msra.mxu0 %v4658
    %5158 = vmatpush.bf16.msra.mxu0 %v4654
    %5159 = vmatpush.bf16.msra.mxu0 %v4650
    %5160 = vmatpush.bf16.msra.mxu0 %v4646
    %5161 = vmatpush.bf16.msra.mxu0 %v4642
    %5162 = vmatmul.bf16.gmra.mxu0 %v3600
    %v5163 = vpop.f32.mrf.mxu0
    %v5164 = vadd.f32 %v3866, %v5163
    %v5165 = vpop.f32.mrf.mxu0
    %v5166 = vadd.f32 %v3866, %v5165
    %5167 = vdwg.mxu0
    %5168 = vmatpush.bf16.msra.mxu0 %v4702
    %5169 = vmatpush.bf16.msra.mxu0 %v4698
    %5170 = vmatpush.bf16.msra.mxu0 %v4694
    %5171 = vmatpush.bf16.msra.mxu0 %v4690
    %5172 = vmatpush.bf16.msra.mxu0 %v4686
    %5173 = vmatpush.bf16.msra.mxu0 %v4682
    %5174 = vmatpush.bf16.msra.mxu0 %v4678
    %5175 = vmatpush.bf16.msra.mxu0 %v4674
    %5176 = vmatmul.bf16.gmra.mxu0 %v3601
    %v5177 = vpop.f32.mrf.mxu0
    %v5178 = vadd.f32 %v5164, %v5177
    %v5179 = vpop.f32.mrf.mxu0
    %v5180 = vadd.f32 %v5166, %v5179
    %5181 = vdwg.mxu0
    %5182 = vmatpush.bf16.msra.mxu0 %v4734
    %5183 = vmatpush.bf16.msra.mxu0 %v4730
    %5184 = vmatpush.bf16.msra.mxu0 %v4726
    %5185 = vmatpush.bf16.msra.mxu0 %v4722
    %5186 = vmatpush.bf16.msra.mxu0 %v4718
    %5187 = vmatpush.bf16.msra.mxu0 %v4714
    %5188 = vmatpush.bf16.msra.mxu0 %v4710
    %5189 = vmatpush.bf16.msra.mxu0 %v4706
    %5190 = vmatmul.bf16.gmra.mxu0 %v3602
    %v5191 = vpop.f32.mrf.mxu0
    %v5192 = vadd.f32 %v5178, %v5191
    %v5193 = vpop.f32.mrf.mxu0
    %v5194 = vadd.f32 %v5180, %v5193
    %5195 = vdwg.mxu0
    %5196 = vmatpush.bf16.msra.mxu0 %v4766
    %5197 = vmatpush.bf16.msra.mxu0 %v4762
    %5198 = vmatpush.bf16.msra.mxu0 %v4758
    %5199 = vmatpush.bf16.msra.mxu0 %v4754
    %5200 = vmatpush.bf16.msra.mxu0 %v4750
    %5201 = vmatpush.bf16.msra.mxu0 %v4746
    %5202 = vmatpush.bf16.msra.mxu0 %v4742
    %5203 = vmatpush.bf16.msra.mxu0 %v4738
    %5204 = vmatmul.bf16.gmra.mxu0 %v3603
    %v5205 = vpop.f32.mrf.mxu0
    %v5206 = vadd.f32 %v5192, %v5205
    %v5207 = vpop.f32.mrf.mxu0
    %v5208 = vadd.f32 %v5194, %v5207
    %5209 = vdwg.mxu0
    %5210 = vmatpush.bf16.msra.mxu0 %v4798
    %5211 = vmatpush.bf16.msra.mxu0 %v4794
    %5212 = vmatpush.bf16.msra.mxu0 %v4790
    %5213 = vmatpush.bf16.msra.mxu0 %v4786
    %5214 = vmatpush.bf16.msra.mxu0 %v4782
    %5215 = vmatpush.bf16.msra.mxu0 %v4778
    %5216 = vmatpush.bf16.msra.mxu0 %v4774
    %5217 = vmatpush.bf16.msra.mxu0 %v4770
    %5218 = vmatmul.bf16.gmra.mxu0 %v3604
    %v5219 = vpop.f32.mrf.mxu0
    %v5220 = vadd.f32 %v5206, %v5219
    %v5221 = vpop.f32.mrf.mxu0
    %v5222 = vadd.f32 %v5208, %v5221
    %5223 = vdwg.mxu0
    %5224 = vmatpush.bf16.msra.mxu0 %v4830
    %5225 = vmatpush.bf16.msra.mxu0 %v4826
    %5226 = vmatpush.bf16.msra.mxu0 %v4822
    %5227 = vmatpush.bf16.msra.mxu0 %v4818
    %5228 = vmatpush.bf16.msra.mxu0 %v4814
    %5229 = vmatpush.bf16.msra.mxu0 %v4810
    %5230 = vmatpush.bf16.msra.mxu0 %v4806
    %5231 = vmatpush.bf16.msra.mxu0 %v4802
    %5232 = vmatmul.bf16.gmra.mxu0 %v3605
    %v5233 = vpop.f32.mrf.mxu0
    %v5234 = vadd.f32 %v5220, %v5233
    %v5235 = vpop.f32.mrf.mxu0
    %v5236 = vadd.f32 %v5222, %v5235
    %5237 = vdwg.mxu0
    %5238 = vmatpush.bf16.msra.mxu0 %v4862
    %5239 = vmatpush.bf16.msra.mxu0 %v4858
    %5240 = vmatpush.bf16.msra.mxu0 %v4854
    %5241 = vmatpush.bf16.msra.mxu0 %v4850
    %5242 = vmatpush.bf16.msra.mxu0 %v4846
    %5243 = vmatpush.bf16.msra.mxu0 %v4842
    %5244 = vmatpush.bf16.msra.mxu0 %v4838
    %5245 = vmatpush.bf16.msra.mxu0 %v4834
    %5246 = vmatmul.bf16.gmra.mxu0 %v3606
    %v5247 = vpop.f32.mrf.mxu0
    %v5248 = vadd.f32 %v5234, %v5247
    %v5249 = vpop.f32.mrf.mxu0
    %v5250 = vadd.f32 %v5236, %v5249
    %5251 = vdwg.mxu0
    %5252 = vmatpush.bf16.msra.mxu0 %v4894
    %5253 = vmatpush.bf16.msra.mxu0 %v4890
    %5254 = vmatpush.bf16.msra.mxu0 %v4886
    %5255 = vmatpush.bf16.msra.mxu0 %v4882
    %5256 = vmatpush.bf16.msra.mxu0 %v4878
    %5257 = vmatpush.bf16.msra.mxu0 %v4874
    %5258 = vmatpush.bf16.msra.mxu0 %v4870
    %5259 = vmatpush.bf16.msra.mxu0 %v4866
    %5260 = vmatmul.bf16.gmra.mxu0 %v3607
    %v5261 = vpop.f32.mrf.mxu0
    %v5262 = vadd.f32 %v5248, %v5261
    %v5263 = vpop.f32.mrf.mxu0
    %v5264 = vadd.f32 %v5250, %v5263
    %5265 = vdwg.mxu0
    %5266 = vmatpush.bf16.msra.mxu0 %v4671
    %5267 = vmatpush.bf16.msra.mxu0 %v4667
    %5268 = vmatpush.bf16.msra.mxu0 %v4663
    %5269 = vmatpush.bf16.msra.mxu0 %v4659
    %5270 = vmatpush.bf16.msra.mxu0 %v4655
    %5271 = vmatpush.bf16.msra.mxu0 %v4651
    %5272 = vmatpush.bf16.msra.mxu0 %v4647
    %5273 = vmatpush.bf16.msra.mxu0 %v4643
    %5274 = vmatmul.bf16.gmra.mxu0 %v3600
    %v5275 = vpop.f32.mrf.mxu0
    %v5276 = vadd.f32 %v3867, %v5275
    %v5277 = vpop.f32.mrf.mxu0
    %v5278 = vadd.f32 %v3867, %v5277
    %5279 = vdwg.mxu0
    %5280 = vmatpush.bf16.msra.mxu0 %v4703
    %5281 = vmatpush.bf16.msra.mxu0 %v4699
    %5282 = vmatpush.bf16.msra.mxu0 %v4695
    %5283 = vmatpush.bf16.msra.mxu0 %v4691
    %5284 = vmatpush.bf16.msra.mxu0 %v4687
    %5285 = vmatpush.bf16.msra.mxu0 %v4683
    %5286 = vmatpush.bf16.msra.mxu0 %v4679
    %5287 = vmatpush.bf16.msra.mxu0 %v4675
    %5288 = vmatmul.bf16.gmra.mxu0 %v3601
    %v5289 = vpop.f32.mrf.mxu0
    %v5290 = vadd.f32 %v5276, %v5289
    %v5291 = vpop.f32.mrf.mxu0
    %v5292 = vadd.f32 %v5278, %v5291
    %5293 = vdwg.mxu0
    %5294 = vmatpush.bf16.msra.mxu0 %v4735
    %5295 = vmatpush.bf16.msra.mxu0 %v4731
    %5296 = vmatpush.bf16.msra.mxu0 %v4727
    %5297 = vmatpush.bf16.msra.mxu0 %v4723
    %5298 = vmatpush.bf16.msra.mxu0 %v4719
    %5299 = vmatpush.bf16.msra.mxu0 %v4715
    %5300 = vmatpush.bf16.msra.mxu0 %v4711
    %5301 = vmatpush.bf16.msra.mxu0 %v4707
    %5302 = vmatmul.bf16.gmra.mxu0 %v3602
    %v5303 = vpop.f32.mrf.mxu0
    %v5304 = vadd.f32 %v5290, %v5303
    %v5305 = vpop.f32.mrf.mxu0
    %v5306 = vadd.f32 %v5292, %v5305
    %5307 = vdwg.mxu0
    %5308 = vmatpush.bf16.msra.mxu0 %v4767
    %5309 = vmatpush.bf16.msra.mxu0 %v4763
    %5310 = vmatpush.bf16.msra.mxu0 %v4759
    %5311 = vmatpush.bf16.msra.mxu0 %v4755
    %5312 = vmatpush.bf16.msra.mxu0 %v4751
    %5313 = vmatpush.bf16.msra.mxu0 %v4747
    %5314 = vmatpush.bf16.msra.mxu0 %v4743
    %5315 = vmatpush.bf16.msra.mxu0 %v4739
    %5316 = vmatmul.bf16.gmra.mxu0 %v3603
    %v5317 = vpop.f32.mrf.mxu0
    %v5318 = vadd.f32 %v5304, %v5317
    %v5319 = vpop.f32.mrf.mxu0
    %v5320 = vadd.f32 %v5306, %v5319
    %5321 = vdwg.mxu0
    %5322 = vmatpush.bf16.msra.mxu0 %v4799
    %5323 = vmatpush.bf16.msra.mxu0 %v4795
    %5324 = vmatpush.bf16.msra.mxu0 %v4791
    %5325 = vmatpush.bf16.msra.mxu0 %v4787
    %5326 = vmatpush.bf16.msra.mxu0 %v4783
    %5327 = vmatpush.bf16.msra.mxu0 %v4779
    %5328 = vmatpush.bf16.msra.mxu0 %v4775
    %5329 = vmatpush.bf16.msra.mxu0 %v4771
    %5330 = vmatmul.bf16.gmra.mxu0 %v3604
    %v5331 = vpop.f32.mrf.mxu0
    %v5332 = vadd.f32 %v5318, %v5331
    %v5333 = vpop.f32.mrf.mxu0
    %v5334 = vadd.f32 %v5320, %v5333
    %5335 = vdwg.mxu0
    %5336 = vmatpush.bf16.msra.mxu0 %v4831
    %5337 = vmatpush.bf16.msra.mxu0 %v4827
    %5338 = vmatpush.bf16.msra.mxu0 %v4823
    %5339 = vmatpush.bf16.msra.mxu0 %v4819
    %5340 = vmatpush.bf16.msra.mxu0 %v4815
    %5341 = vmatpush.bf16.msra.mxu0 %v4811
    %5342 = vmatpush.bf16.msra.mxu0 %v4807
    %5343 = vmatpush.bf16.msra.mxu0 %v4803
    %5344 = vmatmul.bf16.gmra.mxu0 %v3605
    %v5345 = vpop.f32.mrf.mxu0
    %v5346 = vadd.f32 %v5332, %v5345
    %v5347 = vpop.f32.mrf.mxu0
    %v5348 = vadd.f32 %v5334, %v5347
    %5349 = vdwg.mxu0
    %5350 = vmatpush.bf16.msra.mxu0 %v4863
    %5351 = vmatpush.bf16.msra.mxu0 %v4859
    %5352 = vmatpush.bf16.msra.mxu0 %v4855
    %5353 = vmatpush.bf16.msra.mxu0 %v4851
    %5354 = vmatpush.bf16.msra.mxu0 %v4847
    %5355 = vmatpush.bf16.msra.mxu0 %v4843
    %5356 = vmatpush.bf16.msra.mxu0 %v4839
    %5357 = vmatpush.bf16.msra.mxu0 %v4835
    %5358 = vmatmul.bf16.gmra.mxu0 %v3606
    %v5359 = vpop.f32.mrf.mxu0
    %v5360 = vadd.f32 %v5346, %v5359
    %v5361 = vpop.f32.mrf.mxu0
    %v5362 = vadd.f32 %v5348, %v5361
    %5363 = vdwg.mxu0
    %5364 = vmatpush.bf16.msra.mxu0 %v4895
    %5365 = vmatpush.bf16.msra.mxu0 %v4891
    %5366 = vmatpush.bf16.msra.mxu0 %v4887
    %5367 = vmatpush.bf16.msra.mxu0 %v4883
    %5368 = vmatpush.bf16.msra.mxu0 %v4879
    %5369 = vmatpush.bf16.msra.mxu0 %v4875
    %5370 = vmatpush.bf16.msra.mxu0 %v4871
    %5371 = vmatpush.bf16.msra.mxu0 %v4867
    %5372 = vmatmul.bf16.gmra.mxu0 %v3607
    %v5373 = vpop.f32.mrf.mxu0
    %v5374 = vadd.f32 %v5360, %v5373
    %v5375 = vpop.f32.mrf.mxu0
    %v5376 = vadd.f32 %v5362, %v5375
    %5377 = vdwg.mxu0
    %5378 = vmatpush.bf16.msra.mxu0 %v4672
    %5379 = vmatpush.bf16.msra.mxu0 %v4668
    %5380 = vmatpush.bf16.msra.mxu0 %v4664
    %5381 = vmatpush.bf16.msra.mxu0 %v4660
    %5382 = vmatpush.bf16.msra.mxu0 %v4656
    %5383 = vmatpush.bf16.msra.mxu0 %v4652
    %5384 = vmatpush.bf16.msra.mxu0 %v4648
    %5385 = vmatpush.bf16.msra.mxu0 %v4644
    %5386 = vmatmul.bf16.gmra.mxu0 %v3600
    %v5387 = vpop.f32.mrf.mxu0
    %v5388 = vadd.f32 %v3868, %v5387
    %v5389 = vpop.f32.mrf.mxu0
    %v5390 = vadd.f32 %v3868, %v5389
    %5391 = vdwg.mxu0
    %5392 = vmatpush.bf16.msra.mxu0 %v4704
    %5393 = vmatpush.bf16.msra.mxu0 %v4700
    %5394 = vmatpush.bf16.msra.mxu0 %v4696
    %5395 = vmatpush.bf16.msra.mxu0 %v4692
    %5396 = vmatpush.bf16.msra.mxu0 %v4688
    %5397 = vmatpush.bf16.msra.mxu0 %v4684
    %5398 = vmatpush.bf16.msra.mxu0 %v4680
    %5399 = vmatpush.bf16.msra.mxu0 %v4676
    %5400 = vmatmul.bf16.gmra.mxu0 %v3601
    %v5401 = vpop.f32.mrf.mxu0
    %v5402 = vadd.f32 %v5388, %v5401
    %v5403 = vpop.f32.mrf.mxu0
    %v5404 = vadd.f32 %v5390, %v5403
    %5405 = vdwg.mxu0
    %5406 = vmatpush.bf16.msra.mxu0 %v4736
    %5407 = vmatpush.bf16.msra.mxu0 %v4732
    %5408 = vmatpush.bf16.msra.mxu0 %v4728
    %5409 = vmatpush.bf16.msra.mxu0 %v4724
    %5410 = vmatpush.bf16.msra.mxu0 %v4720
    %5411 = vmatpush.bf16.msra.mxu0 %v4716
    %5412 = vmatpush.bf16.msra.mxu0 %v4712
    %5413 = vmatpush.bf16.msra.mxu0 %v4708
    %5414 = vmatmul.bf16.gmra.mxu0 %v3602
    %v5415 = vpop.f32.mrf.mxu0
    %v5416 = vadd.f32 %v5402, %v5415
    %v5417 = vpop.f32.mrf.mxu0
    %v5418 = vadd.f32 %v5404, %v5417
    %5419 = vdwg.mxu0
    %5420 = vmatpush.bf16.msra.mxu0 %v4768
    %5421 = vmatpush.bf16.msra.mxu0 %v4764
    %5422 = vmatpush.bf16.msra.mxu0 %v4760
    %5423 = vmatpush.bf16.msra.mxu0 %v4756
    %5424 = vmatpush.bf16.msra.mxu0 %v4752
    %5425 = vmatpush.bf16.msra.mxu0 %v4748
    %5426 = vmatpush.bf16.msra.mxu0 %v4744
    %5427 = vmatpush.bf16.msra.mxu0 %v4740
    %5428 = vmatmul.bf16.gmra.mxu0 %v3603
    %v5429 = vpop.f32.mrf.mxu0
    %v5430 = vadd.f32 %v5416, %v5429
    %v5431 = vpop.f32.mrf.mxu0
    %v5432 = vadd.f32 %v5418, %v5431
    %5433 = vdwg.mxu0
    %5434 = vmatpush.bf16.msra.mxu0 %v4800
    %5435 = vmatpush.bf16.msra.mxu0 %v4796
    %5436 = vmatpush.bf16.msra.mxu0 %v4792
    %5437 = vmatpush.bf16.msra.mxu0 %v4788
    %5438 = vmatpush.bf16.msra.mxu0 %v4784
    %5439 = vmatpush.bf16.msra.mxu0 %v4780
    %5440 = vmatpush.bf16.msra.mxu0 %v4776
    %5441 = vmatpush.bf16.msra.mxu0 %v4772
    %5442 = vmatmul.bf16.gmra.mxu0 %v3604
    %v5443 = vpop.f32.mrf.mxu0
    %v5444 = vadd.f32 %v5430, %v5443
    %v5445 = vpop.f32.mrf.mxu0
    %v5446 = vadd.f32 %v5432, %v5445
    %5447 = vdwg.mxu0
    %5448 = vmatpush.bf16.msra.mxu0 %v4832
    %5449 = vmatpush.bf16.msra.mxu0 %v4828
    %5450 = vmatpush.bf16.msra.mxu0 %v4824
    %5451 = vmatpush.bf16.msra.mxu0 %v4820
    %5452 = vmatpush.bf16.msra.mxu0 %v4816
    %5453 = vmatpush.bf16.msra.mxu0 %v4812
    %5454 = vmatpush.bf16.msra.mxu0 %v4808
    %5455 = vmatpush.bf16.msra.mxu0 %v4804
    %5456 = vmatmul.bf16.gmra.mxu0 %v3605
    %v5457 = vpop.f32.mrf.mxu0
    %v5458 = vadd.f32 %v5444, %v5457
    %v5459 = vpop.f32.mrf.mxu0
    %v5460 = vadd.f32 %v5446, %v5459
    %5461 = vdwg.mxu0
    %5462 = vmatpush.bf16.msra.mxu0 %v4864
    %5463 = vmatpush.bf16.msra.mxu0 %v4860
    %5464 = vmatpush.bf16.msra.mxu0 %v4856
    %5465 = vmatpush.bf16.msra.mxu0 %v4852
    %5466 = vmatpush.bf16.msra.mxu0 %v4848
    %5467 = vmatpush.bf16.msra.mxu0 %v4844
    %5468 = vmatpush.bf16.msra.mxu0 %v4840
    %5469 = vmatpush.bf16.msra.mxu0 %v4836
    %5470 = vmatmul.bf16.gmra.mxu0 %v3606
    %v5471 = vpop.f32.mrf.mxu0
    %v5472 = vadd.f32 %v5458, %v5471
    %v5473 = vpop.f32.mrf.mxu0
    %v5474 = vadd.f32 %v5460, %v5473
    %5475 = vdwg.mxu0
    %5476 = vmatpush.bf16.msra.mxu0 %v4896
    %5477 = vmatpush.bf16.msra.mxu0 %v4892
    %5478 = vmatpush.bf16.msra.mxu0 %v4888
    %5479 = vmatpush.bf16.msra.mxu0 %v4884
    %5480 = vmatpush.bf16.msra.mxu0 %v4880
    %5481 = vmatpush.bf16.msra.mxu0 %v4876
    %5482 = vmatpush.bf16.msra.mxu0 %v4872
    %5483 = vmatpush.bf16.msra.mxu0 %v4868
    %5484 = vmatmul.bf16.gmra.mxu0 %v3607
    %v5485 = vpop.f32.mrf.mxu0
    %v5486 = vadd.f32 %v5472, %v5485
    %v5487 = vpop.f32.mrf.mxu0
    %v5488 = vadd.f32 %v5474, %v5487
    %5489 = vdwg.mxu0
    %5490 = vmatpush.bf16.msra.mxu0 %v4673
    %5491 = vmatpush.bf16.msra.mxu0 %v4669
    %5492 = vmatpush.bf16.msra.mxu0 %v4665
    %5493 = vmatpush.bf16.msra.mxu0 %v4661
    %5494 = vmatpush.bf16.msra.mxu0 %v4657
    %5495 = vmatpush.bf16.msra.mxu0 %v4653
    %5496 = vmatpush.bf16.msra.mxu0 %v4649
    %5497 = vmatpush.bf16.msra.mxu0 %v4645
    %5498 = vmatmul.bf16.gmra.mxu0 %v3600
    %v5499 = vpop.f32.mrf.mxu0
    %v5500 = vadd.f32 %v3869, %v5499
    %v5501 = vpop.f32.mrf.mxu0
    %v5502 = vadd.f32 %v3869, %v5501
    %5503 = vdwg.mxu0
    %5504 = vmatpush.bf16.msra.mxu0 %v4705
    %5505 = vmatpush.bf16.msra.mxu0 %v4701
    %5506 = vmatpush.bf16.msra.mxu0 %v4697
    %5507 = vmatpush.bf16.msra.mxu0 %v4693
    %5508 = vmatpush.bf16.msra.mxu0 %v4689
    %5509 = vmatpush.bf16.msra.mxu0 %v4685
    %5510 = vmatpush.bf16.msra.mxu0 %v4681
    %5511 = vmatpush.bf16.msra.mxu0 %v4677
    %5512 = vmatmul.bf16.gmra.mxu0 %v3601
    %v5513 = vpop.f32.mrf.mxu0
    %v5514 = vadd.f32 %v5500, %v5513
    %v5515 = vpop.f32.mrf.mxu0
    %v5516 = vadd.f32 %v5502, %v5515
    %5517 = vdwg.mxu0
    %5518 = vmatpush.bf16.msra.mxu0 %v4737
    %5519 = vmatpush.bf16.msra.mxu0 %v4733
    %5520 = vmatpush.bf16.msra.mxu0 %v4729
    %5521 = vmatpush.bf16.msra.mxu0 %v4725
    %5522 = vmatpush.bf16.msra.mxu0 %v4721
    %5523 = vmatpush.bf16.msra.mxu0 %v4717
    %5524 = vmatpush.bf16.msra.mxu0 %v4713
    %5525 = vmatpush.bf16.msra.mxu0 %v4709
    %5526 = vmatmul.bf16.gmra.mxu0 %v3602
    %v5527 = vpop.f32.mrf.mxu0
    %v5528 = vadd.f32 %v5514, %v5527
    %v5529 = vpop.f32.mrf.mxu0
    %v5530 = vadd.f32 %v5516, %v5529
    %5531 = vdwg.mxu0
    %5532 = vmatpush.bf16.msra.mxu0 %v4769
    %5533 = vmatpush.bf16.msra.mxu0 %v4765
    %5534 = vmatpush.bf16.msra.mxu0 %v4761
    %5535 = vmatpush.bf16.msra.mxu0 %v4757
    %5536 = vmatpush.bf16.msra.mxu0 %v4753
    %5537 = vmatpush.bf16.msra.mxu0 %v4749
    %5538 = vmatpush.bf16.msra.mxu0 %v4745
    %5539 = vmatpush.bf16.msra.mxu0 %v4741
    %5540 = vmatmul.bf16.gmra.mxu0 %v3603
    %v5541 = vpop.f32.mrf.mxu0
    %v5542 = vadd.f32 %v5528, %v5541
    %v5543 = vpop.f32.mrf.mxu0
    %v5544 = vadd.f32 %v5530, %v5543
    %5545 = vdwg.mxu0
    %5546 = vmatpush.bf16.msra.mxu0 %v4801
    %5547 = vmatpush.bf16.msra.mxu0 %v4797
    %5548 = vmatpush.bf16.msra.mxu0 %v4793
    %5549 = vmatpush.bf16.msra.mxu0 %v4789
    %5550 = vmatpush.bf16.msra.mxu0 %v4785
    %5551 = vmatpush.bf16.msra.mxu0 %v4781
    %5552 = vmatpush.bf16.msra.mxu0 %v4777
    %5553 = vmatpush.bf16.msra.mxu0 %v4773
    %5554 = vmatmul.bf16.gmra.mxu0 %v3604
    %v5555 = vpop.f32.mrf.mxu0
    %v5556 = vadd.f32 %v5542, %v5555
    %v5557 = vpop.f32.mrf.mxu0
    %v5558 = vadd.f32 %v5544, %v5557
    %5559 = vdwg.mxu0
    %5560 = vmatpush.bf16.msra.mxu0 %v4833
    %5561 = vmatpush.bf16.msra.mxu0 %v4829
    %5562 = vmatpush.bf16.msra.mxu0 %v4825
    %5563 = vmatpush.bf16.msra.mxu0 %v4821
    %5564 = vmatpush.bf16.msra.mxu0 %v4817
    %5565 = vmatpush.bf16.msra.mxu0 %v4813
    %5566 = vmatpush.bf16.msra.mxu0 %v4809
    %5567 = vmatpush.bf16.msra.mxu0 %v4805
    %5568 = vmatmul.bf16.gmra.mxu0 %v3605
    %v5569 = vpop.f32.mrf.mxu0
    %v5570 = vadd.f32 %v5556, %v5569
    %v5571 = vpop.f32.mrf.mxu0
    %v5572 = vadd.f32 %v5558, %v5571
    %5573 = vdwg.mxu0
    %5574 = vmatpush.bf16.msra.mxu0 %v4865
    %5575 = vmatpush.bf16.msra.mxu0 %v4861
    %5576 = vmatpush.bf16.msra.mxu0 %v4857
    %5577 = vmatpush.bf16.msra.mxu0 %v4853
    %5578 = vmatpush.bf16.msra.mxu0 %v4849
    %5579 = vmatpush.bf16.msra.mxu0 %v4845
    %5580 = vmatpush.bf16.msra.mxu0 %v4841
    %5581 = vmatpush.bf16.msra.mxu0 %v4837
    %5582 = vmatmul.bf16.gmra.mxu0 %v3606
    %v5583 = vpop.f32.mrf.mxu0
    %v5584 = vadd.f32 %v5570, %v5583
    %v5585 = vpop.f32.mrf.mxu0
    %v5586 = vadd.f32 %v5572, %v5585
    %5587 = vdwg.mxu0
    %5588 = vmatpush.bf16.msra.mxu0 %v4897
    %5589 = vmatpush.bf16.msra.mxu0 %v4893
    %5590 = vmatpush.bf16.msra.mxu0 %v4889
    %5591 = vmatpush.bf16.msra.mxu0 %v4885
    %5592 = vmatpush.bf16.msra.mxu0 %v4881
    %5593 = vmatpush.bf16.msra.mxu0 %v4877
    %5594 = vmatpush.bf16.msra.mxu0 %v4873
    %5595 = vmatpush.bf16.msra.mxu0 %v4869
    %5596 = vmatmul.bf16.gmra.mxu0 %v3607
    %v5597 = vpop.f32.mrf.mxu0
    %v5598 = vadd.f32 %v5584, %v5597
    %v5599 = vpop.f32.mrf.mxu0
    %v5600 = vadd.f32 %v5586, %v5599
    %5601 = vdwg.mxu0
    %vm5602 = vcmp.gt.f32.partialorder %v5262, 0.0
    %vm5603 = vcmp.gt.f32.partialorder %v5374, 0.0
    %vm5604 = vcmp.gt.f32.partialorder %v5486, 0.0
    %vm5605 = vcmp.gt.f32.partialorder %v5598, 0.0
    %vm5606 = vcmp.gt.f32.partialorder %v5264, 0.0
    %vm5607 = vcmp.gt.f32.partialorder %v5376, 0.0
    %vm5608 = vcmp.gt.f32.partialorder %v5488, 0.0
    %vm5609 = vcmp.gt.f32.partialorder %v5600, 0.0
    %v5610 = vmul.f32 %v5262, 0.2
    %v5611 = vmul.f32 %v5374, 0.2
    %v5612 = vmul.f32 %v5486, 0.2
    %v5613 = vmul.f32 %v5598, 0.2
    %v5614 = vmul.f32 %v5264, 0.2
    %v5615 = vmul.f32 %v5376, 0.2
    %v5616 = vmul.f32 %v5488, 0.2
    %v5617 = vmul.f32 %v5600, 0.2
    %v5618 = vsel %vm5602, %v5262, %v5610
    %v5619 = vsel %vm5603, %v5374, %v5611
    %v5620 = vsel %vm5604, %v5486, %v5612
    %v5621 = vsel %vm5605, %v5598, %v5613
    %v5622 = vsel %vm5606, %v5264, %v5614
    %v5623 = vsel %vm5607, %v5376, %v5615
    %v5624 = vsel %vm5608, %v5488, %v5616
    %v5625 = vsel %vm5609, %v5600, %v5617
    %v5626 = vpack.c.bf16 %v5622, %v5618
    %v5627 = vpack.c.bf16 %v5623, %v5619
    %v5628 = vpack.c.bf16 %v5624, %v5620
    %v5629 = vpack.c.bf16 %v5625, %v5621
    %v5630 = vld [vmem:[#allocation15] sm:$0xff]
    %v5631 = vld [vmem:[#allocation15 + $0x8] sm:$0xff]
    %v5632 = vld [vmem:[#allocation15 + $0x10] sm:$0xff]
    %v5633 = vld [vmem:[#allocation15 + $0x18] sm:$0xff]
    %v5634 = vld [vmem:[#allocation15 + $0x20] sm:$0xff]
    %v5635 = vld [vmem:[#allocation15 + $0x28] sm:$0xff]
    %v5636 = vld [vmem:[#allocation15 + $0x30] sm:$0xff]
    %v5637 = vld [vmem:[#allocation15 + $0x38] sm:$0xff]
    %v5638 = vld [vmem:[#allocation15 + $0x40] sm:$0xff]
    %v5639 = vld [vmem:[#allocation15 + $0x48] sm:$0xff]
    %v5640 = vld [vmem:[#allocation15 + $0x50] sm:$0xff]
    %v5641 = vld [vmem:[#allocation15 + $0x58] sm:$0xff]
    %v5642 = vld [vmem:[#allocation15 + $0x60] sm:$0xff]
    %v5643 = vld [vmem:[#allocation15 + $0x68] sm:$0xff]
    %v5644 = vld [vmem:[#allocation15 + $0x70] sm:$0xff]
    %v5645 = vld [vmem:[#allocation15 + $0x78] sm:$0xff]
    %v5646 = vld [vmem:[#allocation15 + $0x80] sm:$0xff]
    %v5647 = vld [vmem:[#allocation15 + $0x88] sm:$0xff]
    %v5648 = vld [vmem:[#allocation15 + $0x90] sm:$0xff]
    %v5649 = vld [vmem:[#allocation15 + $0x98] sm:$0xff]
    %v5650 = vld [vmem:[#allocation15 + $0xa0] sm:$0xff]
    %v5651 = vld [vmem:[#allocation15 + $0xa8] sm:$0xff]
    %v5652 = vld [vmem:[#allocation15 + $0xb0] sm:$0xff]
    %v5653 = vld [vmem:[#allocation15 + $0xb8] sm:$0xff]
    %v5654 = vld [vmem:[#allocation15 + $0xc0] sm:$0xff]
    %v5655 = vld [vmem:[#allocation15 + $0xc8] sm:$0xff]
    %v5656 = vld [vmem:[#allocation15 + $0xd0] sm:$0xff]
    %v5657 = vld [vmem:[#allocation15 + $0xd8] sm:$0xff]
    %v5658 = vld [vmem:[#allocation15 + $0xe0] sm:$0xff]
    %v5659 = vld [vmem:[#allocation15 + $0xe8] sm:$0xff]
    %v5660 = vld [vmem:[#allocation15 + $0xf0] sm:$0xff]
    %v5661 = vld [vmem:[#allocation15 + $0xf8] sm:$0xff]
    %v5662 = vld [vmem:[#allocation15 + $0x100] sm:$0xff]
    %v5663 = vld [vmem:[#allocation15 + $0x108] sm:$0xff]
    %v5664 = vld [vmem:[#allocation15 + $0x110] sm:$0xff]
    %v5665 = vld [vmem:[#allocation15 + $0x118] sm:$0xff]
    %v5666 = vld [vmem:[#allocation15 + $0x120] sm:$0xff]
    %v5667 = vld [vmem:[#allocation15 + $0x128] sm:$0xff]
    %v5668 = vld [vmem:[#allocation15 + $0x130] sm:$0xff]
    %v5669 = vld [vmem:[#allocation15 + $0x138] sm:$0xff]
    %v5670 = vld [vmem:[#allocation15 + $0x140] sm:$0xff]
    %v5671 = vld [vmem:[#allocation15 + $0x148] sm:$0xff]
    %v5672 = vld [vmem:[#allocation15 + $0x150] sm:$0xff]
    %v5673 = vld [vmem:[#allocation15 + $0x158] sm:$0xff]
    %v5674 = vld [vmem:[#allocation15 + $0x160] sm:$0xff]
    %v5675 = vld [vmem:[#allocation15 + $0x168] sm:$0xff]
    %v5676 = vld [vmem:[#allocation15 + $0x170] sm:$0xff]
    %v5677 = vld [vmem:[#allocation15 + $0x178] sm:$0xff]
    %v5678 = vld [vmem:[#allocation15 + $0x180] sm:$0xff]
    %v5679 = vld [vmem:[#allocation15 + $0x188] sm:$0xff]
    %v5680 = vld [vmem:[#allocation15 + $0x190] sm:$0xff]
    %v5681 = vld [vmem:[#allocation15 + $0x198] sm:$0xff]
    %v5682 = vld [vmem:[#allocation15 + $0x1a0] sm:$0xff]
    %v5683 = vld [vmem:[#allocation15 + $0x1a8] sm:$0xff]
    %v5684 = vld [vmem:[#allocation15 + $0x1b0] sm:$0xff]
    %v5685 = vld [vmem:[#allocation15 + $0x1b8] sm:$0xff]
    %v5686 = vld [vmem:[#allocation15 + $0x1c0] sm:$0xff]
    %v5687 = vld [vmem:[#allocation15 + $0x1c8] sm:$0xff]
    %v5688 = vld [vmem:[#allocation15 + $0x1d0] sm:$0xff]
    %v5689 = vld [vmem:[#allocation15 + $0x1d8] sm:$0xff]
    %v5690 = vld [vmem:[#allocation15 + $0x1e0] sm:$0xff]
    %v5691 = vld [vmem:[#allocation15 + $0x1e8] sm:$0xff]
    %v5692 = vld [vmem:[#allocation15 + $0x1f0] sm:$0xff]
    %v5693 = vld [vmem:[#allocation15 + $0x1f8] sm:$0xff]
    %v5694 = vld [vmem:[#allocation17] sm:$0x3]
    %v5696 = vperm.slane %v5694, 0
    %v5697 = vperm.slane %v5694, 1
    %v5764 = vunpack.c.l.b16 %v5630
    %v5765 = vunpack.c.h.b16 %v5630
    %v5766 = vunpack.c.l.b16 %v5631
    %v5767 = vunpack.c.h.b16 %v5631
    %v5768 = vunpack.c.l.b16 %v5632
    %v5769 = vunpack.c.h.b16 %v5632
    %v5770 = vunpack.c.l.b16 %v5633
    %v5771 = vunpack.c.h.b16 %v5633
    %v5772 = vunpack.c.l.b16 %v5634
    %v5773 = vunpack.c.h.b16 %v5634
    %v5774 = vunpack.c.l.b16 %v5635
    %v5775 = vunpack.c.h.b16 %v5635
    %v5776 = vunpack.c.l.b16 %v5636
    %v5777 = vunpack.c.h.b16 %v5636
    %v5778 = vunpack.c.l.b16 %v5637
    %v5779 = vunpack.c.h.b16 %v5637
    %v5780 = vunpack.c.l.b16 %v5638
    %v5781 = vunpack.c.h.b16 %v5638
    %v5782 = vunpack.c.l.b16 %v5639
    %v5783 = vunpack.c.h.b16 %v5639
    %v5784 = vunpack.c.l.b16 %v5640
    %v5785 = vunpack.c.h.b16 %v5640
    %v5786 = vunpack.c.l.b16 %v5641
    %v5787 = vunpack.c.h.b16 %v5641
    %v5788 = vunpack.c.l.b16 %v5642
    %v5789 = vunpack.c.h.b16 %v5642
    %v5790 = vunpack.c.l.b16 %v5643
    %v5791 = vunpack.c.h.b16 %v5643
    %v5792 = vunpack.c.l.b16 %v5644
    %v5793 = vunpack.c.h.b16 %v5644
    %v5794 = vunpack.c.l.b16 %v5645
    %v5795 = vunpack.c.h.b16 %v5645
    %v5796 = vunpack.c.l.b16 %v5646
    %v5797 = vunpack.c.h.b16 %v5646
    %v5798 = vunpack.c.l.b16 %v5647
    %v5799 = vunpack.c.h.b16 %v5647
    %v5800 = vunpack.c.l.b16 %v5648
    %v5801 = vunpack.c.h.b16 %v5648
    %v5802 = vunpack.c.l.b16 %v5649
    %v5803 = vunpack.c.h.b16 %v5649
    %v5804 = vunpack.c.l.b16 %v5650
    %v5805 = vunpack.c.h.b16 %v5650
    %v5806 = vunpack.c.l.b16 %v5651
    %v5807 = vunpack.c.h.b16 %v5651
    %v5808 = vunpack.c.l.b16 %v5652
    %v5809 = vunpack.c.h.b16 %v5652
    %v5810 = vunpack.c.l.b16 %v5653
    %v5811 = vunpack.c.h.b16 %v5653
    %v5812 = vunpack.c.l.b16 %v5654
    %v5813 = vunpack.c.h.b16 %v5654
    %v5814 = vunpack.c.l.b16 %v5655
    %v5815 = vunpack.c.h.b16 %v5655
    %v5816 = vunpack.c.l.b16 %v5656
    %v5817 = vunpack.c.h.b16 %v5656
    %v5818 = vunpack.c.l.b16 %v5657
    %v5819 = vunpack.c.h.b16 %v5657
    %v5820 = vunpack.c.l.b16 %v5658
    %v5821 = vunpack.c.h.b16 %v5658
    %v5822 = vunpack.c.l.b16 %v5659
    %v5823 = vunpack.c.h.b16 %v5659
    %v5824 = vunpack.c.l.b16 %v5660
    %v5825 = vunpack.c.h.b16 %v5660
    %v5826 = vunpack.c.l.b16 %v5661
    %v5827 = vunpack.c.h.b16 %v5661
    %v5828 = vunpack.c.l.b16 %v5662
    %v5829 = vunpack.c.h.b16 %v5662
    %v5830 = vunpack.c.l.b16 %v5663
    %v5831 = vunpack.c.h.b16 %v5663
    %v5832 = vunpack.c.l.b16 %v5664
    %v5833 = vunpack.c.h.b16 %v5664
    %v5834 = vunpack.c.l.b16 %v5665
    %v5835 = vunpack.c.h.b16 %v5665
    %v5836 = vunpack.c.l.b16 %v5666
    %v5837 = vunpack.c.h.b16 %v5666
    %v5838 = vunpack.c.l.b16 %v5667
    %v5839 = vunpack.c.h.b16 %v5667
    %v5840 = vunpack.c.l.b16 %v5668
    %v5841 = vunpack.c.h.b16 %v5668
    %v5842 = vunpack.c.l.b16 %v5669
    %v5843 = vunpack.c.h.b16 %v5669
    %v5844 = vunpack.c.l.b16 %v5670
    %v5845 = vunpack.c.h.b16 %v5670
    %v5846 = vunpack.c.l.b16 %v5671
    %v5847 = vunpack.c.h.b16 %v5671
    %v5848 = vunpack.c.l.b16 %v5672
    %v5849 = vunpack.c.h.b16 %v5672
    %v5850 = vunpack.c.l.b16 %v5673
    %v5851 = vunpack.c.h.b16 %v5673
    %v5852 = vunpack.c.l.b16 %v5674
    %v5853 = vunpack.c.h.b16 %v5674
    %v5854 = vunpack.c.l.b16 %v5675
    %v5855 = vunpack.c.h.b16 %v5675
    %v5856 = vunpack.c.l.b16 %v5676
    %v5857 = vunpack.c.h.b16 %v5676
    %v5858 = vunpack.c.l.b16 %v5677
    %v5859 = vunpack.c.h.b16 %v5677
    %v5860 = vunpack.c.l.b16 %v5678
    %v5861 = vunpack.c.h.b16 %v5678
    %v5862 = vunpack.c.l.b16 %v5679
    %v5863 = vunpack.c.h.b16 %v5679
    %v5864 = vunpack.c.l.b16 %v5680
    %v5865 = vunpack.c.h.b16 %v5680
    %v5866 = vunpack.c.l.b16 %v5681
    %v5867 = vunpack.c.h.b16 %v5681
    %v5868 = vunpack.c.l.b16 %v5682
    %v5869 = vunpack.c.h.b16 %v5682
    %v5870 = vunpack.c.l.b16 %v5683
    %v5871 = vunpack.c.h.b16 %v5683
    %v5872 = vunpack.c.l.b16 %v5684
    %v5873 = vunpack.c.h.b16 %v5684
    %v5874 = vunpack.c.l.b16 %v5685
    %v5875 = vunpack.c.h.b16 %v5685
    %v5876 = vunpack.c.l.b16 %v5686
    %v5877 = vunpack.c.h.b16 %v5686
    %v5878 = vunpack.c.l.b16 %v5687
    %v5879 = vunpack.c.h.b16 %v5687
    %v5880 = vunpack.c.l.b16 %v5688
    %v5881 = vunpack.c.h.b16 %v5688
    %v5882 = vunpack.c.l.b16 %v5689
    %v5883 = vunpack.c.h.b16 %v5689
    %v5884 = vunpack.c.l.b16 %v5690
    %v5885 = vunpack.c.h.b16 %v5690
    %v5886 = vunpack.c.l.b16 %v5691
    %v5887 = vunpack.c.h.b16 %v5691
    %v5888 = vunpack.c.l.b16 %v5692
    %v5889 = vunpack.c.h.b16 %v5692
    %v5890 = vunpack.c.l.b16 %v5693
    %v5891 = vunpack.c.h.b16 %v5693
    %v5892 = vpack.c.b16 %v5766, %v5764
    %v5893 = vpack.c.b16 %v5767, %v5765
    %v5894 = vpack.c.b16 %v5770, %v5768
    %v5895 = vpack.c.b16 %v5771, %v5769
    %v5896 = vpack.c.b16 %v5774, %v5772
    %v5897 = vpack.c.b16 %v5775, %v5773
    %v5898 = vpack.c.b16 %v5778, %v5776
    %v5899 = vpack.c.b16 %v5779, %v5777
    %v5900 = vpack.c.b16 %v5782, %v5780
    %v5901 = vpack.c.b16 %v5783, %v5781
    %v5902 = vpack.c.b16 %v5786, %v5784
    %v5903 = vpack.c.b16 %v5787, %v5785
    %v5904 = vpack.c.b16 %v5790, %v5788
    %v5905 = vpack.c.b16 %v5791, %v5789
    %v5906 = vpack.c.b16 %v5794, %v5792
    %v5907 = vpack.c.b16 %v5795, %v5793
    %v5908 = vpack.c.b16 %v5798, %v5796
    %v5909 = vpack.c.b16 %v5799, %v5797
    %v5910 = vpack.c.b16 %v5802, %v5800
    %v5911 = vpack.c.b16 %v5803, %v5801
    %v5912 = vpack.c.b16 %v5806, %v5804
    %v5913 = vpack.c.b16 %v5807, %v5805
    %v5914 = vpack.c.b16 %v5810, %v5808
    %v5915 = vpack.c.b16 %v5811, %v5809
    %v5916 = vpack.c.b16 %v5814, %v5812
    %v5917 = vpack.c.b16 %v5815, %v5813
    %v5918 = vpack.c.b16 %v5818, %v5816
    %v5919 = vpack.c.b16 %v5819, %v5817
    %v5920 = vpack.c.b16 %v5822, %v5820
    %v5921 = vpack.c.b16 %v5823, %v5821
    %v5922 = vpack.c.b16 %v5826, %v5824
    %v5923 = vpack.c.b16 %v5827, %v5825
    %v5924 = vpack.c.b16 %v5830, %v5828
    %v5925 = vpack.c.b16 %v5831, %v5829
    %v5926 = vpack.c.b16 %v5834, %v5832
    %v5927 = vpack.c.b16 %v5835, %v5833
    %v5928 = vpack.c.b16 %v5838, %v5836
    %v5929 = vpack.c.b16 %v5839, %v5837
    %v5930 = vpack.c.b16 %v5842, %v5840
    %v5931 = vpack.c.b16 %v5843, %v5841
    %v5932 = vpack.c.b16 %v5846, %v5844
    %v5933 = vpack.c.b16 %v5847, %v5845
    %v5934 = vpack.c.b16 %v5850, %v5848
    %v5935 = vpack.c.b16 %v5851, %v5849
    %v5936 = vpack.c.b16 %v5854, %v5852
    %v5937 = vpack.c.b16 %v5855, %v5853
    %v5938 = vpack.c.b16 %v5858, %v5856
    %v5939 = vpack.c.b16 %v5859, %v5857
    %v5940 = vpack.c.b16 %v5862, %v5860
    %v5941 = vpack.c.b16 %v5863, %v5861
    %v5942 = vpack.c.b16 %v5866, %v5864
    %v5943 = vpack.c.b16 %v5867, %v5865
    %v5944 = vpack.c.b16 %v5870, %v5868
    %v5945 = vpack.c.b16 %v5871, %v5869
    %v5946 = vpack.c.b16 %v5874, %v5872
    %v5947 = vpack.c.b16 %v5875, %v5873
    %v5948 = vpack.c.b16 %v5878, %v5876
    %v5949 = vpack.c.b16 %v5879, %v5877
    %v5950 = vpack.c.b16 %v5882, %v5880
    %v5951 = vpack.c.b16 %v5883, %v5881
    %v5952 = vpack.c.b16 %v5886, %v5884
    %v5953 = vpack.c.b16 %v5887, %v5885
    %v5954 = vpack.c.b16 %v5890, %v5888
    %v5955 = vpack.c.b16 %v5891, %v5889
    %6020 = vmatpush.bf16.msra.mxu0 %v5906
    %6021 = vmatpush.bf16.msra.mxu0 %v5904
    %6022 = vmatpush.bf16.msra.mxu0 %v5902
    %6023 = vmatpush.bf16.msra.mxu0 %v5900
    %6024 = vmatpush.bf16.msra.mxu0 %v5898
    %6025 = vmatpush.bf16.msra.mxu0 %v5896
    %6026 = vmatpush.bf16.msra.mxu0 %v5894
    %6027 = vmatpush.bf16.msra.mxu0 %v5892
    %6028 = vmatmul.bf16.gmra.mxu0 %v5626
    %v6029 = vpop.f32.mrf.mxu0
    %v6030 = vadd.f32 %v5696, %v6029
    %v6031 = vpop.f32.mrf.mxu0
    %v6032 = vadd.f32 %v5696, %v6031
    %6033 = vdwg.mxu0
    %6034 = vmatpush.bf16.msra.mxu0 %v5922
    %6035 = vmatpush.bf16.msra.mxu0 %v5920
    %6036 = vmatpush.bf16.msra.mxu0 %v5918
    %6037 = vmatpush.bf16.msra.mxu0 %v5916
    %6038 = vmatpush.bf16.msra.mxu0 %v5914
    %6039 = vmatpush.bf16.msra.mxu0 %v5912
    %6040 = vmatpush.bf16.msra.mxu0 %v5910
    %6041 = vmatpush.bf16.msra.mxu0 %v5908
    %6042 = vmatmul.bf16.gmra.mxu0 %v5627
    %v6043 = vpop.f32.mrf.mxu0
    %v6044 = vadd.f32 %v6030, %v6043
    %v6045 = vpop.f32.mrf.mxu0
    %v6046 = vadd.f32 %v6032, %v6045
    %6047 = vdwg.mxu0
    %6048 = vmatpush.bf16.msra.mxu0 %v5938
    %6049 = vmatpush.bf16.msra.mxu0 %v5936
    %6050 = vmatpush.bf16.msra.mxu0 %v5934
    %6051 = vmatpush.bf16.msra.mxu0 %v5932
    %6052 = vmatpush.bf16.msra.mxu0 %v5930
    %6053 = vmatpush.bf16.msra.mxu0 %v5928
    %6054 = vmatpush.bf16.msra.mxu0 %v5926
    %6055 = vmatpush.bf16.msra.mxu0 %v5924
    %6056 = vmatmul.bf16.gmra.mxu0 %v5628
    %v6057 = vpop.f32.mrf.mxu0
    %v6058 = vadd.f32 %v6044, %v6057
    %v6059 = vpop.f32.mrf.mxu0
    %v6060 = vadd.f32 %v6046, %v6059
    %6061 = vdwg.mxu0
    %6062 = vmatpush.bf16.msra.mxu0 %v5954
    %6063 = vmatpush.bf16.msra.mxu0 %v5952
    %6064 = vmatpush.bf16.msra.mxu0 %v5950
    %6065 = vmatpush.bf16.msra.mxu0 %v5948
    %6066 = vmatpush.bf16.msra.mxu0 %v5946
    %6067 = vmatpush.bf16.msra.mxu0 %v5944
    %6068 = vmatpush.bf16.msra.mxu0 %v5942
    %6069 = vmatpush.bf16.msra.mxu0 %v5940
    %6070 = vmatmul.bf16.gmra.mxu0 %v5629
    %v6071 = vpop.f32.mrf.mxu0
    %v6072 = vadd.f32 %v6058, %v6071
    %v6073 = vpop.f32.mrf.mxu0
    %v6074 = vadd.f32 %v6060, %v6073
    %6075 = vdwg.mxu0
    %6076 = vmatpush.bf16.msra.mxu0 %v5907
    %6077 = vmatpush.bf16.msra.mxu0 %v5905
    %6078 = vmatpush.bf16.msra.mxu0 %v5903
    %6079 = vmatpush.bf16.msra.mxu0 %v5901
    %6080 = vmatpush.bf16.msra.mxu0 %v5899
    %6081 = vmatpush.bf16.msra.mxu0 %v5897
    %6082 = vmatpush.bf16.msra.mxu0 %v5895
    %6083 = vmatpush.bf16.msra.mxu0 %v5893
    %6084 = vmatmul.bf16.gmra.mxu0 %v5626
    %v6085 = vpop.f32.mrf.mxu0
    %v6086 = vadd.f32 %v5697, %v6085
    %v6087 = vpop.f32.mrf.mxu0
    %v6088 = vadd.f32 %v5697, %v6087
    %6089 = vdwg.mxu0
    %6090 = vmatpush.bf16.msra.mxu0 %v5923
    %6091 = vmatpush.bf16.msra.mxu0 %v5921
    %6092 = vmatpush.bf16.msra.mxu0 %v5919
    %6093 = vmatpush.bf16.msra.mxu0 %v5917
    %6094 = vmatpush.bf16.msra.mxu0 %v5915
    %6095 = vmatpush.bf16.msra.mxu0 %v5913
    %6096 = vmatpush.bf16.msra.mxu0 %v5911
    %6097 = vmatpush.bf16.msra.mxu0 %v5909
    %6098 = vmatmul.bf16.gmra.mxu0 %v5627
    %v6099 = vpop.f32.mrf.mxu0
    %v6100 = vadd.f32 %v6086, %v6099
    %v6101 = vpop.f32.mrf.mxu0
    %v6102 = vadd.f32 %v6088, %v6101
    %6103 = vdwg.mxu0
    %6104 = vmatpush.bf16.msra.mxu0 %v5939
    %6105 = vmatpush.bf16.msra.mxu0 %v5937
    %6106 = vmatpush.bf16.msra.mxu0 %v5935
    %6107 = vmatpush.bf16.msra.mxu0 %v5933
    %6108 = vmatpush.bf16.msra.mxu0 %v5931
    %6109 = vmatpush.bf16.msra.mxu0 %v5929
    %6110 = vmatpush.bf16.msra.mxu0 %v5927
    %6111 = vmatpush.bf16.msra.mxu0 %v5925
    %6112 = vmatmul.bf16.gmra.mxu0 %v5628
    %v6113 = vpop.f32.mrf.mxu0
    %v6114 = vadd.f32 %v6100, %v6113
    %v6115 = vpop.f32.mrf.mxu0
    %v6116 = vadd.f32 %v6102, %v6115
    %6117 = vdwg.mxu0
    %6118 = vmatpush.bf16.msra.mxu0 %v5955
    %6119 = vmatpush.bf16.msra.mxu0 %v5953
    %6120 = vmatpush.bf16.msra.mxu0 %v5951
    %6121 = vmatpush.bf16.msra.mxu0 %v5949
    %6122 = vmatpush.bf16.msra.mxu0 %v5947
    %6123 = vmatpush.bf16.msra.mxu0 %v5945
    %6124 = vmatpush.bf16.msra.mxu0 %v5943
    %6125 = vmatpush.bf16.msra.mxu0 %v5941
    %6126 = vmatmul.bf16.gmra.mxu0 %v5629
    %v6127 = vpop.f32.mrf.mxu0
    %v6128 = vadd.f32 %v6114, %v6127
    %v6129 = vpop.f32.mrf.mxu0
    %v6130 = vadd.f32 %v6116, %v6129
    %6131 = vdwg.mxu0
    %vm6132 = vcmp.gt.f32.partialorder %v6072, 0.0
    %vm6133 = vcmp.gt.f32.partialorder %v6128, 0.0
    %vm6134 = vcmp.gt.f32.partialorder %v6074, 0.0
    %vm6135 = vcmp.gt.f32.partialorder %v6130, 0.0
    %v6136 = vmul.f32 %v6072, 0.2
    %v6137 = vmul.f32 %v6128, 0.2
    %v6138 = vmul.f32 %v6074, 0.2
    %v6139 = vmul.f32 %v6130, 0.2
    %v6140 = vsel %vm6132, %v6072, %v6136
    %v6141 = vsel %vm6133, %v6128, %v6137
    %v6142 = vsel %vm6134, %v6074, %v6138
    %v6143 = vsel %vm6135, %v6130, %v6139
    %v6144 = vld [vmem:[#allocation18] sm:$0xff]
    %v6145 = vld [vmem:[#allocation18 + $0x8] sm:$0xff]
    %v6146 = vld [vmem:[#allocation18 + $0x10] sm:$0xff]
    %v6147 = vld [vmem:[#allocation18 + $0x18] sm:$0xff]
    %v6148 = vld [vmem:[#allocation18 + $0x20] sm:$0xff]
    %v6149 = vld [vmem:[#allocation18 + $0x28] sm:$0xff]
    %v6150 = vld [vmem:[#allocation18 + $0x30] sm:$0xff]
    %v6151 = vld [vmem:[#allocation18 + $0x38] sm:$0xff]
    %v6152 = vld [vmem:[#allocation18 + $0x40] sm:$0xff]
    %v6153 = vld [vmem:[#allocation18 + $0x48] sm:$0xff]
    %v6154 = vld [vmem:[#allocation18 + $0x50] sm:$0xff]
    %v6155 = vld [vmem:[#allocation18 + $0x58] sm:$0xff]
    %v6156 = vld [vmem:[#allocation18 + $0x60] sm:$0xff]
    %v6157 = vld [vmem:[#allocation18 + $0x68] sm:$0xff]
    %v6158 = vld [vmem:[#allocation18 + $0x70] sm:$0xff]
    %v6159 = vld [vmem:[#allocation18 + $0x78] sm:$0xff]
    %v6160 = vpack.c.bf16 %v6142, %v6140
    %v6161 = vpack.c.bf16 %v6143, %v6141
    %v6178 = vunpack.c.l.b16 %v6144
    %v6179 = vunpack.c.h.b16 %v6144
    %v6180 = vunpack.c.l.b16 %v6145
    %v6181 = vunpack.c.h.b16 %v6145
    %v6182 = vunpack.c.l.b16 %v6146
    %v6183 = vunpack.c.h.b16 %v6146
    %v6184 = vunpack.c.l.b16 %v6147
    %v6185 = vunpack.c.h.b16 %v6147
    %v6186 = vunpack.c.l.b16 %v6148
    %v6187 = vunpack.c.h.b16 %v6148
    %v6188 = vunpack.c.l.b16 %v6149
    %v6189 = vunpack.c.h.b16 %v6149
    %v6190 = vunpack.c.l.b16 %v6150
    %v6191 = vunpack.c.h.b16 %v6150
    %v6192 = vunpack.c.l.b16 %v6151
    %v6193 = vunpack.c.h.b16 %v6151
    %v6194 = vunpack.c.l.b16 %v6152
    %v6195 = vunpack.c.h.b16 %v6152
    %v6196 = vunpack.c.l.b16 %v6153
    %v6197 = vunpack.c.h.b16 %v6153
    %v6198 = vunpack.c.l.b16 %v6154
    %v6199 = vunpack.c.h.b16 %v6154
    %v6200 = vunpack.c.l.b16 %v6155
    %v6201 = vunpack.c.h.b16 %v6155
    %v6202 = vunpack.c.l.b16 %v6156
    %v6203 = vunpack.c.h.b16 %v6156
    %v6204 = vunpack.c.l.b16 %v6157
    %v6205 = vunpack.c.h.b16 %v6157
    %v6206 = vunpack.c.l.b16 %v6158
    %v6207 = vunpack.c.h.b16 %v6158
    %v6208 = vunpack.c.l.b16 %v6159
    %v6209 = vunpack.c.h.b16 %v6159
    %v6210 = vpack.c.b16 %v6180, %v6178
    %v6211 = vpack.c.b16 %v6181, %v6179
    %v6212 = vpack.c.b16 %v6184, %v6182
    %v6213 = vpack.c.b16 %v6185, %v6183
    %v6214 = vpack.c.b16 %v6188, %v6186
    %v6215 = vpack.c.b16 %v6189, %v6187
    %v6216 = vpack.c.b16 %v6192, %v6190
    %v6217 = vpack.c.b16 %v6193, %v6191
    %v6218 = vpack.c.b16 %v6196, %v6194
    %v6219 = vpack.c.b16 %v6197, %v6195
    %v6220 = vpack.c.b16 %v6200, %v6198
    %v6221 = vpack.c.b16 %v6201, %v6199
    %v6222 = vpack.c.b16 %v6204, %v6202
    %v6223 = vpack.c.b16 %v6205, %v6203
    %v6224 = vpack.c.b16 %v6208, %v6206
    %v6225 = vpack.c.b16 %v6209, %v6207
    %6242 = vmatpush.bf16.xpose.msra.mxu0 0
    %6243 = vmatpush.bf16.xpose.msra.mxu0 0
    %6244 = vmatpush.bf16.xpose.msra.mxu0 0
    %6245 = vmatpush.bf16.xpose.msra.mxu0 0
    %6246 = vmatpush.bf16.xpose.msra.mxu0 0
    %6247 = vmatpush.bf16.xpose.msra.mxu0 0
    %6248 = vmatpush.bf16.xpose.msra.mxu0 0
    %6249 = vmatpush.bf16.xpose.msra.mxu0 %v6160
    %6250 = vmatmul.bf16.gmra.mxu0 %v6210
    %v6251 = vpop.f32.mrf.mxu0
    %v6252 = vadd.f32 0.0, %v6251
    %v6253 = vpop.f32.mrf.mxu0
    %6254 = vmatmul.bf16.gmra.mxu0 %v6212
    %v6255 = vpop.f32.mrf.mxu0
    %v6256 = vpop.f32.mrf.mxu0
    %6257 = vmatmul.bf16.gmra.mxu0 %v6214
    %v6258 = vpop.f32.mrf.mxu0
    %v6259 = vpop.f32.mrf.mxu0
    %6260 = vmatmul.bf16.gmra.mxu0 %v6216
    %v6261 = vpop.f32.mrf.mxu0
    %v6262 = vpop.f32.mrf.mxu0
    %6263 = vmatmul.bf16.gmra.mxu0 %v6218
    %v6264 = vpop.f32.mrf.mxu0
    %v6265 = vpop.f32.mrf.mxu0
    %6266 = vmatmul.bf16.gmra.mxu0 %v6220
    %v6267 = vpop.f32.mrf.mxu0
    %v6268 = vpop.f32.mrf.mxu0
    %6269 = vmatmul.bf16.gmra.mxu0 %v6222
    %v6270 = vpop.f32.mrf.mxu0
    %v6271 = vpop.f32.mrf.mxu0
    %6272 = vmatmul.bf16.gmra.mxu0 %v6224
    %v6273 = vpop.f32.mrf.mxu0
    %v6274 = vpop.f32.mrf.mxu0
    %6275 = vdwg.mxu0
    %6276 = vmatpush.bf16.xpose.msra.mxu0 0
    %6277 = vmatpush.bf16.xpose.msra.mxu0 0
    %6278 = vmatpush.bf16.xpose.msra.mxu0 0
    %6279 = vmatpush.bf16.xpose.msra.mxu0 0
    %6280 = vmatpush.bf16.xpose.msra.mxu0 0
    %6281 = vmatpush.bf16.xpose.msra.mxu0 0
    %6282 = vmatpush.bf16.xpose.msra.mxu0 0
    %6283 = vmatpush.bf16.xpose.msra.mxu0 %v6161
    %6284 = vmatmul.bf16.gmra.mxu0 %v6211
    %v6285 = vpop.f32.mrf.mxu0
    %v6286 = vadd.f32 %v6252, %v6285
    %v6287 = vpop.f32.mrf.mxu0
    %6288 = vmatmul.bf16.gmra.mxu0 %v6213
    %v6289 = vpop.f32.mrf.mxu0
    %v6290 = vpop.f32.mrf.mxu0
    %6291 = vmatmul.bf16.gmra.mxu0 %v6215
    %v6292 = vpop.f32.mrf.mxu0
    %v6293 = vpop.f32.mrf.mxu0
    %6294 = vmatmul.bf16.gmra.mxu0 %v6217
    %v6295 = vpop.f32.mrf.mxu0
    %v6296 = vpop.f32.mrf.mxu0
    %6297 = vmatmul.bf16.gmra.mxu0 %v6219
    %v6298 = vpop.f32.mrf.mxu0
    %v6299 = vpop.f32.mrf.mxu0
    %6300 = vmatmul.bf16.gmra.mxu0 %v6221
    %v6301 = vpop.f32.mrf.mxu0
    %v6302 = vpop.f32.mrf.mxu0
    %6303 = vmatmul.bf16.gmra.mxu0 %v6223
    %v6304 = vpop.f32.mrf.mxu0
    %v6305 = vpop.f32.mrf.mxu0
    %6306 = vmatmul.bf16.gmra.mxu0 %v6225
    %v6307 = vpop.f32.mrf.mxu0
    %v6308 = vpop.f32.mrf.mxu0
    %6309 = vdwg.mxu0
    %s6310 = sld [smem:[#allocation2]]
    %v6311 = vstv %s6310
    %v6312 = vadd.f32 %v6286, %v6311
    %v6313 = vsub.f32 0.0, %v6312
    %v6314 = vmul.f32 %v6313, 1.442695
    %v6315 = vpow.pop %v6314
    %v6316 = vadd.f32 %v6315, 1.0
    %v6317 = vrcp.pop %v6316
    %v6318 = vmul.f32 %v6316, %v6317
    %v6319 = vsub.f32 1.0, %v6318
    %v6320 = vmul.f32 %v6317, %v6319
    %v6321 = vadd.f32 %v6317, %v6320
    %vm6322 = vweird.f32 %v6316
    %vm6323 = vweird.f32 %v6317
    %vm6324 = vmor %vm6322, %vm6323
    %v6325 = vsel %vm6324, %v6317, %v6321
    %v6326 = vand.u32 2147483647, %v6316
    %vm6327 = vcmp.eq.f32.partialorder %v6326, 8.507059e+37
    %v6328 = vand.u32 %v6316, 2147483648
    %v6329 = vor.u32 1.1754944e-38, %v6328
    %v6330 = vsel %vm6327, %v6329, %v6325
    %v6331 = vmul.f32 1.0, %v6330
    %vm6332 = vcmask 122880
    %6333 = vst.msk [vmem:[#allocation20] sm:$0x1] %vm6332, %v6331
    // Predicated region
    $region86: #{tpu_custom_call.1} parent=1 // pred_check
      _
    $region87: #{tpu_custom_call.1} parent=1 // pred_check_branch
      %6335 = sbr.rel (0) target = $region89
    $region88: #{tpu_custom_call.1} parent=1 // pred_region
      %6337 = vsyncadd [#allocation5], 0
      %s6339 = sshll.u32 [#allocation20], 4
      %s6340 = int_to_ptr.vmem [resolvable:$true] %s6339
      %s6341 = sshll.u32 %s11, 4
      %s6342 = int_to_ptr.hbm [resolvable:$true] %s6341
      %6344 = dma.vmem_to_hbm [thread:$0]  %s6340, 16, %s6342, [#allocation5]
    $region89: #{tpu_custom_call.1} parent=1 // pred_fallthru
      _
    // Predicated region
    $region90: #{tpu_custom_call.1} parent=1 // pred_check
      _
    $region91: #{tpu_custom_call.1} parent=1 // pred_check_branch
      %6346 = sbr.rel (0) target = $region93
    $region92: #{tpu_custom_call.1} parent=1 // pred_region
      %6348 = dma.done [#allocation5], 16
    $region93: #{tpu_custom_call.1} parent=1 // pred_fallthru
      _
    %6349 = vsyncpa [#allocation4], 1
    %6350 = vsyncpa [#allocation7], 1
    %6351 = vsyncpa [#allocation10], 1
    %6352 = vsyncpa [#allocation13], 1
    %6353 = vsyncpa [#allocation16], 1
    %6354 = vsyncpa [#allocation19], 1
    %6355 = vsyncpa [#allocation5], 1

</llo_original>
